<compile_context>
chip_gen: v7x
topology: tpu7x:2x2x1
jax: 0.10.0
libtpu: 0.0.40
codegen_flags: <defaults>
</compile_context>

<pallas_src>
import functools

import jax
import jax.numpy as jnp
from jax import lax
from jax.experimental import pallas as pl
from jax.experimental.pallas import tpu as pltpu

NDF = 32
NC = 3
LRELU_SLOPE = 0.2
BN_EPS = 1e-5

MM_TILE_ROWS = 256   # target row tile for the matmul kernels
BN_TILE_ROWS = 512   # target row tile for the BN-apply kernels

_PARALLEL_1D = pltpu.CompilerParams(dimension_semantics=("parallel",))


def _pick_tile(m, target):
    """Largest divisor of m that is <= target (exact grid, no ragged tiles)."""
    if m <= target:
        return m
    for t in range(target, 0, -1):
        if m % t == 0:
            return t
    return m


# ----------------------------- Pallas kernels ------------------------------

def _matmul_act_kernel(p_ref, w_ref, o_ref, *, act):
    """One M-tile of the im2col matmul: (tm,K)bf16 @ (K,C)bf16 -> f32 (+ LeakyReLU)."""
    y = jnp.dot(p_ref[...], w_ref[...], preferred_element_type=jnp.float32)
    if act == "lrelu":
        y = jnp.where(y > 0, y, LRELU_SLOPE * y)
    o_ref[...] = y.astype(o_ref.dtype)


def matmul_layer(patches, w_mat, *, act="none", out_dtype=jnp.float32):
    """M-tiled, pipelined matmul; weight block index is constant -> VMEM resident."""
    m, k = patches.shape
    kw, c = w_mat.shape
    assert kw == k
    tm = _pick_tile(m, MM_TILE_ROWS)
    kernel = functools.partial(_matmul_act_kernel, act=act)
    return pl.pallas_call(
        kernel,
        out_shape=jax.ShapeDtypeStruct((m, c), out_dtype),
        grid=(m // tm,),
        in_specs=[
            pl.BlockSpec((tm, k), lambda i: (i, 0)),   # row tiles stream through
            pl.BlockSpec((k, c), lambda i: (0, 0)),    # weight stays resident
        ],
        out_specs=pl.BlockSpec((tm, c), lambda i: (i, 0)),
        compiler_params=_PARALLEL_1D,
    )(patches, w_mat)


def _bn_lrelu_kernel(y_ref, scale_ref, shift_ref, o_ref):
    """Fused per-channel affine (BatchNorm) + LeakyReLU + cast, one M-tile."""
    y = y_ref[...] * scale_ref[...] + shift_ref[...]
    y = jnp.where(y > 0, y, LRELU_SLOPE * y)
    o_ref[...] = y.astype(o_ref.dtype)


def bn_lrelu_apply(y, scale, shift, *, out_dtype=jnp.bfloat16):
    m, c = y.shape
    tm = _pick_tile(m, BN_TILE_ROWS)
    return pl.pallas_call(
        _bn_lrelu_kernel,
        out_shape=jax.ShapeDtypeStruct((m, c), out_dtype),
        grid=(m // tm,),
        in_specs=[
            pl.BlockSpec((tm, c), lambda i: (i, 0)),
            pl.BlockSpec((1, c), lambda i: (0, 0)),
            pl.BlockSpec((1, c), lambda i: (0, 0)),
        ],
        out_specs=pl.BlockSpec((tm, c), lambda i: (i, 0)),
        compiler_params=_PARALLEL_1D,
    )(y, scale, shift)


# ------------------------------- JAX glue ----------------------------------

def im2col(x, k, s, p):
    """x: (N, H, W, C) -> patches (N*Ho*Wo, k*k*C), column order (kh, kw, C)."""
    # TODO(synk): patches are still materialized in HBM (k*k read amplification);
    # fully fusing the patch gather into the matmul kernel is the remaining step.
    n, h, w, c = x.shape
    xp = jnp.pad(x, ((0, 0), (p, p), (p, p), (0, 0)))
    ho = (h + 2 * p - k) // s + 1
    wo = (w + 2 * p - k) // s + 1
    cols = []
    for i in range(k):
        for j in range(k):
            cols.append(xp[:, i:i + s * ho:s, j:j + s * wo:s, :])
    patches = jnp.concatenate(cols, axis=-1)            # (N, Ho, Wo, k*k*C)
    return patches.reshape(n * ho * wo, k * k * c), (n, ho, wo)


def conv_weight_to_mat(w):
    """PyTorch conv weight (Cout, Cin, kh, kw) -> (kh*kw*Cin, Cout), matching im2col."""
    c_out = w.shape[0]
    return jnp.transpose(w, (2, 3, 1, 0)).reshape(-1, c_out)


def _row_group(c_out):
    """How many output rows to fold into one 128-lane row (lane-dense stores)."""
    return max(1, 128 // c_out) if 128 % c_out == 0 else 1


def _block_diag_weight(w_mat, g):
    """(K, C) -> block-diagonal (g*K, g*C): grouped_patches @ wg == grouped conv out."""
    if g == 1:
        return w_mat
    k, c = w_mat.shape
    wg = jnp.zeros((g * k, g * c), w_mat.dtype)
    for j in range(g):
        wg = wg.at[j * k:(j + 1) * k, j * c:(j + 1) * c].set(w_mat)
    return wg


def _bn_scale_shift(y_grouped, c_out, gamma, beta):
    """Batch-stat BN folded to per-column scale/shift for the row-grouped layout."""
    y = y_grouped.reshape(-1, c_out)                    # free row-major un-grouping
    mean = jnp.mean(y, axis=0)
    var = jnp.mean(jnp.square(y - mean[None, :]), axis=0)   # biased var (PyTorch norm)
    scale = gamma * lax.rsqrt(var + BN_EPS)
    shift = beta - mean * scale
    g = y_grouped.shape[1] // c_out
    # TODO(synk): running_mean / running_var updates are training bookkeeping, not
    # part of the forward output, so they are not produced here.
    return jnp.tile(scale, g)[None, :], jnp.tile(shift, g)[None, :]


def _conv_lrelu(x, w_mat, c_out, k, s, p):
    patches, (n, ho, wo) = im2col(x, k, s, p)
    g = _row_group(c_out)
    pg = patches.reshape(patches.shape[0] // g, g * patches.shape[1])  # free reshape
    wg = _block_diag_weight(w_mat, g).astype(jnp.bfloat16)
    yg = matmul_layer(pg, wg, act="lrelu", out_dtype=jnp.bfloat16)
    return yg.reshape(n, ho, wo, c_out)


def _conv_bn_lrelu(x, w_mat, gamma, beta, c_out, k, s, p):
    patches, (n, ho, wo) = im2col(x, k, s, p)
    g = _row_group(c_out)
    pg = patches.reshape(patches.shape[0] // g, g * patches.shape[1])
    wg = _block_diag_weight(w_mat, g).astype(jnp.bfloat16)
    # Pass A: tiled matmul; pre-BN activations kept in f32 for exact batch stats.
    yg = matmul_layer(pg, wg, act="none", out_dtype=jnp.float32)
    # Tiny per-channel reduction in plain JAX (exact over all M tiles).
    scale, shift = _bn_scale_shift(yg, c_out, gamma, beta)
    # Pass B: tiled fused scale/shift + LeakyReLU, cast to bf16 for the next layer.
    xg = bn_lrelu_apply(yg, scale, shift, out_dtype=jnp.bfloat16)
    return xg.reshape(n, ho, wo, c_out)


def init_params(key):
    ks = jax.random.split(key, 5)

    def conv_w(k, c_out, c_in, kh, kw):
        # PyTorch Conv2d default init: U(-1/sqrt(fan_in), 1/sqrt(fan_in)).
        fan_in = c_in * kh * kw
        bound = 1.0 / (fan_in ** 0.5)
        return jax.random.uniform(k, (c_out, c_in, kh, kw), jnp.float32, -bound, bound)

    return {
        "w1": conv_weight_to_mat(conv_w(ks[0], NDF, NC, 3, 3)),
        "w2": conv_weight_to_mat(conv_w(ks[1], NDF * 2, NDF, 4, 4)),
        "w3": conv_weight_to_mat(conv_w(ks[2], NDF * 4, NDF * 2, 4, 4)),
        "w4": conv_weight_to_mat(conv_w(ks[3], NDF * 8, NDF * 4, 4, 4)),
        "w5": conv_weight_to_mat(conv_w(ks[4], 1, NDF * 8, 2, 2)),
        # BatchNorm2d defaults: weight = 1, bias = 0.
        "g1": jnp.ones((NDF * 2,), jnp.float32), "b1": jnp.zeros((NDF * 2,), jnp.float32),
        "g2": jnp.ones((NDF * 4,), jnp.float32), "b2": jnp.zeros((NDF * 4,), jnp.float32),
        "g3": jnp.ones((NDF * 8,), jnp.float32), "b3": jnp.zeros((NDF * 8,), jnp.float32),
    }


def cifar_discriminator_forward(x_nchw, params):
    # NCHW (PyTorch) -> NHWC; MXU operands in bf16, accumulation/statistics in f32.
    x = jnp.transpose(x_nchw, (0, 2, 3, 1)).astype(jnp.bfloat16)          # (N, 32, 32, 3)

    # conv1: 3 -> 32, k3 s2 p1, LeakyReLU(0.2)                            -> (N, 16, 16, 32)
    x = _conv_lrelu(x, params["w1"], NDF, 3, 2, 1)
    # conv2: 32 -> 64, k4 s2 p1, BN + LeakyReLU                           -> (N, 8, 8, 64)
    x = _conv_bn_lrelu(x, params["w2"], params["g1"], params["b1"], NDF * 2, 4, 2, 1)
    # conv3: 64 -> 128, k4 s2 p1, BN + LeakyReLU                          -> (N, 4, 4, 128)
    x = _conv_bn_lrelu(x, params["w3"], params["g2"], params["b2"], NDF * 4, 4, 2, 1)
    # conv4: 128 -> 256, k4 s2 p1, BN + LeakyReLU                         -> (N, 2, 2, 256)
    x = _conv_bn_lrelu(x, params["w4"], params["g3"], params["b3"], NDF * 8, 4, 2, 1)

    # conv5: 256 -> 1, k2 s1 p0, Sigmoid.  Tiny (N,1024)@(1024,1) dot: done in
    # plain JAX per the perf review (a pallas_call would waste the MXU + launch).
    n = x.shape[0]
    x5 = x.reshape(n, 2 * 2 * NDF * 8)          # row-major == im2col (kh, kw, C) order
    logits = jnp.dot(x5, params["w5"].astype(jnp.bfloat16),
                     preferred_element_type=jnp.float32)                  # (N, 1)

    # output.view(-1, 1).squeeze(1)  -> (N,)
    return jax.nn.sigmoid(logits).reshape(-1)


if __name__ == "__main__":
    key = jax.random.PRNGKey(0)
    pkey, xkey = jax.random.split(key)
    params = init_params(pkey)

    # CIFAR-sized input (architecture requires 32x32 spatial); batch of 8 keeps the
    # test small while exercising a multi-tile (pipelined) grid on conv1.
    x = jax.random.normal(xkey, (8, 3, 32, 32), jnp.float32)

    out = jax.jit(cifar_discriminator_forward)(x, params)
    out = jax.block_until_ready(out)

    assert out.shape == (8,), out.shape
    assert bool(jnp.all(jnp.isfinite(out)))
    assert bool(jnp.all((out >= 0.0) & (out <= 1.0)))   # sigmoid range
    print("KERNEL_OK")
</pallas_src>

<mosaic_0001>
module attributes {stable_mosaic.version = 11 : i64} {
  func.func @_matmul_act_kernel(%arg0: i32, %arg1: memref<256x108xbf16, #tpu.memory_space<vmem>>, %arg2: memref<108x128xbf16, #tpu.memory_space<vmem>>, %arg3: memref<256x128xbf16, #tpu.memory_space<vmem>>) attributes {dimension_semantics = [#tpu.dimension_semantics<parallel>], iteration_bounds = array<i64: 2>, scalar_prefetch = 0 : i64, scratch_operands = 0 : i64, tpu.core_type = #tpu.core_type<tc>, window_params = [{transform_indices = @transform_0, window_bounds = array<i64: 256, 108>}, {pipeline_mode = #tpu.pipeline_mode<synchronous>, transform_indices = @transform_1, window_bounds = array<i64: 108, 128>}, {transform_indices = @transform_2, window_bounds = array<i64: 256, 128>}]} {
    %c0 = arith.constant 0 : index
    %c0_0 = arith.constant 0 : index
    %0 = vector.load %arg1[%c0, %c0_0] : memref<256x108xbf16, #tpu.memory_space<vmem>>, vector<256x108xbf16>
    %c0_1 = arith.constant 0 : index
    %c0_2 = arith.constant 0 : index
    %1 = vector.load %arg2[%c0_1, %c0_2] : memref<108x128xbf16, #tpu.memory_space<vmem>>, vector<108x128xbf16>
    %cst = arith.constant dense<0.000000e+00> : vector<256x128xf32>
    %2 = tpu.matmul %0, %1, %cst {dimension_numbers = #tpu.dot_dimension_numbers<[1], [0], [0], [1], [0, 0, 1, 1], [], []>} : vector<256x108xbf16>, vector<108x128xbf16>, vector<256x128xf32> -> vector<256x128xf32>
    %cst_3 = arith.constant 0.000000e+00 : f32
    %3 = vector.broadcast %cst_3 : f32 to vector<256x128xf32>
    %4 = arith.cmpf ogt, %2, %3 : vector<256x128xf32>
    %cst_4 = arith.constant 2.000000e-01 : f32
    %5 = vector.broadcast %cst_4 : f32 to vector<256x128xf32>
    %6 = arith.mulf %5, %2 : vector<256x128xf32>
    %7 = arith.select %4, %2, %6 : vector<256x128xi1>, vector<256x128xf32>
    %8 = arith.truncf %7 : vector<256x128xf32> to vector<256x128xbf16>
    %c0_5 = arith.constant 0 : index
    %c0_6 = arith.constant 0 : index
    %9 = vector.load %arg3[%c0_5, %c0_6] : memref<256x128xbf16, #tpu.memory_space<vmem>>, vector<256x128xbf16>
    tpu.vector_store %arg3[%c0_5, %c0_6], %8 {strides = array<i32>} : memref<256x128xbf16, #tpu.memory_space<vmem>>, vector<256x128xbf16>,
    return
  }
  func.func @transform_0(%arg0: i32) -> (i32, i32) {
    %c0_i32 = arith.constant 0 : i32
    %c0_i32_0 = arith.constant 0 : i32
    return %arg0, %c0_i32 : i32, i32
  }
  func.func @transform_1(%arg0: i32) -> (i32, i32) {
    %c0_i32 = arith.constant 0 : i32
    %c0_i32_0 = arith.constant 0 : i32
    %c0_i32_1 = arith.constant 0 : i32
    return %c0_i32, %c0_i32_0 : i32, i32
  }
  func.func @transform_2(%arg0: i32) -> (i32, i32) {
    %c0_i32 = arith.constant 0 : i32
    %c0_i32_0 = arith.constant 0 : i32
    return %arg0, %c0_i32 : i32, i32
  }
}

module attributes {stable_mosaic.version = 11 : i64} {
  func.func @_matmul_act_kernel(%arg0: i32, %arg1: memref<256x1024xbf16, #tpu.memory_space<vmem>>, %arg2: memref<1024x128xbf16, #tpu.memory_space<vmem>>, %arg3: memref<256x128xf32, #tpu.memory_space<vmem>>) attributes {dimension_semantics = [#tpu.dimension_semantics<parallel>], iteration_bounds = array<i64: 1>, scalar_prefetch = 0 : i64, scratch_operands = 0 : i64, tpu.core_type = #tpu.core_type<tc>, window_params = [{transform_indices = @transform_0, window_bounds = array<i64: 256, 1024>}, {pipeline_mode = #tpu.pipeline_mode<synchronous>, transform_indices = @transform_1, window_bounds = array<i64: 1024, 128>}, {transform_indices = @transform_2, window_bounds = array<i64: 256, 128>}]} {
    %c0 = arith.constant 0 : index
    %c0_0 = arith.constant 0 : index
    %0 = vector.load %arg1[%c0, %c0_0] : memref<256x1024xbf16, #tpu.memory_space<vmem>>, vector<256x1024xbf16>
    %c0_1 = arith.constant 0 : index
    %c0_2 = arith.constant 0 : index
    %1 = vector.load %arg2[%c0_1, %c0_2] : memref<1024x128xbf16, #tpu.memory_space<vmem>>, vector<1024x128xbf16>
    %cst = arith.constant dense<0.000000e+00> : vector<256x128xf32>
    %2 = tpu.matmul %0, %1, %cst {dimension_numbers = #tpu.dot_dimension_numbers<[1], [0], [0], [1], [0, 0, 1, 1], [], []>} : vector<256x1024xbf16>, vector<1024x128xbf16>, vector<256x128xf32> -> vector<256x128xf32>
    %c0_3 = arith.constant 0 : index
    %c0_4 = arith.constant 0 : index
    %3 = vector.load %arg3[%c0_3, %c0_4] : memref<256x128xf32, #tpu.memory_space<vmem>>, vector<256x128xf32>
    tpu.vector_store %arg3[%c0_3, %c0_4], %2 {strides = array<i32>} : memref<256x128xf32, #tpu.memory_space<vmem>>, vector<256x128xf32>,
    return
  }
  func.func @transform_0(%arg0: i32) -> (i32, i32) {
    %c0_i32 = arith.constant 0 : i32
    %c0_i32_0 = arith.constant 0 : i32
    return %arg0, %c0_i32 : i32, i32
  }
  func.func @transform_1(%arg0: i32) -> (i32, i32) {
    %c0_i32 = arith.constant 0 : i32
    %c0_i32_0 = arith.constant 0 : i32
    %c0_i32_1 = arith.constant 0 : i32
    return %c0_i32, %c0_i32_0 : i32, i32
  }
  func.func @transform_2(%arg0: i32) -> (i32, i32) {
    %c0_i32 = arith.constant 0 : i32
    %c0_i32_0 = arith.constant 0 : i32
    return %arg0, %c0_i32 : i32, i32
  }
}

module attributes {stable_mosaic.version = 11 : i64} {
  func.func @_bn_lrelu_kernel(%arg0: i32, %arg1: memref<256x128xf32, #tpu.memory_space<vmem>>, %arg2: memref<1x128xf32, #tpu.memory_space<vmem>>, %arg3: memref<1x128xf32, #tpu.memory_space<vmem>>, %arg4: memref<256x128xbf16, #tpu.memory_space<vmem>>) attributes {dimension_semantics = [#tpu.dimension_semantics<parallel>], iteration_bounds = array<i64: 1>, scalar_prefetch = 0 : i64, scratch_operands = 0 : i64, tpu.core_type = #tpu.core_type<tc>, window_params = [{transform_indices = @transform_0, window_bounds = array<i64: 256, 128>}, {pipeline_mode = #tpu.pipeline_mode<synchronous>, transform_indices = @transform_1, window_bounds = array<i64: 1, 128>}, {pipeline_mode = #tpu.pipeline_mode<synchronous>, transform_indices = @transform_2, window_bounds = array<i64: 1, 128>}, {transform_indices = @transform_3, window_bounds = array<i64: 256, 128>}]} {
    %c0 = arith.constant 0 : index
    %c0_0 = arith.constant 0 : index
    %0 = vector.load %arg1[%c0, %c0_0] : memref<256x128xf32, #tpu.memory_space<vmem>>, vector<256x128xf32>
    %c0_1 = arith.constant 0 : index
    %c0_2 = arith.constant 0 : index
    %1 = vector.load %arg2[%c0_1, %c0_2] : memref<1x128xf32, #tpu.memory_space<vmem>>, vector<1x128xf32>
    %2 = vector.broadcast %1 : vector<1x128xf32> to vector<256x128xf32>
    %3 = arith.mulf %0, %2 : vector<256x128xf32>
    %c0_3 = arith.constant 0 : index
    %c0_4 = arith.constant 0 : index
    %4 = vector.load %arg3[%c0_3, %c0_4] : memref<1x128xf32, #tpu.memory_space<vmem>>, vector<1x128xf32>
    %5 = vector.broadcast %4 : vector<1x128xf32> to vector<256x128xf32>
    %6 = arith.addf %3, %5 : vector<256x128xf32>
    %cst = arith.constant 0.000000e+00 : f32
    %7 = vector.broadcast %cst : f32 to vector<256x128xf32>
    %8 = arith.cmpf ogt, %6, %7 : vector<256x128xf32>
    %cst_5 = arith.constant 2.000000e-01 : f32
    %9 = vector.broadcast %cst_5 : f32 to vector<256x128xf32>
    %10 = arith.mulf %9, %6 : vector<256x128xf32>
    %11 = arith.select %8, %6, %10 : vector<256x128xi1>, vector<256x128xf32>
    %12 = arith.truncf %11 : vector<256x128xf32> to vector<256x128xbf16>
    %c0_6 = arith.constant 0 : index
    %c0_7 = arith.constant 0 : index
    %13 = vector.load %arg4[%c0_6, %c0_7] : memref<256x128xbf16, #tpu.memory_space<vmem>>, vector<256x128xbf16>
    tpu.vector_store %arg4[%c0_6, %c0_7], %12 {strides = array<i32>} : memref<256x128xbf16, #tpu.memory_space<vmem>>, vector<256x128xbf16>,
    return
  }
  func.func @transform_0(%arg0: i32) -> (i32, i32) {
    %c0_i32 = arith.constant 0 : i32
    %c0_i32_0 = arith.constant 0 : i32
    return %arg0, %c0_i32 : i32, i32
  }
  func.func @transform_1(%arg0: i32) -> (i32, i32) {
    %c0_i32 = arith.constant 0 : i32
    %c0_i32_0 = arith.constant 0 : i32
    %c0_i32_1 = arith.constant 0 : i32
    return %c0_i32, %c0_i32_0 : i32, i32
  }
  func.func @transform_2(%arg0: i32) -> (i32, i32) {
    %c0_i32 = arith.constant 0 : i32
    %c0_i32_0 = arith.constant 0 : i32
    %c0_i32_1 = arith.constant 0 : i32
    return %c0_i32, %c0_i32_0 : i32, i32
  }
  func.func @transform_3(%arg0: i32) -> (i32, i32) {
    %c0_i32 = arith.constant 0 : i32
    %c0_i32_0 = arith.constant 0 : i32
    return %arg0, %c0_i32 : i32, i32
  }
}

module attributes {stable_mosaic.version = 11 : i64} {
  func.func @_matmul_act_kernel(%arg0: i32, %arg1: memref<128x1024xbf16, #tpu.memory_space<vmem>>, %arg2: memref<1024x128xbf16, #tpu.memory_space<vmem>>, %arg3: memref<128x128xf32, #tpu.memory_space<vmem>>) attributes {dimension_semantics = [#tpu.dimension_semantics<parallel>], iteration_bounds = array<i64: 1>, scalar_prefetch = 0 : i64, scratch_operands = 0 : i64, tpu.core_type = #tpu.core_type<tc>, window_params = [{transform_indices = @transform_0, window_bounds = array<i64: 128, 1024>}, {pipeline_mode = #tpu.pipeline_mode<synchronous>, transform_indices = @transform_1, window_bounds = array<i64: 1024, 128>}, {transform_indices = @transform_2, window_bounds = array<i64: 128, 128>}]} {
    %c0 = arith.constant 0 : index
    %c0_0 = arith.constant 0 : index
    %0 = vector.load %arg1[%c0, %c0_0] : memref<128x1024xbf16, #tpu.memory_space<vmem>>, vector<128x1024xbf16>
    %c0_1 = arith.constant 0 : index
    %c0_2 = arith.constant 0 : index
    %1 = vector.load %arg2[%c0_1, %c0_2] : memref<1024x128xbf16, #tpu.memory_space<vmem>>, vector<1024x128xbf16>
    %cst = arith.constant dense<0.000000e+00> : vector<128x128xf32>
    %2 = tpu.matmul %0, %1, %cst {dimension_numbers = #tpu.dot_dimension_numbers<[1], [0], [0], [1], [0, 0, 1, 1], [], []>} : vector<128x1024xbf16>, vector<1024x128xbf16>, vector<128x128xf32> -> vector<128x128xf32>
    %c0_3 = arith.constant 0 : index
    %c0_4 = arith.constant 0 : index
    %3 = vector.load %arg3[%c0_3, %c0_4] : memref<128x128xf32, #tpu.memory_space<vmem>>, vector<128x128xf32>
    tpu.vector_store %arg3[%c0_3, %c0_4], %2 {strides = array<i32>} : memref<128x128xf32, #tpu.memory_space<vmem>>, vector<128x128xf32>,
    return
  }
  func.func @transform_0(%arg0: i32) -> (i32, i32) {
    %c0_i32 = arith.constant 0 : i32
    %c0_i32_0 = arith.constant 0 : i32
    return %arg0, %c0_i32 : i32, i32
  }
  func.func @transform_1(%arg0: i32) -> (i32, i32) {
    %c0_i32 = arith.constant 0 : i32
    %c0_i32_0 = arith.constant 0 : i32
    %c0_i32_1 = arith.constant 0 : i32
    return %c0_i32, %c0_i32_0 : i32, i32
  }
  func.func @transform_2(%arg0: i32) -> (i32, i32) {
    %c0_i32 = arith.constant 0 : i32
    %c0_i32_0 = arith.constant 0 : i32
    return %arg0, %c0_i32 : i32, i32
  }
}

module attributes {stable_mosaic.version = 11 : i64} {
  func.func @_bn_lrelu_kernel(%arg0: i32, %arg1: memref<128x128xf32, #tpu.memory_space<vmem>>, %arg2: memref<1x128xf32, #tpu.memory_space<vmem>>, %arg3: memref<1x128xf32, #tpu.memory_space<vmem>>, %arg4: memref<128x128xbf16, #tpu.memory_space<vmem>>) attributes {dimension_semantics = [#tpu.dimension_semantics<parallel>], iteration_bounds = array<i64: 1>, scalar_prefetch = 0 : i64, scratch_operands = 0 : i64, tpu.core_type = #tpu.core_type<tc>, window_params = [{transform_indices = @transform_0, window_bounds = array<i64: 128, 128>}, {pipeline_mode = #tpu.pipeline_mode<synchronous>, transform_indices = @transform_1, window_bounds = array<i64: 1, 128>}, {pipeline_mode = #tpu.pipeline_mode<synchronous>, transform_indices = @transform_2, window_bounds = array<i64: 1, 128>}, {transform_indices = @transform_3, window_bounds = array<i64: 128, 128>}]} {
    %c0 = arith.constant 0 : index
    %c0_0 = arith.constant 0 : index
    %0 = vector.load %arg1[%c0, %c0_0] : memref<128x128xf32, #tpu.memory_space<vmem>>, vector<128x128xf32>
    %c0_1 = arith.constant 0 : index
    %c0_2 = arith.constant 0 : index
    %1 = vector.load %arg2[%c0_1, %c0_2] : memref<1x128xf32, #tpu.memory_space<vmem>>, vector<1x128xf32>
    %2 = vector.broadcast %1 : vector<1x128xf32> to vector<128x128xf32>
    %3 = arith.mulf %0, %2 : vector<128x128xf32>
    %c0_3 = arith.constant 0 : index
    %c0_4 = arith.constant 0 : index
    %4 = vector.load %arg3[%c0_3, %c0_4] : memref<1x128xf32, #tpu.memory_space<vmem>>, vector<1x128xf32>
    %5 = vector.broadcast %4 : vector<1x128xf32> to vector<128x128xf32>
    %6 = arith.addf %3, %5 : vector<128x128xf32>
    %cst = arith.constant 0.000000e+00 : f32
    %7 = vector.broadcast %cst : f32 to vector<128x128xf32>
    %8 = arith.cmpf ogt, %6, %7 : vector<128x128xf32>
    %cst_5 = arith.constant 2.000000e-01 : f32
    %9 = vector.broadcast %cst_5 : f32 to vector<128x128xf32>
    %10 = arith.mulf %9, %6 : vector<128x128xf32>
    %11 = arith.select %8, %6, %10 : vector<128x128xi1>, vector<128x128xf32>
    %12 = arith.truncf %11 : vector<128x128xf32> to vector<128x128xbf16>
    %c0_6 = arith.constant 0 : index
    %c0_7 = arith.constant 0 : index
    %13 = vector.load %arg4[%c0_6, %c0_7] : memref<128x128xbf16, #tpu.memory_space<vmem>>, vector<128x128xbf16>
    tpu.vector_store %arg4[%c0_6, %c0_7], %12 {strides = array<i32>} : memref<128x128xbf16, #tpu.memory_space<vmem>>, vector<128x128xbf16>,
    return
  }
  func.func @transform_0(%arg0: i32) -> (i32, i32) {
    %c0_i32 = arith.constant 0 : i32
    %c0_i32_0 = arith.constant 0 : i32
    return %arg0, %c0_i32 : i32, i32
  }
  func.func @transform_1(%arg0: i32) -> (i32, i32) {
    %c0_i32 = arith.constant 0 : i32
    %c0_i32_0 = arith.constant 0 : i32
    %c0_i32_1 = arith.constant 0 : i32
    return %c0_i32, %c0_i32_0 : i32, i32
  }
  func.func @transform_2(%arg0: i32) -> (i32, i32) {
    %c0_i32 = arith.constant 0 : i32
    %c0_i32_0 = arith.constant 0 : i32
    %c0_i32_1 = arith.constant 0 : i32
    return %c0_i32, %c0_i32_0 : i32, i32
  }
  func.func @transform_3(%arg0: i32) -> (i32, i32) {
    %c0_i32 = arith.constant 0 : i32
    %c0_i32_0 = arith.constant 0 : i32
    return %arg0, %c0_i32 : i32, i32
  }
}

module attributes {stable_mosaic.version = 11 : i64} {
  func.func @_matmul_act_kernel(%arg0: i32, %arg1: memref<32x2048xbf16, #tpu.memory_space<vmem>>, %arg2: memref<2048x256xbf16, #tpu.memory_space<vmem>>, %arg3: memref<32x256xf32, #tpu.memory_space<vmem>>) attributes {dimension_semantics = [#tpu.dimension_semantics<parallel>], iteration_bounds = array<i64: 1>, scalar_prefetch = 0 : i64, scratch_operands = 0 : i64, tpu.core_type = #tpu.core_type<tc>, window_params = [{transform_indices = @transform_0, window_bounds = array<i64: 32, 2048>}, {pipeline_mode = #tpu.pipeline_mode<synchronous>, transform_indices = @transform_1, window_bounds = array<i64: 2048, 256>}, {transform_indices = @transform_2, window_bounds = array<i64: 32, 256>}]} {
    %c0 = arith.constant 0 : index
    %c0_0 = arith.constant 0 : index
    %0 = vector.load %arg1[%c0, %c0_0] : memref<32x2048xbf16, #tpu.memory_space<vmem>>, vector<32x2048xbf16>
    %c0_1 = arith.constant 0 : index
    %c0_2 = arith.constant 0 : index
    %1 = vector.load %arg2[%c0_1, %c0_2] : memref<2048x256xbf16, #tpu.memory_space<vmem>>, vector<2048x256xbf16>
    %cst = arith.constant dense<0.000000e+00> : vector<32x256xf32>
    %2 = tpu.matmul %0, %1, %cst {dimension_numbers = #tpu.dot_dimension_numbers<[1], [0], [0], [1], [0, 0, 1, 1], [], []>} : vector<32x2048xbf16>, vector<2048x256xbf16>, vector<32x256xf32> -> vector<32x256xf32>
    %c0_3 = arith.constant 0 : index
    %c0_4 = arith.constant 0 : index
    %3 = vector.load %arg3[%c0_3, %c0_4] : memref<32x256xf32, #tpu.memory_space<vmem>>, vector<32x256xf32>
    tpu.vector_store %arg3[%c0_3, %c0_4], %2 {strides = array<i32>} : memref<32x256xf32, #tpu.memory_space<vmem>>, vector<32x256xf32>,
    return
  }
  func.func @transform_0(%arg0: i32) -> (i32, i32) {
    %c0_i32 = arith.constant 0 : i32
    %c0_i32_0 = arith.constant 0 : i32
    return %arg0, %c0_i32 : i32, i32
  }
  func.func @transform_1(%arg0: i32) -> (i32, i32) {
    %c0_i32 = arith.constant 0 : i32
    %c0_i32_0 = arith.constant 0 : i32
    %c0_i32_1 = arith.constant 0 : i32
    return %c0_i32, %c0_i32_0 : i32, i32
  }
  func.func @transform_2(%arg0: i32) -> (i32, i32) {
    %c0_i32 = arith.constant 0 : i32
    %c0_i32_0 = arith.constant 0 : i32
    return %arg0, %c0_i32 : i32, i32
  }
}

module attributes {stable_mosaic.version = 11 : i64} {
  func.func @_bn_lrelu_kernel(%arg0: i32, %arg1: memref<32x256xf32, #tpu.memory_space<vmem>>, %arg2: memref<1x256xf32, #tpu.memory_space<vmem>>, %arg3: memref<1x256xf32, #tpu.memory_space<vmem>>, %arg4: memref<32x256xbf16, #tpu.memory_space<vmem>>) attributes {dimension_semantics = [#tpu.dimension_semantics<parallel>], iteration_bounds = array<i64: 1>, scalar_prefetch = 0 : i64, scratch_operands = 0 : i64, tpu.core_type = #tpu.core_type<tc>, window_params = [{transform_indices = @transform_0, window_bounds = array<i64: 32, 256>}, {pipeline_mode = #tpu.pipeline_mode<synchronous>, transform_indices = @transform_1, window_bounds = array<i64: 1, 256>}, {pipeline_mode = #tpu.pipeline_mode<synchronous>, transform_indices = @transform_2, window_bounds = array<i64: 1, 256>}, {transform_indices = @transform_3, window_bounds = array<i64: 32, 256>}]} {
    %c0 = arith.constant 0 : index
    %c0_0 = arith.constant 0 : index
    %0 = vector.load %arg1[%c0, %c0_0] : memref<32x256xf32, #tpu.memory_space<vmem>>, vector<32x256xf32>
    %c0_1 = arith.constant 0 : index
    %c0_2 = arith.constant 0 : index
    %1 = vector.load %arg2[%c0_1, %c0_2] : memref<1x256xf32, #tpu.memory_space<vmem>>, vector<1x256xf32>
    %2 = vector.broadcast %1 : vector<1x256xf32> to vector<32x256xf32>
    %3 = arith.mulf %0, %2 : vector<32x256xf32>
    %c0_3 = arith.constant 0 : index
    %c0_4 = arith.constant 0 : index
    %4 = vector.load %arg3[%c0_3, %c0_4] : memref<1x256xf32, #tpu.memory_space<vmem>>, vector<1x256xf32>
    %5 = vector.broadcast %4 : vector<1x256xf32> to vector<32x256xf32>
    %6 = arith.addf %3, %5 : vector<32x256xf32>
    %cst = arith.constant 0.000000e+00 : f32
    %7 = vector.broadcast %cst : f32 to vector<32x256xf32>
    %8 = arith.cmpf ogt, %6, %7 : vector<32x256xf32>
    %cst_5 = arith.constant 2.000000e-01 : f32
    %9 = vector.broadcast %cst_5 : f32 to vector<32x256xf32>
    %10 = arith.mulf %9, %6 : vector<32x256xf32>
    %11 = arith.select %8, %6, %10 : vector<32x256xi1>, vector<32x256xf32>
    %12 = arith.truncf %11 : vector<32x256xf32> to vector<32x256xbf16>
    %c0_6 = arith.constant 0 : index
    %c0_7 = arith.constant 0 : index
    %13 = vector.load %arg4[%c0_6, %c0_7] : memref<32x256xbf16, #tpu.memory_space<vmem>>, vector<32x256xbf16>
    tpu.vector_store %arg4[%c0_6, %c0_7], %12 {strides = array<i32>} : memref<32x256xbf16, #tpu.memory_space<vmem>>, vector<32x256xbf16>,
    return
  }
  func.func @transform_0(%arg0: i32) -> (i32, i32) {
    %c0_i32 = arith.constant 0 : i32
    %c0_i32_0 = arith.constant 0 : i32
    return %arg0, %c0_i32 : i32, i32
  }
  func.func @transform_1(%arg0: i32) -> (i32, i32) {
    %c0_i32 = arith.constant 0 : i32
    %c0_i32_0 = arith.constant 0 : i32
    %c0_i32_1 = arith.constant 0 : i32
    return %c0_i32, %c0_i32_0 : i32, i32
  }
  func.func @transform_2(%arg0: i32) -> (i32, i32) {
    %c0_i32 = arith.constant 0 : i32
    %c0_i32_0 = arith.constant 0 : i32
    %c0_i32_1 = arith.constant 0 : i32
    return %c0_i32, %c0_i32_0 : i32, i32
  }
  func.func @transform_3(%arg0: i32) -> (i32, i32) {
    %c0_i32 = arith.constant 0 : i32
    %c0_i32_0 = arith.constant 0 : i32
    return %arg0, %c0_i32 : i32, i32
  }
}

</mosaic_0001>

<llo_original>
// kernel: cifar_discriminator_forward.7
$region0: #{cifar_discriminator_forward.7}
  #allocation0 [shape = 'u32[]', space=smem, size = 0x4, offset = 0x4, fixed_abs, tag = 'smem constant byte address 0x4 - core index']
  #allocation1 [shape = 'u32[144,128]{1,0:T(1,128)}', space=vmem, size = 0x12000, scoped, tag = 'internal scratch']
  %s0 = inlined_call_operand.vmem [shape: bf16[512,108], index: 0, kind: input, shape index: {}]
  %s1 = inlined_call_operand.vmem [shape: bf16[108,128], index: 1, kind: input, shape index: {}]
  %s2 = inlined_call_operand.vmem [shape: bf16[512,128], index: 2, kind: output, shape index: {}]
  %s3 = sld [smem:[#allocation0]]
  $region41: #{cifar_discriminator_forward.7} parent=0
    _
  %s5 = ssub.s32 1, %s3
  %s6 = scalar_select 0, %s5, %s3
  loop: start=0, step=1, limit=4
  $region2: #{cifar_discriminator_forward.7} parent=0 // loop_pre_header
    _
  $region3: #{cifar_discriminator_forward.7} parent=0 // loop_header
    %s8 = sphi 0, %s12
    %p9 = scmp.ge.s32.totalorder %s8, 4
    %s18 = sphi 0, %s20
    %s21 = sphi 0, %s18
    %s22 = sphi 0, %s21
    %s38 = sphi 0, %s22
    %s42 = sphi 0, %s42
    %s44 = sphi 0, %s42
    %s45 = sphi 0, %s44
    %s59 = sphi 0, %s45
    %s65 = sphi 0, %s67
    %s68 = sphi 0, %s65
    %s69 = sphi 0, %s68
    %s85 = sphi 0, %s69
  $region4: #{cifar_discriminator_forward.7} parent=0 // loop_header_branch
    %11 = sbr.rel (%p9) target = $region8
  $region5: #{cifar_discriminator_forward.7} parent=0 // loop_body
    %s13 = ssub.s32 %s8, 1
    %s14 = ssub.s32 %s8, 2
    %s15 = sadd.s32 %s8, 1
    %s16 = ssub.s32 %s8, %s15
    %p17 = scmp.eq.s32.totalorder %s16, 0
    %s19 = sadd.s32 %s18, 1
    %s20 = scalar_select %p17, %s18, %s19
    %p23 = pneg %p17
    %p24 = scmp.eq.s32.totalorder %s8, 1
    %p25 = por %p23, %p24
    %p26 = scmp.ne.s32.totalorder %s18, %s21
    %p27 = scmp.eq.s32.totalorder %s8, 0
    %p28 = por %p26, %p27
    %p29 = scmp.ne.s32.totalorder %s18, %s21
    %p30 = scmp.eq.s32.totalorder %s13, 1
    %p31 = por %p29, %p30
    %p32 = scmp.ne.s32.totalorder %s21, %s22
    %p33 = scmp.eq.s32.totalorder %s13, 0
    %p34 = por %p32, %p33
    %p35 = scmp.ne.s32.totalorder %s21, %s22
    %p36 = scmp.eq.s32.totalorder %s14, 1
    %p37 = por %p35, %p36
    %p39 = scmp.ne.s32.totalorder %s22, %s38
    %p40 = scmp.eq.s32.totalorder %s14, 0
    %p41 = por %p39, %p40
    %s43 = sadd.s32 %s42, 1
    %p46 = scmp.eq.s32.totalorder %s8, 1
    %p47 = scmp.ne.s32.totalorder %s42, %s44
    %p48 = scmp.eq.s32.totalorder %s8, 0
    %p49 = por %p47, %p48
    %p50 = scmp.ne.s32.totalorder %s42, %s44
    %p51 = scmp.eq.s32.totalorder %s13, 1
    %p52 = por %p50, %p51
    %p53 = scmp.ne.s32.totalorder %s44, %s45
    %p54 = scmp.eq.s32.totalorder %s13, 0
    %p55 = por %p53, %p54
    %p56 = scmp.ne.s32.totalorder %s44, %s45
    %p57 = scmp.eq.s32.totalorder %s14, 1
    %p58 = por %p56, %p57
    %p60 = scmp.ne.s32.totalorder %s45, %s59
    %p61 = scmp.eq.s32.totalorder %s14, 0
    %p62 = por %p60, %p61
    %s63 = ssub.s32 %s8, %s15
    %p64 = scmp.eq.s32.totalorder %s63, 0
    %s66 = sadd.s32 %s65, 1
    %s67 = scalar_select %p64, %s65, %s66
    %p70 = pneg %p64
    %p71 = scmp.eq.s32.totalorder %s8, 1
    %p72 = por %p70, %p71
    %p73 = scmp.ne.s32.totalorder %s65, %s68
    %p74 = scmp.eq.s32.totalorder %s8, 0
    %p75 = por %p73, %p74
    %p76 = scmp.ne.s32.totalorder %s65, %s68
    %p77 = scmp.eq.s32.totalorder %s13, 1
    %p78 = por %p76, %p77
    %p79 = scmp.ne.s32.totalorder %s68, %s69
    %p80 = scmp.eq.s32.totalorder %s13, 0
    %p81 = por %p79, %p80
    %p82 = scmp.ne.s32.totalorder %s68, %s69
    %p83 = scmp.eq.s32.totalorder %s14, 1
    %p84 = por %p82, %p83
    %p86 = scmp.ne.s32.totalorder %s69, %s85
    %p87 = scmp.eq.s32.totalorder %s14, 0
    %p88 = por %p86, %p87
    %p89 = scmp.le.s32.totalorder 1, %s8
    %p90 = scmp.lt.s32.totalorder %s8, 3
    %p91 = pnand %p89, %p90
    %p92 = pneg %p91
    // Predicated region
    $region9: #{cifar_discriminator_forward.7} parent=5 // pred_check
      _
    $region10: #{cifar_discriminator_forward.7} parent=5 // pred_check_branch
      %94 = sbr.rel (%p91) target = $region12
    $region11: #{cifar_discriminator_forward.7} parent=5 // pred_region
      %s95 = ssub.s32 %s8, 1
      // Predicated region
      $region13: #{cifar_discriminator_forward.7} parent=11 // pred_check
        %p96 = pneg %p55
      $region14: #{cifar_discriminator_forward.7} parent=11 // pred_check_branch
        %98 = sbr.rel (%p96) target = $region16
      $region15: #{cifar_discriminator_forward.7} parent=11 // pred_region
        _
      $region16: #{cifar_discriminator_forward.7} parent=11 // pred_fallthru
        _
    $region12: #{cifar_discriminator_forward.7} parent=5 // pred_fallthru
      _
    %p99 = scmp.lt.s32.totalorder %s8, 2
    // Predicated region
    $region17: #{cifar_discriminator_forward.7} parent=5 // pred_check
      %p100 = pneg %p99
    $region18: #{cifar_discriminator_forward.7} parent=5 // pred_check_branch
      %102 = sbr.rel (%p100) target = $region20
    $region19: #{cifar_discriminator_forward.7} parent=5 // pred_region
      // Predicated region
      $region21: #{cifar_discriminator_forward.7} parent=19 // pred_check
        %p103 = pneg %p28
      $region22: #{cifar_discriminator_forward.7} parent=19 // pred_check_branch
        %105 = sbr.rel (%p103) target = $region24
      $region23: #{cifar_discriminator_forward.7} parent=19 // pred_region
        %s106 = smul.u32 32, %s8
        %p107 = scmp.lt.s32.totalorder %s106, 63
        %s108 = scalar_select %p107, %s106, 63
        %s109 = smul.addr %s108, 4
        %s110 = scalar_lea.vmem %s0, %s109
        %s111 = smul.u32 32, %s8
      $region24: #{cifar_discriminator_forward.7} parent=19 // pred_fallthru
        _
    $region20: #{cifar_discriminator_forward.7} parent=5 // pred_fallthru
      _
    %p112 = scmp.le.s32.totalorder 1, %s8
    %p113 = scmp.lt.s32.totalorder %s8, 3
    %p114 = pnand %p112, %p113
    %p115 = pneg %p114
    // Predicated region
    $region25: #{cifar_discriminator_forward.7} parent=5 // pred_check
      _
    $region26: #{cifar_discriminator_forward.7} parent=5 // pred_check_branch
      %117 = sbr.rel (%p114) target = $region28
    $region27: #{cifar_discriminator_forward.7} parent=5 // pred_region
      %s118 = ssub.s32 %s8, 1
      %s119 = smul.u32 32, %s13
      %p120 = scmp.lt.s32.totalorder %s119, 63
      %s121 = scalar_select %p120, %s119, 63
      %s122 = smul.addr %s121, 4
      %s123 = scalar_lea.vmem %s0, %s122
      %p124 = pneg %p34
      %p125 = pneg %p31
      %p126 = pneg %p55
      %p127 = pneg %p52
      %p128 = pneg %p81
      %p129 = pneg %p78
      %s130 = smul.u32 32, %s13
      %p131 = scmp.lt.s32.totalorder %s130, 63
      %s132 = scalar_select %p131, %s130, 63
      %s133 = smul.addr %s132, 4
      %s134 = scalar_lea.vmem %s2, %s133
      %s135 = smul.u32 32, %s13
      %p136 = scmp.lt.s32.totalorder %s135, 63
      %s137 = scalar_select %p136, %s135, 63
      %s138 = smul.addr %s137, 4
      %s139 = scalar_lea.vmem %s0, %s138
      %s140 = smul.u32 32, %s13
      %s141 = smul.u32 32, %s13
      %p142 = scmp.lt.s32.totalorder %s141, 63
      %s143 = scalar_select %p142, %s141, 63
      %s144 = smul.addr %s143, 4
      %s145 = scalar_lea.vmem %s2, %s144
      %s146 = smul.u32 32, %s13
      %v148 = vld [vmem:[%s139] sm:$0xf]
      %v149 = vld [vmem:[%s139 + $0x4] sm:$0xf]
      %v150 = vld [vmem:[%s139 + $0x8] sm:$0xf]
      %v151 = vld [vmem:[%s139 + $0xc] sm:$0xf]
      %v152 = vld [vmem:[%s139 + $0x10] sm:$0xf]
      %v153 = vld [vmem:[%s139 + $0x14] sm:$0xf]
      %v154 = vld [vmem:[%s139 + $0x18] sm:$0xf]
      %v155 = vld [vmem:[%s139 + $0x1c] sm:$0xf]
      %v156 = vld [vmem:[%s139 + $0x20] sm:$0xf]
      %v157 = vld [vmem:[%s139 + $0x24] sm:$0xf]
      %v158 = vld [vmem:[%s139 + $0x28] sm:$0xf]
      %v159 = vld [vmem:[%s139 + $0x2c] sm:$0xf]
      %v160 = vld [vmem:[%s139 + $0x30] sm:$0xf]
      %v161 = vld [vmem:[%s139 + $0x34] sm:$0xf]
      %v162 = vld [vmem:[%s139 + $0x38] sm:$0xf]
      %v163 = vld [vmem:[%s139 + $0x3c] sm:$0xf]
      %v164 = vld [vmem:[%s139 + $0x40] sm:$0xf]
      %v165 = vld [vmem:[%s139 + $0x44] sm:$0xf]
      %v166 = vld [vmem:[%s139 + $0x48] sm:$0xf]
      %v167 = vld [vmem:[%s139 + $0x4c] sm:$0xf]
      %v168 = vld [vmem:[%s139 + $0x50] sm:$0xf]
      %v169 = vld [vmem:[%s139 + $0x54] sm:$0xf]
      %v170 = vld [vmem:[%s139 + $0x58] sm:$0xf]
      %v171 = vld [vmem:[%s139 + $0x5c] sm:$0xf]
      %v172 = vld [vmem:[%s139 + $0x60] sm:$0xf]
      %v173 = vld [vmem:[%s139 + $0x64] sm:$0xf]
      %v174 = vld [vmem:[%s139 + $0x68] sm:$0xf]
      %v175 = vld [vmem:[%s139 + $0x6c] sm:$0xf]
      %v176 = vld [vmem:[%s139 + $0x70] sm:$0xf]
      %v177 = vld [vmem:[%s139 + $0x74] sm:$0xf]
      %v178 = vld [vmem:[%s139 + $0x78] sm:$0xf]
      %v179 = vld [vmem:[%s139 + $0x7c] sm:$0xf]
      %v180 = vld [vmem:[%s1] sm:$0xf]
      %v181 = vld [vmem:[%s1 + $0x4] sm:$0xf]
      %v182 = vld [vmem:[%s1 + $0x8] sm:$0xf]
      %v183 = vld [vmem:[%s1 + $0xc] sm:$0xf]
      %v184 = vld [vmem:[%s1 + $0x10] sm:$0xf]
      %v185 = vld [vmem:[%s1 + $0x14] sm:$0xf]
      %v186 = vld [vmem:[%s1 + $0x18] sm:$0xf]
      %v187 = vld [vmem:[%s1 + $0x1c] sm:$0xf]
      %v188 = vld [vmem:[%s1 + $0x20] sm:$0xf]
      %v189 = vld [vmem:[%s1 + $0x24] sm:$0xf]
      %v190 = vld [vmem:[%s1 + $0x28] sm:$0xf]
      %v191 = vld [vmem:[%s1 + $0x2c] sm:$0xf]
      %v192 = vld [vmem:[%s1 + $0x30] sm:$0xf]
      %v193 = vld [vmem:[%s1 + $0x34] sm:$0x3]
      %v226 = vunpack.c.l.b16 %v148
      %v227 = vunpack.c.l.b16 %v149
      %v228 = vunpack.c.l.b16 %v150
      %v229 = vunpack.c.l.b16 %v151
      %v230 = vunpack.c.l.b16 %v152
      %v231 = vunpack.c.l.b16 %v153
      %v232 = vunpack.c.l.b16 %v154
      %v233 = vunpack.c.l.b16 %v155
      %v234 = vunpack.c.l.b16 %v156
      %v235 = vunpack.c.l.b16 %v157
      %v236 = vunpack.c.l.b16 %v158
      %v237 = vunpack.c.l.b16 %v159
      %v238 = vunpack.c.l.b16 %v160
      %v239 = vunpack.c.l.b16 %v161
      %v240 = vunpack.c.l.b16 %v162
      %v241 = vunpack.c.l.b16 %v163
      %v242 = vunpack.c.l.b16 %v164
      %v243 = vunpack.c.l.b16 %v165
      %v244 = vunpack.c.l.b16 %v166
      %v245 = vunpack.c.l.b16 %v167
      %v246 = vunpack.c.l.b16 %v168
      %v247 = vunpack.c.l.b16 %v169
      %v248 = vunpack.c.l.b16 %v170
      %v249 = vunpack.c.l.b16 %v171
      %v250 = vunpack.c.l.b16 %v172
      %v251 = vunpack.c.l.b16 %v173
      %v252 = vunpack.c.l.b16 %v174
      %v253 = vunpack.c.l.b16 %v175
      %v254 = vunpack.c.l.b16 %v176
      %v255 = vunpack.c.l.b16 %v177
      %v256 = vunpack.c.l.b16 %v178
      %v257 = vunpack.c.l.b16 %v179
      %v258 = vpack.c.b16 %v227, %v226
      %v259 = vpack.c.b16 %v229, %v228
      %v260 = vpack.c.b16 %v231, %v230
      %v261 = vpack.c.b16 %v233, %v232
      %v262 = vpack.c.b16 %v235, %v234
      %v263 = vpack.c.b16 %v237, %v236
      %v264 = vpack.c.b16 %v239, %v238
      %v265 = vpack.c.b16 %v241, %v240
      %v266 = vpack.c.b16 %v243, %v242
      %v267 = vpack.c.b16 %v245, %v244
      %v268 = vpack.c.b16 %v247, %v246
      %v269 = vpack.c.b16 %v249, %v248
      %v270 = vpack.c.b16 %v251, %v250
      %v271 = vpack.c.b16 %v253, %v252
      %v272 = vpack.c.b16 %v255, %v254
      %v273 = vpack.c.b16 %v257, %v256
      %v288 = vunpack.c.l.b16 %v180
      %v289 = vunpack.c.l.b16 %v181
      %v290 = vunpack.c.l.b16 %v182
      %v291 = vunpack.c.l.b16 %v183
      %v292 = vunpack.c.l.b16 %v184
      %v293 = vunpack.c.l.b16 %v185
      %v294 = vunpack.c.l.b16 %v186
      %v295 = vunpack.c.l.b16 %v187
      %v296 = vunpack.c.l.b16 %v188
      %v297 = vunpack.c.l.b16 %v189
      %v298 = vunpack.c.l.b16 %v190
      %v299 = vunpack.c.l.b16 %v191
      %v300 = vunpack.c.l.b16 %v192
      %v301 = vunpack.c.l.b16 %v193
      %v302 = vpack.c.b16 %v289, %v288
      %v303 = vpack.c.b16 %v291, %v290
      %v304 = vpack.c.b16 %v293, %v292
      %v305 = vpack.c.b16 %v295, %v294
      %v306 = vpack.c.b16 %v297, %v296
      %v307 = vpack.c.b16 %v299, %v298
      %v308 = vpack.c.b16 %v301, %v300
      %vm315 = vcmask 883712
      %v317 = vsel %vm315, %v258, 0
      %v320 = vsel %vm315, %v259, 0
      %v323 = vsel %vm315, %v260, 0
      %v326 = vsel %vm315, %v261, 0
      %v329 = vsel %vm315, %v262, 0
      %v332 = vsel %vm315, %v263, 0
      %v335 = vsel %vm315, %v264, 0
      %v338 = vsel %vm315, %v265, 0
      %v341 = vsel %vm315, %v266, 0
      %v344 = vsel %vm315, %v267, 0
      %v347 = vsel %vm315, %v268, 0
      %v350 = vsel %vm315, %v269, 0
      %v353 = vsel %vm315, %v270, 0
      %v356 = vsel %vm315, %v271, 0
      %v359 = vsel %vm315, %v272, 0
      %v362 = vsel %vm315, %v273, 0
      %vm364 = vcmask 1045504
      %v366 = vsel %vm364, %v308, 0
      %368 = vmatprep.subr.bf16.mxu0 0
      %369 = vmatpush1.bf16.msra.mxu0 %v302
      %370 = vmatprep.subr.bf16.mxu0 0
      %371 = vmatpush1.bf16.msra.mxu0 %v303
      %372 = vmatprep.subr.bf16.mxu0 0
      %373 = vmatpush1.bf16.msra.mxu0 %v304
      %374 = vmatprep.subr.bf16.mxu0 0
      %375 = vmatpush1.bf16.msra.mxu0 %v305
      %376 = vmatprep.subr.bf16.mxu0 0
      %377 = vmatpush1.bf16.msra.mxu0 %v306
      %378 = vmatprep.subr.bf16.mxu0 0
      %379 = vmatpush1.bf16.msra.mxu0 %v307
      %380 = vmatprep.subr.bf16.mxu0 0
      %381 = vmatpush1.bf16.msra.mxu0 %v366
      %382 = vmatprep.subr.bf16.mxu0 0
      %383 = vmatpush1.bf16.msra.mxu0 0
      %384 = vmatprep.subr.bf16.mxu0 0
      %385 = vmatpush1.bf16.msra.mxu0 0
      %386 = vmatprep.subr.bf16.mxu0 0
      %387 = vmatpush1.bf16.msra.mxu0 0
      %388 = vmatprep.subr.bf16.mxu0 0
      %389 = vmatpush1.bf16.msra.mxu0 0
      %390 = vmatprep.subr.bf16.mxu0 0
      %391 = vmatpush1.bf16.msra.mxu0 0
      %392 = vmatprep.subr.bf16.mxu0 0
      %393 = vmatpush1.bf16.msra.mxu0 0
      %394 = vmatprep.subr.bf16.mxu0 0
      %395 = vmatpush1.bf16.msra.mxu0 0
      %396 = vmatprep.subr.bf16.mxu0 0
      %397 = vmatpush1.bf16.msra.mxu0 0
      %398 = vmatprep.subr.bf16.mxu0 0
      %399 = vmatpush1.bf16.msra.mxu0 0
      %400 = vmatprep.mubr.bf16.mxu0 0
      %401 = vmatmul.mubr.bf16.gmra.mrb[0].mxu0 %v317
      %v402 = vpop.f32.mrb[0].mxu0
      %v403 = vadd.f32 0.0, %v402
      %v404 = vpop.f32.mrb[0].mxu0
      %v405 = vpop.f32.mrb[0].mxu0
      %v406 = vadd.f32 0.0, %v405
      %v407 = vpop.f32.mrb[0].mxu0
      %408 = vmatprep.mubr.bf16.mxu0 0
      %409 = vmatmul.mubr.bf16.gmra.mrb[0].mxu0 %v320
      %v410 = vpop.f32.mrb[0].mxu0
      %v411 = vadd.f32 0.0, %v410
      %v412 = vpop.f32.mrb[0].mxu0
      %v413 = vpop.f32.mrb[0].mxu0
      %v414 = vadd.f32 0.0, %v413
      %v415 = vpop.f32.mrb[0].mxu0
      %416 = vmatprep.mubr.bf16.mxu0 0
      %417 = vmatmul.mubr.bf16.gmra.mrb[0].mxu0 %v323
      %v418 = vpop.f32.mrb[0].mxu0
      %v419 = vadd.f32 0.0, %v418
      %v420 = vpop.f32.mrb[0].mxu0
      %v421 = vpop.f32.mrb[0].mxu0
      %v422 = vadd.f32 0.0, %v421
      %v423 = vpop.f32.mrb[0].mxu0
      %424 = vmatprep.mubr.bf16.mxu0 0
      %425 = vmatmul.mubr.bf16.gmra.mrb[0].mxu0 %v326
      %v426 = vpop.f32.mrb[0].mxu0
      %v427 = vadd.f32 0.0, %v426
      %v428 = vpop.f32.mrb[0].mxu0
      %v429 = vpop.f32.mrb[0].mxu0
      %v430 = vadd.f32 0.0, %v429
      %v431 = vpop.f32.mrb[0].mxu0
      %432 = vmatprep.mubr.bf16.mxu0 0
      %433 = vmatmul.mubr.bf16.gmra.mrb[0].mxu0 %v329
      %v434 = vpop.f32.mrb[0].mxu0
      %v435 = vadd.f32 0.0, %v434
      %v436 = vpop.f32.mrb[0].mxu0
      %v437 = vpop.f32.mrb[0].mxu0
      %v438 = vadd.f32 0.0, %v437
      %v439 = vpop.f32.mrb[0].mxu0
      %440 = vmatprep.mubr.bf16.mxu0 0
      %441 = vmatmul.mubr.bf16.gmra.mrb[0].mxu0 %v332
      %v442 = vpop.f32.mrb[0].mxu0
      %v443 = vadd.f32 0.0, %v442
      %v444 = vpop.f32.mrb[0].mxu0
      %v445 = vpop.f32.mrb[0].mxu0
      %v446 = vadd.f32 0.0, %v445
      %v447 = vpop.f32.mrb[0].mxu0
      %448 = vmatprep.mubr.bf16.mxu0 0
      %449 = vmatmul.mubr.bf16.gmra.mrb[0].mxu0 %v335
      %v450 = vpop.f32.mrb[0].mxu0
      %v451 = vadd.f32 0.0, %v450
      %v452 = vpop.f32.mrb[0].mxu0
      %v453 = vpop.f32.mrb[0].mxu0
      %v454 = vadd.f32 0.0, %v453
      %v455 = vpop.f32.mrb[0].mxu0
      %456 = vmatprep.mubr.bf16.mxu0 0
      %457 = vmatmul.mubr.bf16.gmra.mrb[0].mxu0 %v338
      %v458 = vpop.f32.mrb[0].mxu0
      %v459 = vadd.f32 0.0, %v458
      %v460 = vpop.f32.mrb[0].mxu0
      %v461 = vpop.f32.mrb[0].mxu0
      %v462 = vadd.f32 0.0, %v461
      %v463 = vpop.f32.mrb[0].mxu0
      %464 = vmatprep.mubr.bf16.mxu0 0
      %465 = vmatmul.mubr.bf16.gmra.mrb[0].mxu0 %v341
      %v466 = vpop.f32.mrb[0].mxu0
      %v467 = vadd.f32 0.0, %v466
      %v468 = vpop.f32.mrb[0].mxu0
      %v469 = vpop.f32.mrb[0].mxu0
      %v470 = vadd.f32 0.0, %v469
      %v471 = vpop.f32.mrb[0].mxu0
      %472 = vmatprep.mubr.bf16.mxu0 0
      %473 = vmatmul.mubr.bf16.gmra.mrb[0].mxu0 %v344
      %v474 = vpop.f32.mrb[0].mxu0
      %v475 = vadd.f32 0.0, %v474
      %v476 = vpop.f32.mrb[0].mxu0
      %v477 = vpop.f32.mrb[0].mxu0
      %v478 = vadd.f32 0.0, %v477
      %v479 = vpop.f32.mrb[0].mxu0
      %480 = vmatprep.mubr.bf16.mxu0 0
      %481 = vmatmul.mubr.bf16.gmra.mrb[0].mxu0 %v347
      %v482 = vpop.f32.mrb[0].mxu0
      %v483 = vadd.f32 0.0, %v482
      %v484 = vpop.f32.mrb[0].mxu0
      %v485 = vpop.f32.mrb[0].mxu0
      %v486 = vadd.f32 0.0, %v485
      %v487 = vpop.f32.mrb[0].mxu0
      %488 = vmatprep.mubr.bf16.mxu0 0
      %489 = vmatmul.mubr.bf16.gmra.mrb[0].mxu0 %v350
      %v490 = vpop.f32.mrb[0].mxu0
      %v491 = vadd.f32 0.0, %v490
      %v492 = vpop.f32.mrb[0].mxu0
      %v493 = vpop.f32.mrb[0].mxu0
      %v494 = vadd.f32 0.0, %v493
      %v495 = vpop.f32.mrb[0].mxu0
      %496 = vmatprep.mubr.bf16.mxu0 0
      %497 = vmatmul.mubr.bf16.gmra.mrb[0].mxu0 %v353
      %v498 = vpop.f32.mrb[0].mxu0
      %v499 = vadd.f32 0.0, %v498
      %v500 = vpop.f32.mrb[0].mxu0
      %v501 = vpop.f32.mrb[0].mxu0
      %v502 = vadd.f32 0.0, %v501
      %v503 = vpop.f32.mrb[0].mxu0
      %504 = vmatprep.mubr.bf16.mxu0 0
      %505 = vmatmul.mubr.bf16.gmra.mrb[0].mxu0 %v356
      %v506 = vpop.f32.mrb[0].mxu0
      %v507 = vadd.f32 0.0, %v506
      %v508 = vpop.f32.mrb[0].mxu0
      %v509 = vpop.f32.mrb[0].mxu0
      %v510 = vadd.f32 0.0, %v509
      %v511 = vpop.f32.mrb[0].mxu0
      %512 = vmatprep.mubr.bf16.mxu0 0
      %513 = vmatmul.mubr.bf16.gmra.mrb[0].mxu0 %v359
      %v514 = vpop.f32.mrb[0].mxu0
      %v515 = vadd.f32 0.0, %v514
      %v516 = vpop.f32.mrb[0].mxu0
      %v517 = vpop.f32.mrb[0].mxu0
      %v518 = vadd.f32 0.0, %v517
      %v519 = vpop.f32.mrb[0].mxu0
      %520 = vmatprep.mubr.bf16.mxu0 0
      %521 = vmatmul.mubr.bf16.gmra.mrb[0].mxu0 %v362
      %v522 = vpop.f32.mrb[0].mxu0
      %v523 = vadd.f32 0.0, %v522
      %v524 = vpop.f32.mrb[0].mxu0
      %v525 = vpop.f32.mrb[0].mxu0
      %v526 = vadd.f32 0.0, %v525
      %v527 = vpop.f32.mrb[0].mxu0
      %528 = vdwg.mxu0
      %vm529 = vcmp.gt.f32.partialorder %v403, 0.0
      %vm530 = vcmp.gt.f32.partialorder %v406, 0.0
      %vm531 = vcmp.gt.f32.partialorder %v411, 0.0
      %vm532 = vcmp.gt.f32.partialorder %v414, 0.0
      %vm533 = vcmp.gt.f32.partialorder %v419, 0.0
      %vm534 = vcmp.gt.f32.partialorder %v422, 0.0
      %vm535 = vcmp.gt.f32.partialorder %v427, 0.0
      %vm536 = vcmp.gt.f32.partialorder %v430, 0.0
      %vm537 = vcmp.gt.f32.partialorder %v435, 0.0
      %vm538 = vcmp.gt.f32.partialorder %v438, 0.0
      %vm539 = vcmp.gt.f32.partialorder %v443, 0.0
      %vm540 = vcmp.gt.f32.partialorder %v446, 0.0
      %vm541 = vcmp.gt.f32.partialorder %v451, 0.0
      %vm542 = vcmp.gt.f32.partialorder %v454, 0.0
      %vm543 = vcmp.gt.f32.partialorder %v459, 0.0
      %vm544 = vcmp.gt.f32.partialorder %v462, 0.0
      %vm545 = vcmp.gt.f32.partialorder %v467, 0.0
      %vm546 = vcmp.gt.f32.partialorder %v470, 0.0
      %vm547 = vcmp.gt.f32.partialorder %v475, 0.0
      %vm548 = vcmp.gt.f32.partialorder %v478, 0.0
      %vm549 = vcmp.gt.f32.partialorder %v483, 0.0
      %vm550 = vcmp.gt.f32.partialorder %v486, 0.0
      %vm551 = vcmp.gt.f32.partialorder %v491, 0.0
      %vm552 = vcmp.gt.f32.partialorder %v494, 0.0
      %vm553 = vcmp.gt.f32.partialorder %v499, 0.0
      %vm554 = vcmp.gt.f32.partialorder %v502, 0.0
      %vm555 = vcmp.gt.f32.partialorder %v507, 0.0
      %vm556 = vcmp.gt.f32.partialorder %v510, 0.0
      %vm557 = vcmp.gt.f32.partialorder %v515, 0.0
      %vm558 = vcmp.gt.f32.partialorder %v518, 0.0
      %vm559 = vcmp.gt.f32.partialorder %v523, 0.0
      %vm560 = vcmp.gt.f32.partialorder %v526, 0.0
      %v561 = vmul.f32 %v403, 0.2
      %v562 = vmul.f32 %v406, 0.2
      %v563 = vmul.f32 %v411, 0.2
      %v564 = vmul.f32 %v414, 0.2
      %v565 = vmul.f32 %v419, 0.2
      %v566 = vmul.f32 %v422, 0.2
      %v567 = vmul.f32 %v427, 0.2
      %v568 = vmul.f32 %v430, 0.2
      %v569 = vmul.f32 %v435, 0.2
      %v570 = vmul.f32 %v438, 0.2
      %v571 = vmul.f32 %v443, 0.2
      %v572 = vmul.f32 %v446, 0.2
      %v573 = vmul.f32 %v451, 0.2
      %v574 = vmul.f32 %v454, 0.2
      %v575 = vmul.f32 %v459, 0.2
      %v576 = vmul.f32 %v462, 0.2
      %v577 = vmul.f32 %v467, 0.2
      %v578 = vmul.f32 %v470, 0.2
      %v579 = vmul.f32 %v475, 0.2
      %v580 = vmul.f32 %v478, 0.2
      %v581 = vmul.f32 %v483, 0.2
      %v582 = vmul.f32 %v486, 0.2
      %v583 = vmul.f32 %v491, 0.2
      %v584 = vmul.f32 %v494, 0.2
      %v585 = vmul.f32 %v499, 0.2
      %v586 = vmul.f32 %v502, 0.2
      %v587 = vmul.f32 %v507, 0.2
      %v588 = vmul.f32 %v510, 0.2
      %v589 = vmul.f32 %v515, 0.2
      %v590 = vmul.f32 %v518, 0.2
      %v591 = vmul.f32 %v523, 0.2
      %v592 = vmul.f32 %v526, 0.2
      %v593 = vsel %vm529, %v403, %v561
      %v594 = vsel %vm530, %v406, %v562
      %v595 = vsel %vm531, %v411, %v563
      %v596 = vsel %vm532, %v414, %v564
      %v597 = vsel %vm533, %v419, %v565
      %v598 = vsel %vm534, %v422, %v566
      %v599 = vsel %vm535, %v427, %v567
      %v600 = vsel %vm536, %v430, %v568
      %v601 = vsel %vm537, %v435, %v569
      %v602 = vsel %vm538, %v438, %v570
      %v603 = vsel %vm539, %v443, %v571
      %v604 = vsel %vm540, %v446, %v572
      %v605 = vsel %vm541, %v451, %v573
      %v606 = vsel %vm542, %v454, %v574
      %v607 = vsel %vm543, %v459, %v575
      %v608 = vsel %vm544, %v462, %v576
      %v609 = vsel %vm545, %v467, %v577
      %v610 = vsel %vm546, %v470, %v578
      %v611 = vsel %vm547, %v475, %v579
      %v612 = vsel %vm548, %v478, %v580
      %v613 = vsel %vm549, %v483, %v581
      %v614 = vsel %vm550, %v486, %v582
      %v615 = vsel %vm551, %v491, %v583
      %v616 = vsel %vm552, %v494, %v584
      %v617 = vsel %vm553, %v499, %v585
      %v618 = vsel %vm554, %v502, %v586
      %v619 = vsel %vm555, %v507, %v587
      %v620 = vsel %vm556, %v510, %v588
      %v621 = vsel %vm557, %v515, %v589
      %v622 = vsel %vm558, %v518, %v590
      %v623 = vsel %vm559, %v523, %v591
      %v624 = vsel %vm560, %v526, %v592
      %v625 = vpack.c.bf16 %v594, %v593
      %v626 = vpack.c.bf16 %v596, %v595
      %v627 = vpack.c.bf16 %v598, %v597
      %v628 = vpack.c.bf16 %v600, %v599
      %v629 = vpack.c.bf16 %v602, %v601
      %v630 = vpack.c.bf16 %v604, %v603
      %v631 = vpack.c.bf16 %v606, %v605
      %v632 = vpack.c.bf16 %v608, %v607
      %v633 = vpack.c.bf16 %v610, %v609
      %v634 = vpack.c.bf16 %v612, %v611
      %v635 = vpack.c.bf16 %v614, %v613
      %v636 = vpack.c.bf16 %v616, %v615
      %v637 = vpack.c.bf16 %v618, %v617
      %v638 = vpack.c.bf16 %v620, %v619
      %v639 = vpack.c.bf16 %v622, %v621
      %v640 = vpack.c.bf16 %v624, %v623
      %v657 = vunpack.c.l.b16 %v625
      %v658 = vunpack.c.h.b16 %v625
      %v659 = vunpack.c.l.b16 %v626
      %v660 = vunpack.c.h.b16 %v626
      %v661 = vunpack.c.l.b16 %v627
      %v662 = vunpack.c.h.b16 %v627
      %v663 = vunpack.c.l.b16 %v628
      %v664 = vunpack.c.h.b16 %v628
      %v665 = vunpack.c.l.b16 %v629
      %v666 = vunpack.c.h.b16 %v629
      %v667 = vunpack.c.l.b16 %v630
      %v668 = vunpack.c.h.b16 %v630
      %v669 = vunpack.c.l.b16 %v631
      %v670 = vunpack.c.h.b16 %v631
      %v671 = vunpack.c.l.b16 %v632
      %v672 = vunpack.c.h.b16 %v632
      %v673 = vunpack.c.l.b16 %v633
      %v674 = vunpack.c.h.b16 %v633
      %v675 = vunpack.c.l.b16 %v634
      %v676 = vunpack.c.h.b16 %v634
      %v677 = vunpack.c.l.b16 %v635
      %v678 = vunpack.c.h.b16 %v635
      %v679 = vunpack.c.l.b16 %v636
      %v680 = vunpack.c.h.b16 %v636
      %v681 = vunpack.c.l.b16 %v637
      %v682 = vunpack.c.h.b16 %v637
      %v683 = vunpack.c.l.b16 %v638
      %v684 = vunpack.c.h.b16 %v638
      %v685 = vunpack.c.l.b16 %v639
      %v686 = vunpack.c.h.b16 %v639
      %v687 = vunpack.c.l.b16 %v640
      %v688 = vunpack.c.h.b16 %v640
      %v689 = vpack.c.b16 %v657, %v657
      %v690 = vpack.c.b16 %v658, %v658
      %v691 = vpack.c.b16 %v659, %v659
      %v692 = vpack.c.b16 %v660, %v660
      %v693 = vpack.c.b16 %v661, %v661
      %v694 = vpack.c.b16 %v662, %v662
      %v695 = vpack.c.b16 %v663, %v663
      %v696 = vpack.c.b16 %v664, %v664
      %v697 = vpack.c.b16 %v665, %v665
      %v698 = vpack.c.b16 %v666, %v666
      %v699 = vpack.c.b16 %v667, %v667
      %v700 = vpack.c.b16 %v668, %v668
      %v701 = vpack.c.b16 %v669, %v669
      %v702 = vpack.c.b16 %v670, %v670
      %v703 = vpack.c.b16 %v671, %v671
      %v704 = vpack.c.b16 %v672, %v672
      %v705 = vpack.c.b16 %v673, %v673
      %v706 = vpack.c.b16 %v674, %v674
      %v707 = vpack.c.b16 %v675, %v675
      %v708 = vpack.c.b16 %v676, %v676
      %v709 = vpack.c.b16 %v677, %v677
      %v710 = vpack.c.b16 %v678, %v678
      %v711 = vpack.c.b16 %v679, %v679
      %v712 = vpack.c.b16 %v680, %v680
      %v713 = vpack.c.b16 %v681, %v681
      %v714 = vpack.c.b16 %v682, %v682
      %v715 = vpack.c.b16 %v683, %v683
      %v716 = vpack.c.b16 %v684, %v684
      %v717 = vpack.c.b16 %v685, %v685
      %v718 = vpack.c.b16 %v686, %v686
      %v719 = vpack.c.b16 %v687, %v687
      %v720 = vpack.c.b16 %v688, %v688
      %753 = vst [vmem:[%s145] sm:$0xf] %v689
      %754 = vst [vmem:[%s145 + $0x4] sm:$0xf] %v690
      %755 = vst [vmem:[%s145 + $0x8] sm:$0xf] %v691
      %756 = vst [vmem:[%s145 + $0xc] sm:$0xf] %v692
      %757 = vst [vmem:[%s145 + $0x10] sm:$0xf] %v693
      %758 = vst [vmem:[%s145 + $0x14] sm:$0xf] %v694
      %759 = vst [vmem:[%s145 + $0x18] sm:$0xf] %v695
      %760 = vst [vmem:[%s145 + $0x1c] sm:$0xf] %v696
      %761 = vst [vmem:[%s145 + $0x20] sm:$0xf] %v697
      %762 = vst [vmem:[%s145 + $0x24] sm:$0xf] %v698
      %763 = vst [vmem:[%s145 + $0x28] sm:$0xf] %v699
      %764 = vst [vmem:[%s145 + $0x2c] sm:$0xf] %v700
      %765 = vst [vmem:[%s145 + $0x30] sm:$0xf] %v701
      %766 = vst [vmem:[%s145 + $0x34] sm:$0xf] %v702
      %767 = vst [vmem:[%s145 + $0x38] sm:$0xf] %v703
      %768 = vst [vmem:[%s145 + $0x3c] sm:$0xf] %v704
      %769 = vst [vmem:[%s145 + $0x40] sm:$0xf] %v705
      %770 = vst [vmem:[%s145 + $0x44] sm:$0xf] %v706
      %771 = vst [vmem:[%s145 + $0x48] sm:$0xf] %v707
      %772 = vst [vmem:[%s145 + $0x4c] sm:$0xf] %v708
      %773 = vst [vmem:[%s145 + $0x50] sm:$0xf] %v709
      %774 = vst [vmem:[%s145 + $0x54] sm:$0xf] %v710
      %775 = vst [vmem:[%s145 + $0x58] sm:$0xf] %v711
      %776 = vst [vmem:[%s145 + $0x5c] sm:$0xf] %v712
      %777 = vst [vmem:[%s145 + $0x60] sm:$0xf] %v713
      %778 = vst [vmem:[%s145 + $0x64] sm:$0xf] %v714
      %779 = vst [vmem:[%s145 + $0x68] sm:$0xf] %v715
      %780 = vst [vmem:[%s145 + $0x6c] sm:$0xf] %v716
      %781 = vst [vmem:[%s145 + $0x70] sm:$0xf] %v717
      %782 = vst [vmem:[%s145 + $0x74] sm:$0xf] %v718
      %783 = vst [vmem:[%s145 + $0x78] sm:$0xf] %v719
      %784 = vst [vmem:[%s145 + $0x7c] sm:$0xf] %v720
      %s785 = smul.u32 32, %s13
      %p786 = scmp.lt.s32.totalorder %s785, 63
      %s787 = scalar_select %p786, %s785, 63
      %s788 = smul.addr %s787, 4
      %s789 = scalar_lea.vmem %s2, %s788
      // Predicated region
      $region29: #{cifar_discriminator_forward.7} parent=27 // pred_check
        %p790 = pneg %p78
      $region30: #{cifar_discriminator_forward.7} parent=27 // pred_check_branch
        %792 = sbr.rel (%p790) target = $region32
      $region31: #{cifar_discriminator_forward.7} parent=27 // pred_region
        %s793 = smul.u32 32, %s13
      $region32: #{cifar_discriminator_forward.7} parent=27 // pred_fallthru
        _
    $region28: #{cifar_discriminator_forward.7} parent=5 // pred_fallthru
      _
    %p794 = scmp.le.s32.totalorder 2, %s8
    // Predicated region
    $region33: #{cifar_discriminator_forward.7} parent=5 // pred_check
      %p795 = pneg %p794
    $region34: #{cifar_discriminator_forward.7} parent=5 // pred_check_branch
      %797 = sbr.rel (%p795) target = $region36
    $region35: #{cifar_discriminator_forward.7} parent=5 // pred_region
      %s798 = ssub.s32 %s8, 2
      // Predicated region
      $region37: #{cifar_discriminator_forward.7} parent=35 // pred_check
        %p799 = pneg %p84
      $region38: #{cifar_discriminator_forward.7} parent=35 // pred_check_branch
        %801 = sbr.rel (%p799) target = $region40
      $region39: #{cifar_discriminator_forward.7} parent=35 // pred_region
        %s802 = smul.u32 32, %s14
        %p803 = scmp.lt.s32.totalorder %s802, 63
        %s804 = scalar_select %p803, %s802, 63
        %s805 = smul.addr %s804, 4
        %s806 = scalar_lea.vmem %s2, %s805
      $region40: #{cifar_discriminator_forward.7} parent=35 // pred_fallthru
        _
    $region36: #{cifar_discriminator_forward.7} parent=5 // pred_fallthru
      _
  $region6: #{cifar_discriminator_forward.7} parent=0 // loop_footer
    %s12 = sadd.s32 1, %s8
  $region7: #{cifar_discriminator_forward.7} parent=0 // loop_footer_branch
    %7 = sbr.rel target = $region3
  $region8: #{cifar_discriminator_forward.7} parent=0 // loop_exit
    _

// kernel: tile.17
$region0: #{tile.17}
  #allocation0 [shape = 's32[1]{0}', space=sflag, size = 0x4, scoped, tag = 'scoped memory for tile.17']
  %s0 = inlined_call_operand.vmem [shape: f32[64], index: 0, kind: input, shape index: {}]
  %s1 = inlined_call_operand.vmem [shape: f32[2,64], index: 1, kind: output, shape index: {}]
  // Predicated region
  $region2: #{tile.17} parent=0 // pred_check
    _
  $region3: #{tile.17} parent=0 // pred_check_branch
    %3 = sbr.rel (0) target = $region5
  $region4: #{tile.17} parent=0 // pred_region
    _
  $region5: #{tile.17} parent=0 // pred_fallthru
    _
  %v4 = vld [vmem:[%s0] ss:$0 sm:$0xff]
  %5 = vst [vmem:[%s1] sm:$0x3] %v4

// kernel: tile.18
$region0: #{tile.18}
  %s0 = inlined_call_operand.vmem [shape: f32[2,64], index: 0, kind: input, shape index: {}]
  %s1 = inlined_call_operand.vmem [shape: f32[1,128], index: 1, kind: output, shape index: {}]
  $region1: #{tile.18} parent=0
    #allocation0 [shape = 'u8[4096]{0}', space=vmem, size = 0x1000, scoped, tag = 'scoped mem for output reshape']
    #allocation1 [shape = 'u8[4096]{0}', space=vmem, size = 0x1000, scoped, tag = 'scoped mem for input reshape']
    %s3 = sshllo.u32 0, 2
    %v4 = vld [vmem:[%s0] sm:%s3]
    %5 = vst [vmem:[#allocation1] sm:%s3] %v4
    %v6 = vld [vmem:[#allocation1] sm:$0x1]
    %vm7 = vcmask 523264
    %8 = vst.msk [vmem:[#allocation0] sm:$0x1] %vm7, %v6
    %s9 = scalar_lea.vmem [#allocation1], 1
    %v10 = vld [vmem:[%s9] sm:$0x1]
    %11 = vrot.lane.b32.xlu0 %v10, 64
    %v12 = vpop.permute.xlu0 %11
    %vm13 = vcmask 1048064
    %14 = vst.msk [vmem:[#allocation0] sm:$0x1] %vm13, %v12
    %s16 = sshllo.u32 0, 1
    %v18 = vld [vmem:[#allocation0] sm:%s16]
    %s19 = sshllo.u32 0, 1
    %20 = vst [vmem:[%s1] sm:%s19] %v18

// kernel: cifar_discriminator_forward.9
$region0: #{cifar_discriminator_forward.9}
  #allocation0 [shape = 'u32[]', space=smem, size = 0x4, offset = 0x4, fixed_abs, tag = 'smem constant byte address 0x4 - core index']
  #allocation1 [shape = 'u32[144,128]{1,0:T(1,128)}', space=vmem, size = 0x12000, scoped, tag = 'internal scratch']
  %s0 = inlined_call_operand.vmem [shape: f32[256,128], index: 0, kind: input, shape index: {}]
  %s1 = inlined_call_operand.vmem [shape: f32[1,128], index: 1, kind: input, shape index: {}]
  %s2 = inlined_call_operand.vmem [shape: f32[1,128], index: 2, kind: input, shape index: {}]
  %s3 = inlined_call_operand.vmem [shape: bf16[256,128], index: 3, kind: output, shape index: {}]
  %s4 = sld [smem:[#allocation0]]
  $region22: #{cifar_discriminator_forward.9} parent=0
    _
  %s6 = ssub.s32 1, %s4
  %s7 = scalar_select 0, %s6, %s4
  // Predicated region
  $region2: #{cifar_discriminator_forward.9} parent=0 // pred_check
    _
  $region3: #{cifar_discriminator_forward.9} parent=0 // pred_check_branch
    %9 = sbr.rel (0) target = $region5
  $region4: #{cifar_discriminator_forward.9} parent=0 // pred_region
    _
  $region5: #{cifar_discriminator_forward.9} parent=0 // pred_fallthru
    _
  // Predicated region
  $region6: #{cifar_discriminator_forward.9} parent=0 // pred_check
    _
  $region7: #{cifar_discriminator_forward.9} parent=0 // pred_check_branch
    %11 = sbr.rel (0) target = $region9
  $region8: #{cifar_discriminator_forward.9} parent=0 // pred_region
    _
  $region9: #{cifar_discriminator_forward.9} parent=0 // pred_fallthru
    _
  // Predicated region
  $region10: #{cifar_discriminator_forward.9} parent=0 // pred_check
    _
  $region11: #{cifar_discriminator_forward.9} parent=0 // pred_check_branch
    %13 = sbr.rel (0) target = $region13
  $region12: #{cifar_discriminator_forward.9} parent=0 // pred_region
    _
  $region13: #{cifar_discriminator_forward.9} parent=0 // pred_fallthru
    _
  %v14 = vld [vmem:[%s0] sm:$0xff]
  %v15 = vld [vmem:[%s0 + $0x8] sm:$0xff]
  %v16 = vld [vmem:[%s0 + $0x10] sm:$0xff]
  %v17 = vld [vmem:[%s0 + $0x18] sm:$0xff]
  %v18 = vld [vmem:[%s0 + $0x20] sm:$0xff]
  %v19 = vld [vmem:[%s0 + $0x28] sm:$0xff]
  %v20 = vld [vmem:[%s0 + $0x30] sm:$0xff]
  %v21 = vld [vmem:[%s0 + $0x38] sm:$0xff]
  %v22 = vld [vmem:[%s0 + $0x40] sm:$0xff]
  %v23 = vld [vmem:[%s0 + $0x48] sm:$0xff]
  %v24 = vld [vmem:[%s0 + $0x50] sm:$0xff]
  %v25 = vld [vmem:[%s0 + $0x58] sm:$0xff]
  %v26 = vld [vmem:[%s0 + $0x60] sm:$0xff]
  %v27 = vld [vmem:[%s0 + $0x68] sm:$0xff]
  %v28 = vld [vmem:[%s0 + $0x70] sm:$0xff]
  %v29 = vld [vmem:[%s0 + $0x78] sm:$0xff]
  %v30 = vld [vmem:[%s0 + $0x80] sm:$0xff]
  %v31 = vld [vmem:[%s0 + $0x88] sm:$0xff]
  %v32 = vld [vmem:[%s0 + $0x90] sm:$0xff]
  %v33 = vld [vmem:[%s0 + $0x98] sm:$0xff]
  %v34 = vld [vmem:[%s0 + $0xa0] sm:$0xff]
  %v35 = vld [vmem:[%s0 + $0xa8] sm:$0xff]
  %v36 = vld [vmem:[%s0 + $0xb0] sm:$0xff]
  %v37 = vld [vmem:[%s0 + $0xb8] sm:$0xff]
  %v38 = vld [vmem:[%s0 + $0xc0] sm:$0xff]
  %v39 = vld [vmem:[%s0 + $0xc8] sm:$0xff]
  %v40 = vld [vmem:[%s0 + $0xd0] sm:$0xff]
  %v41 = vld [vmem:[%s0 + $0xd8] sm:$0xff]
  %v42 = vld [vmem:[%s0 + $0xe0] sm:$0xff]
  %v43 = vld [vmem:[%s0 + $0xe8] sm:$0xff]
  %v44 = vld [vmem:[%s0 + $0xf0] sm:$0xff]
  %v45 = vld [vmem:[%s0 + $0xf8] sm:$0xff]
  %v46 = vld [vmem:[%s1] sm:$0x1]
  %v48 = vlaneseq
  %v49 = vshrl.u32 %v48, 7
  %v50 = vsub.s32 0, %v49
  %v51 = vrot.slane %v46, %v50
  %v53 = vmul.f32 %v14, %v51
  %v54 = vmul.f32 %v15, %v51
  %v55 = vmul.f32 %v16, %v51
  %v56 = vmul.f32 %v17, %v51
  %v57 = vmul.f32 %v18, %v51
  %v58 = vmul.f32 %v19, %v51
  %v59 = vmul.f32 %v20, %v51
  %v60 = vmul.f32 %v21, %v51
  %v61 = vmul.f32 %v22, %v51
  %v62 = vmul.f32 %v23, %v51
  %v63 = vmul.f32 %v24, %v51
  %v64 = vmul.f32 %v25, %v51
  %v65 = vmul.f32 %v26, %v51
  %v66 = vmul.f32 %v27, %v51
  %v67 = vmul.f32 %v28, %v51
  %v68 = vmul.f32 %v29, %v51
  %v69 = vmul.f32 %v30, %v51
  %v70 = vmul.f32 %v31, %v51
  %v71 = vmul.f32 %v32, %v51
  %v72 = vmul.f32 %v33, %v51
  %v73 = vmul.f32 %v34, %v51
  %v74 = vmul.f32 %v35, %v51
  %v75 = vmul.f32 %v36, %v51
  %v76 = vmul.f32 %v37, %v51
  %v77 = vmul.f32 %v38, %v51
  %v78 = vmul.f32 %v39, %v51
  %v79 = vmul.f32 %v40, %v51
  %v80 = vmul.f32 %v41, %v51
  %v81 = vmul.f32 %v42, %v51
  %v82 = vmul.f32 %v43, %v51
  %v83 = vmul.f32 %v44, %v51
  %v84 = vmul.f32 %v45, %v51
  %v85 = vld [vmem:[%s2] sm:$0x1]
  %v87 = vlaneseq
  %v88 = vshrl.u32 %v87, 7
  %v89 = vsub.s32 0, %v88
  %v90 = vrot.slane %v85, %v89
  %v92 = vadd.f32 %v53, %v90
  %v93 = vadd.f32 %v54, %v90
  %v94 = vadd.f32 %v55, %v90
  %v95 = vadd.f32 %v56, %v90
  %v96 = vadd.f32 %v57, %v90
  %v97 = vadd.f32 %v58, %v90
  %v98 = vadd.f32 %v59, %v90
  %v99 = vadd.f32 %v60, %v90
  %v100 = vadd.f32 %v61, %v90
  %v101 = vadd.f32 %v62, %v90
  %v102 = vadd.f32 %v63, %v90
  %v103 = vadd.f32 %v64, %v90
  %v104 = vadd.f32 %v65, %v90
  %v105 = vadd.f32 %v66, %v90
  %v106 = vadd.f32 %v67, %v90
  %v107 = vadd.f32 %v68, %v90
  %v108 = vadd.f32 %v69, %v90
  %v109 = vadd.f32 %v70, %v90
  %v110 = vadd.f32 %v71, %v90
  %v111 = vadd.f32 %v72, %v90
  %v112 = vadd.f32 %v73, %v90
  %v113 = vadd.f32 %v74, %v90
  %v114 = vadd.f32 %v75, %v90
  %v115 = vadd.f32 %v76, %v90
  %v116 = vadd.f32 %v77, %v90
  %v117 = vadd.f32 %v78, %v90
  %v118 = vadd.f32 %v79, %v90
  %v119 = vadd.f32 %v80, %v90
  %v120 = vadd.f32 %v81, %v90
  %v121 = vadd.f32 %v82, %v90
  %v122 = vadd.f32 %v83, %v90
  %v123 = vadd.f32 %v84, %v90
  %vm124 = vcmp.gt.f32.partialorder %v92, 0.0
  %vm125 = vcmp.gt.f32.partialorder %v93, 0.0
  %vm126 = vcmp.gt.f32.partialorder %v94, 0.0
  %vm127 = vcmp.gt.f32.partialorder %v95, 0.0
  %vm128 = vcmp.gt.f32.partialorder %v96, 0.0
  %vm129 = vcmp.gt.f32.partialorder %v97, 0.0
  %vm130 = vcmp.gt.f32.partialorder %v98, 0.0
  %vm131 = vcmp.gt.f32.partialorder %v99, 0.0
  %vm132 = vcmp.gt.f32.partialorder %v100, 0.0
  %vm133 = vcmp.gt.f32.partialorder %v101, 0.0
  %vm134 = vcmp.gt.f32.partialorder %v102, 0.0
  %vm135 = vcmp.gt.f32.partialorder %v103, 0.0
  %vm136 = vcmp.gt.f32.partialorder %v104, 0.0
  %vm137 = vcmp.gt.f32.partialorder %v105, 0.0
  %vm138 = vcmp.gt.f32.partialorder %v106, 0.0
  %vm139 = vcmp.gt.f32.partialorder %v107, 0.0
  %vm140 = vcmp.gt.f32.partialorder %v108, 0.0
  %vm141 = vcmp.gt.f32.partialorder %v109, 0.0
  %vm142 = vcmp.gt.f32.partialorder %v110, 0.0
  %vm143 = vcmp.gt.f32.partialorder %v111, 0.0
  %vm144 = vcmp.gt.f32.partialorder %v112, 0.0
  %vm145 = vcmp.gt.f32.partialorder %v113, 0.0
  %vm146 = vcmp.gt.f32.partialorder %v114, 0.0
  %vm147 = vcmp.gt.f32.partialorder %v115, 0.0
  %vm148 = vcmp.gt.f32.partialorder %v116, 0.0
  %vm149 = vcmp.gt.f32.partialorder %v117, 0.0
  %vm150 = vcmp.gt.f32.partialorder %v118, 0.0
  %vm151 = vcmp.gt.f32.partialorder %v119, 0.0
  %vm152 = vcmp.gt.f32.partialorder %v120, 0.0
  %vm153 = vcmp.gt.f32.partialorder %v121, 0.0
  %vm154 = vcmp.gt.f32.partialorder %v122, 0.0
  %vm155 = vcmp.gt.f32.partialorder %v123, 0.0
  %v156 = vmul.f32 %v92, 0.2
  %v157 = vmul.f32 %v93, 0.2
  %v158 = vmul.f32 %v94, 0.2
  %v159 = vmul.f32 %v95, 0.2
  %v160 = vmul.f32 %v96, 0.2
  %v161 = vmul.f32 %v97, 0.2
  %v162 = vmul.f32 %v98, 0.2
  %v163 = vmul.f32 %v99, 0.2
  %v164 = vmul.f32 %v100, 0.2
  %v165 = vmul.f32 %v101, 0.2
  %v166 = vmul.f32 %v102, 0.2
  %v167 = vmul.f32 %v103, 0.2
  %v168 = vmul.f32 %v104, 0.2
  %v169 = vmul.f32 %v105, 0.2
  %v170 = vmul.f32 %v106, 0.2
  %v171 = vmul.f32 %v107, 0.2
  %v172 = vmul.f32 %v108, 0.2
  %v173 = vmul.f32 %v109, 0.2
  %v174 = vmul.f32 %v110, 0.2
  %v175 = vmul.f32 %v111, 0.2
  %v176 = vmul.f32 %v112, 0.2
  %v177 = vmul.f32 %v113, 0.2
  %v178 = vmul.f32 %v114, 0.2
  %v179 = vmul.f32 %v115, 0.2
  %v180 = vmul.f32 %v116, 0.2
  %v181 = vmul.f32 %v117, 0.2
  %v182 = vmul.f32 %v118, 0.2
  %v183 = vmul.f32 %v119, 0.2
  %v184 = vmul.f32 %v120, 0.2
  %v185 = vmul.f32 %v121, 0.2
  %v186 = vmul.f32 %v122, 0.2
  %v187 = vmul.f32 %v123, 0.2
  %v188 = vsel %vm124, %v92, %v156
  %v189 = vsel %vm125, %v93, %v157
  %v190 = vsel %vm126, %v94, %v158
  %v191 = vsel %vm127, %v95, %v159
  %v192 = vsel %vm128, %v96, %v160
  %v193 = vsel %vm129, %v97, %v161
  %v194 = vsel %vm130, %v98, %v162
  %v195 = vsel %vm131, %v99, %v163
  %v196 = vsel %vm132, %v100, %v164
  %v197 = vsel %vm133, %v101, %v165
  %v198 = vsel %vm134, %v102, %v166
  %v199 = vsel %vm135, %v103, %v167
  %v200 = vsel %vm136, %v104, %v168
  %v201 = vsel %vm137, %v105, %v169
  %v202 = vsel %vm138, %v106, %v170
  %v203 = vsel %vm139, %v107, %v171
  %v204 = vsel %vm140, %v108, %v172
  %v205 = vsel %vm141, %v109, %v173
  %v206 = vsel %vm142, %v110, %v174
  %v207 = vsel %vm143, %v111, %v175
  %v208 = vsel %vm144, %v112, %v176
  %v209 = vsel %vm145, %v113, %v177
  %v210 = vsel %vm146, %v114, %v178
  %v211 = vsel %vm147, %v115, %v179
  %v212 = vsel %vm148, %v116, %v180
  %v213 = vsel %vm149, %v117, %v181
  %v214 = vsel %vm150, %v118, %v182
  %v215 = vsel %vm151, %v119, %v183
  %v216 = vsel %vm152, %v120, %v184
  %v217 = vsel %vm153, %v121, %v185
  %v218 = vsel %vm154, %v122, %v186
  %v219 = vsel %vm155, %v123, %v187
  %v220 = vpack.c.bf16 %v189, %v188
  %v221 = vpack.c.bf16 %v191, %v190
  %v222 = vpack.c.bf16 %v193, %v192
  %v223 = vpack.c.bf16 %v195, %v194
  %v224 = vpack.c.bf16 %v197, %v196
  %v225 = vpack.c.bf16 %v199, %v198
  %v226 = vpack.c.bf16 %v201, %v200
  %v227 = vpack.c.bf16 %v203, %v202
  %v228 = vpack.c.bf16 %v205, %v204
  %v229 = vpack.c.bf16 %v207, %v206
  %v230 = vpack.c.bf16 %v209, %v208
  %v231 = vpack.c.bf16 %v211, %v210
  %v232 = vpack.c.bf16 %v213, %v212
  %v233 = vpack.c.bf16 %v215, %v214
  %v234 = vpack.c.bf16 %v217, %v216
  %v235 = vpack.c.bf16 %v219, %v218
  %v252 = vunpack.c.l.b16 %v220
  %v253 = vunpack.c.h.b16 %v220
  %v254 = vunpack.c.l.b16 %v221
  %v255 = vunpack.c.h.b16 %v221
  %v256 = vunpack.c.l.b16 %v222
  %v257 = vunpack.c.h.b16 %v222
  %v258 = vunpack.c.l.b16 %v223
  %v259 = vunpack.c.h.b16 %v223
  %v260 = vunpack.c.l.b16 %v224
  %v261 = vunpack.c.h.b16 %v224
  %v262 = vunpack.c.l.b16 %v225
  %v263 = vunpack.c.h.b16 %v225
  %v264 = vunpack.c.l.b16 %v226
  %v265 = vunpack.c.h.b16 %v226
  %v266 = vunpack.c.l.b16 %v227
  %v267 = vunpack.c.h.b16 %v227
  %v268 = vunpack.c.l.b16 %v228
  %v269 = vunpack.c.h.b16 %v228
  %v270 = vunpack.c.l.b16 %v229
  %v271 = vunpack.c.h.b16 %v229
  %v272 = vunpack.c.l.b16 %v230
  %v273 = vunpack.c.h.b16 %v230
  %v274 = vunpack.c.l.b16 %v231
  %v275 = vunpack.c.h.b16 %v231
  %v276 = vunpack.c.l.b16 %v232
  %v277 = vunpack.c.h.b16 %v232
  %v278 = vunpack.c.l.b16 %v233
  %v279 = vunpack.c.h.b16 %v233
  %v280 = vunpack.c.l.b16 %v234
  %v281 = vunpack.c.h.b16 %v234
  %v282 = vunpack.c.l.b16 %v235
  %v283 = vunpack.c.h.b16 %v235
  %v284 = vpack.c.b16 %v252, %v252
  %v285 = vpack.c.b16 %v253, %v253
  %v286 = vpack.c.b16 %v254, %v254
  %v287 = vpack.c.b16 %v255, %v255
  %v288 = vpack.c.b16 %v256, %v256
  %v289 = vpack.c.b16 %v257, %v257
  %v290 = vpack.c.b16 %v258, %v258
  %v291 = vpack.c.b16 %v259, %v259
  %v292 = vpack.c.b16 %v260, %v260
  %v293 = vpack.c.b16 %v261, %v261
  %v294 = vpack.c.b16 %v262, %v262
  %v295 = vpack.c.b16 %v263, %v263
  %v296 = vpack.c.b16 %v264, %v264
  %v297 = vpack.c.b16 %v265, %v265
  %v298 = vpack.c.b16 %v266, %v266
  %v299 = vpack.c.b16 %v267, %v267
  %v300 = vpack.c.b16 %v268, %v268
  %v301 = vpack.c.b16 %v269, %v269
  %v302 = vpack.c.b16 %v270, %v270
  %v303 = vpack.c.b16 %v271, %v271
  %v304 = vpack.c.b16 %v272, %v272
  %v305 = vpack.c.b16 %v273, %v273
  %v306 = vpack.c.b16 %v274, %v274
  %v307 = vpack.c.b16 %v275, %v275
  %v308 = vpack.c.b16 %v276, %v276
  %v309 = vpack.c.b16 %v277, %v277
  %v310 = vpack.c.b16 %v278, %v278
  %v311 = vpack.c.b16 %v279, %v279
  %v312 = vpack.c.b16 %v280, %v280
  %v313 = vpack.c.b16 %v281, %v281
  %v314 = vpack.c.b16 %v282, %v282
  %v315 = vpack.c.b16 %v283, %v283
  %348 = vst [vmem:[%s3] sm:$0xf] %v284
  %349 = vst [vmem:[%s3 + $0x4] sm:$0xf] %v285
  %350 = vst [vmem:[%s3 + $0x8] sm:$0xf] %v286
  %351 = vst [vmem:[%s3 + $0xc] sm:$0xf] %v287
  %352 = vst [vmem:[%s3 + $0x10] sm:$0xf] %v288
  %353 = vst [vmem:[%s3 + $0x14] sm:$0xf] %v289
  %354 = vst [vmem:[%s3 + $0x18] sm:$0xf] %v290
  %355 = vst [vmem:[%s3 + $0x1c] sm:$0xf] %v291
  %356 = vst [vmem:[%s3 + $0x20] sm:$0xf] %v292
  %357 = vst [vmem:[%s3 + $0x24] sm:$0xf] %v293
  %358 = vst [vmem:[%s3 + $0x28] sm:$0xf] %v294
  %359 = vst [vmem:[%s3 + $0x2c] sm:$0xf] %v295
  %360 = vst [vmem:[%s3 + $0x30] sm:$0xf] %v296
  %361 = vst [vmem:[%s3 + $0x34] sm:$0xf] %v297
  %362 = vst [vmem:[%s3 + $0x38] sm:$0xf] %v298
  %363 = vst [vmem:[%s3 + $0x3c] sm:$0xf] %v299
  %364 = vst [vmem:[%s3 + $0x40] sm:$0xf] %v300
  %365 = vst [vmem:[%s3 + $0x44] sm:$0xf] %v301
  %366 = vst [vmem:[%s3 + $0x48] sm:$0xf] %v302
  %367 = vst [vmem:[%s3 + $0x4c] sm:$0xf] %v303
  %368 = vst [vmem:[%s3 + $0x50] sm:$0xf] %v304
  %369 = vst [vmem:[%s3 + $0x54] sm:$0xf] %v305
  %370 = vst [vmem:[%s3 + $0x58] sm:$0xf] %v306
  %371 = vst [vmem:[%s3 + $0x5c] sm:$0xf] %v307
  %372 = vst [vmem:[%s3 + $0x60] sm:$0xf] %v308
  %373 = vst [vmem:[%s3 + $0x64] sm:$0xf] %v309
  %374 = vst [vmem:[%s3 + $0x68] sm:$0xf] %v310
  %375 = vst [vmem:[%s3 + $0x6c] sm:$0xf] %v311
  %376 = vst [vmem:[%s3 + $0x70] sm:$0xf] %v312
  %377 = vst [vmem:[%s3 + $0x74] sm:$0xf] %v313
  %378 = vst [vmem:[%s3 + $0x78] sm:$0xf] %v314
  %379 = vst [vmem:[%s3 + $0x7c] sm:$0xf] %v315
  // Predicated region
  $region14: #{cifar_discriminator_forward.9} parent=0 // pred_check
    _
  $region15: #{cifar_discriminator_forward.9} parent=0 // pred_check_branch
    %381 = sbr.rel (0) target = $region17
  $region16: #{cifar_discriminator_forward.9} parent=0 // pred_region
    _
  $region17: #{cifar_discriminator_forward.9} parent=0 // pred_fallthru
    _
  // Predicated region
  $region18: #{cifar_discriminator_forward.9} parent=0 // pred_check
    _
  $region19: #{cifar_discriminator_forward.9} parent=0 // pred_check_branch
    %383 = sbr.rel (0) target = $region21
  $region20: #{cifar_discriminator_forward.9} parent=0 // pred_region
    _
  $region21: #{cifar_discriminator_forward.9} parent=0 // pred_fallthru
    _

// kernel: cifar_discriminator_forward.8
$region0: #{cifar_discriminator_forward.8}
  #allocation0 [shape = 'u32[]', space=smem, size = 0x4, offset = 0x4, fixed_abs, tag = 'smem constant byte address 0x4 - core index']
  #allocation1 [shape = 'u32[144,128]{1,0:T(1,128)}', space=vmem, size = 0x12000, scoped, tag = 'internal scratch']
  %s0 = inlined_call_operand.vmem [shape: bf16[256,1024], index: 0, kind: input, shape index: {}]
  %s1 = inlined_call_operand.vmem [shape: bf16[1024,128], index: 1, kind: input, shape index: {}]
  %s2 = inlined_call_operand.vmem [shape: f32[256,128], index: 2, kind: output, shape index: {}]
  %s3 = sld [smem:[#allocation0]]
  $region18: #{cifar_discriminator_forward.8} parent=0
    _
  %s5 = ssub.s32 1, %s3
  %s6 = scalar_select 0, %s5, %s3
  // Predicated region
  $region2: #{cifar_discriminator_forward.8} parent=0 // pred_check
    _
  $region3: #{cifar_discriminator_forward.8} parent=0 // pred_check_branch
    %8 = sbr.rel (0) target = $region5
  $region4: #{cifar_discriminator_forward.8} parent=0 // pred_region
    _
  $region5: #{cifar_discriminator_forward.8} parent=0 // pred_fallthru
    _
  // Predicated region
  $region6: #{cifar_discriminator_forward.8} parent=0 // pred_check
    _
  $region7: #{cifar_discriminator_forward.8} parent=0 // pred_check_branch
    %10 = sbr.rel (0) target = $region9
  $region8: #{cifar_discriminator_forward.8} parent=0 // pred_region
    _
  $region9: #{cifar_discriminator_forward.8} parent=0 // pred_fallthru
    _
  %v12 = vld [vmem:[%s0] sm:$0xff]
  %v13 = vld [vmem:[%s0 + $0x8] sm:$0xff]
  %v14 = vld [vmem:[%s0 + $0x10] sm:$0xff]
  %v15 = vld [vmem:[%s0 + $0x18] sm:$0xff]
  %v16 = vld [vmem:[%s0 + $0x20] sm:$0xff]
  %v17 = vld [vmem:[%s0 + $0x28] sm:$0xff]
  %v18 = vld [vmem:[%s0 + $0x30] sm:$0xff]
  %v19 = vld [vmem:[%s0 + $0x38] sm:$0xff]
  %v20 = vld [vmem:[%s0 + $0x40] sm:$0xff]
  %v21 = vld [vmem:[%s0 + $0x48] sm:$0xff]
  %v22 = vld [vmem:[%s0 + $0x50] sm:$0xff]
  %v23 = vld [vmem:[%s0 + $0x58] sm:$0xff]
  %v24 = vld [vmem:[%s0 + $0x60] sm:$0xff]
  %v25 = vld [vmem:[%s0 + $0x68] sm:$0xff]
  %v26 = vld [vmem:[%s0 + $0x70] sm:$0xff]
  %v27 = vld [vmem:[%s0 + $0x78] sm:$0xff]
  %v28 = vld [vmem:[%s0 + $0x80] sm:$0xff]
  %v29 = vld [vmem:[%s0 + $0x88] sm:$0xff]
  %v30 = vld [vmem:[%s0 + $0x90] sm:$0xff]
  %v31 = vld [vmem:[%s0 + $0x98] sm:$0xff]
  %v32 = vld [vmem:[%s0 + $0xa0] sm:$0xff]
  %v33 = vld [vmem:[%s0 + $0xa8] sm:$0xff]
  %v34 = vld [vmem:[%s0 + $0xb0] sm:$0xff]
  %v35 = vld [vmem:[%s0 + $0xb8] sm:$0xff]
  %v36 = vld [vmem:[%s0 + $0xc0] sm:$0xff]
  %v37 = vld [vmem:[%s0 + $0xc8] sm:$0xff]
  %v38 = vld [vmem:[%s0 + $0xd0] sm:$0xff]
  %v39 = vld [vmem:[%s0 + $0xd8] sm:$0xff]
  %v40 = vld [vmem:[%s0 + $0xe0] sm:$0xff]
  %v41 = vld [vmem:[%s0 + $0xe8] sm:$0xff]
  %v42 = vld [vmem:[%s0 + $0xf0] sm:$0xff]
  %v43 = vld [vmem:[%s0 + $0xf8] sm:$0xff]
  %v44 = vld [vmem:[%s0 + $0x100] sm:$0xff]
  %v45 = vld [vmem:[%s0 + $0x108] sm:$0xff]
  %v46 = vld [vmem:[%s0 + $0x110] sm:$0xff]
  %v47 = vld [vmem:[%s0 + $0x118] sm:$0xff]
  %v48 = vld [vmem:[%s0 + $0x120] sm:$0xff]
  %v49 = vld [vmem:[%s0 + $0x128] sm:$0xff]
  %v50 = vld [vmem:[%s0 + $0x130] sm:$0xff]
  %v51 = vld [vmem:[%s0 + $0x138] sm:$0xff]
  %v52 = vld [vmem:[%s0 + $0x140] sm:$0xff]
  %v53 = vld [vmem:[%s0 + $0x148] sm:$0xff]
  %v54 = vld [vmem:[%s0 + $0x150] sm:$0xff]
  %v55 = vld [vmem:[%s0 + $0x158] sm:$0xff]
  %v56 = vld [vmem:[%s0 + $0x160] sm:$0xff]
  %v57 = vld [vmem:[%s0 + $0x168] sm:$0xff]
  %v58 = vld [vmem:[%s0 + $0x170] sm:$0xff]
  %v59 = vld [vmem:[%s0 + $0x178] sm:$0xff]
  %v60 = vld [vmem:[%s0 + $0x180] sm:$0xff]
  %v61 = vld [vmem:[%s0 + $0x188] sm:$0xff]
  %v62 = vld [vmem:[%s0 + $0x190] sm:$0xff]
  %v63 = vld [vmem:[%s0 + $0x198] sm:$0xff]
  %v64 = vld [vmem:[%s0 + $0x1a0] sm:$0xff]
  %v65 = vld [vmem:[%s0 + $0x1a8] sm:$0xff]
  %v66 = vld [vmem:[%s0 + $0x1b0] sm:$0xff]
  %v67 = vld [vmem:[%s0 + $0x1b8] sm:$0xff]
  %v68 = vld [vmem:[%s0 + $0x1c0] sm:$0xff]
  %v69 = vld [vmem:[%s0 + $0x1c8] sm:$0xff]
  %v70 = vld [vmem:[%s0 + $0x1d0] sm:$0xff]
  %v71 = vld [vmem:[%s0 + $0x1d8] sm:$0xff]
  %v72 = vld [vmem:[%s0 + $0x1e0] sm:$0xff]
  %v73 = vld [vmem:[%s0 + $0x1e8] sm:$0xff]
  %v74 = vld [vmem:[%s0 + $0x1f0] sm:$0xff]
  %v75 = vld [vmem:[%s0 + $0x1f8] sm:$0xff]
  %v76 = vld [vmem:[%s0 + $0x200] sm:$0xff]
  %v77 = vld [vmem:[%s0 + $0x208] sm:$0xff]
  %v78 = vld [vmem:[%s0 + $0x210] sm:$0xff]
  %v79 = vld [vmem:[%s0 + $0x218] sm:$0xff]
  %v80 = vld [vmem:[%s0 + $0x220] sm:$0xff]
  %v81 = vld [vmem:[%s0 + $0x228] sm:$0xff]
  %v82 = vld [vmem:[%s0 + $0x230] sm:$0xff]
  %v83 = vld [vmem:[%s0 + $0x238] sm:$0xff]
  %v84 = vld [vmem:[%s0 + $0x240] sm:$0xff]
  %v85 = vld [vmem:[%s0 + $0x248] sm:$0xff]
  %v86 = vld [vmem:[%s0 + $0x250] sm:$0xff]
  %v87 = vld [vmem:[%s0 + $0x258] sm:$0xff]
  %v88 = vld [vmem:[%s0 + $0x260] sm:$0xff]
  %v89 = vld [vmem:[%s0 + $0x268] sm:$0xff]
  %v90 = vld [vmem:[%s0 + $0x270] sm:$0xff]
  %v91 = vld [vmem:[%s0 + $0x278] sm:$0xff]
  %v92 = vld [vmem:[%s0 + $0x280] sm:$0xff]
  %v93 = vld [vmem:[%s0 + $0x288] sm:$0xff]
  %v94 = vld [vmem:[%s0 + $0x290] sm:$0xff]
  %v95 = vld [vmem:[%s0 + $0x298] sm:$0xff]
  %v96 = vld [vmem:[%s0 + $0x2a0] sm:$0xff]
  %v97 = vld [vmem:[%s0 + $0x2a8] sm:$0xff]
  %v98 = vld [vmem:[%s0 + $0x2b0] sm:$0xff]
  %v99 = vld [vmem:[%s0 + $0x2b8] sm:$0xff]
  %v100 = vld [vmem:[%s0 + $0x2c0] sm:$0xff]
  %v101 = vld [vmem:[%s0 + $0x2c8] sm:$0xff]
  %v102 = vld [vmem:[%s0 + $0x2d0] sm:$0xff]
  %v103 = vld [vmem:[%s0 + $0x2d8] sm:$0xff]
  %v104 = vld [vmem:[%s0 + $0x2e0] sm:$0xff]
  %v105 = vld [vmem:[%s0 + $0x2e8] sm:$0xff]
  %v106 = vld [vmem:[%s0 + $0x2f0] sm:$0xff]
  %v107 = vld [vmem:[%s0 + $0x2f8] sm:$0xff]
  %v108 = vld [vmem:[%s0 + $0x300] sm:$0xff]
  %v109 = vld [vmem:[%s0 + $0x308] sm:$0xff]
  %v110 = vld [vmem:[%s0 + $0x310] sm:$0xff]
  %v111 = vld [vmem:[%s0 + $0x318] sm:$0xff]
  %v112 = vld [vmem:[%s0 + $0x320] sm:$0xff]
  %v113 = vld [vmem:[%s0 + $0x328] sm:$0xff]
  %v114 = vld [vmem:[%s0 + $0x330] sm:$0xff]
  %v115 = vld [vmem:[%s0 + $0x338] sm:$0xff]
  %v116 = vld [vmem:[%s0 + $0x340] sm:$0xff]
  %v117 = vld [vmem:[%s0 + $0x348] sm:$0xff]
  %v118 = vld [vmem:[%s0 + $0x350] sm:$0xff]
  %v119 = vld [vmem:[%s0 + $0x358] sm:$0xff]
  %v120 = vld [vmem:[%s0 + $0x360] sm:$0xff]
  %v121 = vld [vmem:[%s0 + $0x368] sm:$0xff]
  %v122 = vld [vmem:[%s0 + $0x370] sm:$0xff]
  %v123 = vld [vmem:[%s0 + $0x378] sm:$0xff]
  %v124 = vld [vmem:[%s0 + $0x380] sm:$0xff]
  %v125 = vld [vmem:[%s0 + $0x388] sm:$0xff]
  %v126 = vld [vmem:[%s0 + $0x390] sm:$0xff]
  %v127 = vld [vmem:[%s0 + $0x398] sm:$0xff]
  %v128 = vld [vmem:[%s0 + $0x3a0] sm:$0xff]
  %v129 = vld [vmem:[%s0 + $0x3a8] sm:$0xff]
  %v130 = vld [vmem:[%s0 + $0x3b0] sm:$0xff]
  %v131 = vld [vmem:[%s0 + $0x3b8] sm:$0xff]
  %v132 = vld [vmem:[%s0 + $0x3c0] sm:$0xff]
  %v133 = vld [vmem:[%s0 + $0x3c8] sm:$0xff]
  %v134 = vld [vmem:[%s0 + $0x3d0] sm:$0xff]
  %v135 = vld [vmem:[%s0 + $0x3d8] sm:$0xff]
  %v136 = vld [vmem:[%s0 + $0x3e0] sm:$0xff]
  %v137 = vld [vmem:[%s0 + $0x3e8] sm:$0xff]
  %v138 = vld [vmem:[%s0 + $0x3f0] sm:$0xff]
  %v139 = vld [vmem:[%s0 + $0x3f8] sm:$0xff]
  %v140 = vld [vmem:[%s1] sm:$0xf]
  %v141 = vld [vmem:[%s1 + $0x4] sm:$0xf]
  %v142 = vld [vmem:[%s1 + $0x8] sm:$0xf]
  %v143 = vld [vmem:[%s1 + $0xc] sm:$0xf]
  %v144 = vld [vmem:[%s1 + $0x10] sm:$0xf]
  %v145 = vld [vmem:[%s1 + $0x14] sm:$0xf]
  %v146 = vld [vmem:[%s1 + $0x18] sm:$0xf]
  %v147 = vld [vmem:[%s1 + $0x1c] sm:$0xf]
  %v148 = vld [vmem:[%s1 + $0x20] sm:$0xf]
  %v149 = vld [vmem:[%s1 + $0x24] sm:$0xf]
  %v150 = vld [vmem:[%s1 + $0x28] sm:$0xf]
  %v151 = vld [vmem:[%s1 + $0x2c] sm:$0xf]
  %v152 = vld [vmem:[%s1 + $0x30] sm:$0xf]
  %v153 = vld [vmem:[%s1 + $0x34] sm:$0xf]
  %v154 = vld [vmem:[%s1 + $0x38] sm:$0xf]
  %v155 = vld [vmem:[%s1 + $0x3c] sm:$0xf]
  %v156 = vld [vmem:[%s1 + $0x40] sm:$0xf]
  %v157 = vld [vmem:[%s1 + $0x44] sm:$0xf]
  %v158 = vld [vmem:[%s1 + $0x48] sm:$0xf]
  %v159 = vld [vmem:[%s1 + $0x4c] sm:$0xf]
  %v160 = vld [vmem:[%s1 + $0x50] sm:$0xf]
  %v161 = vld [vmem:[%s1 + $0x54] sm:$0xf]
  %v162 = vld [vmem:[%s1 + $0x58] sm:$0xf]
  %v163 = vld [vmem:[%s1 + $0x5c] sm:$0xf]
  %v164 = vld [vmem:[%s1 + $0x60] sm:$0xf]
  %v165 = vld [vmem:[%s1 + $0x64] sm:$0xf]
  %v166 = vld [vmem:[%s1 + $0x68] sm:$0xf]
  %v167 = vld [vmem:[%s1 + $0x6c] sm:$0xf]
  %v168 = vld [vmem:[%s1 + $0x70] sm:$0xf]
  %v169 = vld [vmem:[%s1 + $0x74] sm:$0xf]
  %v170 = vld [vmem:[%s1 + $0x78] sm:$0xf]
  %v171 = vld [vmem:[%s1 + $0x7c] sm:$0xf]
  %v172 = vld [vmem:[%s1 + $0x80] sm:$0xf]
  %v173 = vld [vmem:[%s1 + $0x84] sm:$0xf]
  %v174 = vld [vmem:[%s1 + $0x88] sm:$0xf]
  %v175 = vld [vmem:[%s1 + $0x8c] sm:$0xf]
  %v176 = vld [vmem:[%s1 + $0x90] sm:$0xf]
  %v177 = vld [vmem:[%s1 + $0x94] sm:$0xf]
  %v178 = vld [vmem:[%s1 + $0x98] sm:$0xf]
  %v179 = vld [vmem:[%s1 + $0x9c] sm:$0xf]
  %v180 = vld [vmem:[%s1 + $0xa0] sm:$0xf]
  %v181 = vld [vmem:[%s1 + $0xa4] sm:$0xf]
  %v182 = vld [vmem:[%s1 + $0xa8] sm:$0xf]
  %v183 = vld [vmem:[%s1 + $0xac] sm:$0xf]
  %v184 = vld [vmem:[%s1 + $0xb0] sm:$0xf]
  %v185 = vld [vmem:[%s1 + $0xb4] sm:$0xf]
  %v186 = vld [vmem:[%s1 + $0xb8] sm:$0xf]
  %v187 = vld [vmem:[%s1 + $0xbc] sm:$0xf]
  %v188 = vld [vmem:[%s1 + $0xc0] sm:$0xf]
  %v189 = vld [vmem:[%s1 + $0xc4] sm:$0xf]
  %v190 = vld [vmem:[%s1 + $0xc8] sm:$0xf]
  %v191 = vld [vmem:[%s1 + $0xcc] sm:$0xf]
  %v192 = vld [vmem:[%s1 + $0xd0] sm:$0xf]
  %v193 = vld [vmem:[%s1 + $0xd4] sm:$0xf]
  %v194 = vld [vmem:[%s1 + $0xd8] sm:$0xf]
  %v195 = vld [vmem:[%s1 + $0xdc] sm:$0xf]
  %v196 = vld [vmem:[%s1 + $0xe0] sm:$0xf]
  %v197 = vld [vmem:[%s1 + $0xe4] sm:$0xf]
  %v198 = vld [vmem:[%s1 + $0xe8] sm:$0xf]
  %v199 = vld [vmem:[%s1 + $0xec] sm:$0xf]
  %v200 = vld [vmem:[%s1 + $0xf0] sm:$0xf]
  %v201 = vld [vmem:[%s1 + $0xf4] sm:$0xf]
  %v202 = vld [vmem:[%s1 + $0xf8] sm:$0xf]
  %v203 = vld [vmem:[%s1 + $0xfc] sm:$0xf]
  %v204 = vld [vmem:[%s1 + $0x100] sm:$0xf]
  %v205 = vld [vmem:[%s1 + $0x104] sm:$0xf]
  %v206 = vld [vmem:[%s1 + $0x108] sm:$0xf]
  %v207 = vld [vmem:[%s1 + $0x10c] sm:$0xf]
  %v208 = vld [vmem:[%s1 + $0x110] sm:$0xf]
  %v209 = vld [vmem:[%s1 + $0x114] sm:$0xf]
  %v210 = vld [vmem:[%s1 + $0x118] sm:$0xf]
  %v211 = vld [vmem:[%s1 + $0x11c] sm:$0xf]
  %v212 = vld [vmem:[%s1 + $0x120] sm:$0xf]
  %v213 = vld [vmem:[%s1 + $0x124] sm:$0xf]
  %v214 = vld [vmem:[%s1 + $0x128] sm:$0xf]
  %v215 = vld [vmem:[%s1 + $0x12c] sm:$0xf]
  %v216 = vld [vmem:[%s1 + $0x130] sm:$0xf]
  %v217 = vld [vmem:[%s1 + $0x134] sm:$0xf]
  %v218 = vld [vmem:[%s1 + $0x138] sm:$0xf]
  %v219 = vld [vmem:[%s1 + $0x13c] sm:$0xf]
  %v220 = vld [vmem:[%s1 + $0x140] sm:$0xf]
  %v221 = vld [vmem:[%s1 + $0x144] sm:$0xf]
  %v222 = vld [vmem:[%s1 + $0x148] sm:$0xf]
  %v223 = vld [vmem:[%s1 + $0x14c] sm:$0xf]
  %v224 = vld [vmem:[%s1 + $0x150] sm:$0xf]
  %v225 = vld [vmem:[%s1 + $0x154] sm:$0xf]
  %v226 = vld [vmem:[%s1 + $0x158] sm:$0xf]
  %v227 = vld [vmem:[%s1 + $0x15c] sm:$0xf]
  %v228 = vld [vmem:[%s1 + $0x160] sm:$0xf]
  %v229 = vld [vmem:[%s1 + $0x164] sm:$0xf]
  %v230 = vld [vmem:[%s1 + $0x168] sm:$0xf]
  %v231 = vld [vmem:[%s1 + $0x16c] sm:$0xf]
  %v232 = vld [vmem:[%s1 + $0x170] sm:$0xf]
  %v233 = vld [vmem:[%s1 + $0x174] sm:$0xf]
  %v234 = vld [vmem:[%s1 + $0x178] sm:$0xf]
  %v235 = vld [vmem:[%s1 + $0x17c] sm:$0xf]
  %v236 = vld [vmem:[%s1 + $0x180] sm:$0xf]
  %v237 = vld [vmem:[%s1 + $0x184] sm:$0xf]
  %v238 = vld [vmem:[%s1 + $0x188] sm:$0xf]
  %v239 = vld [vmem:[%s1 + $0x18c] sm:$0xf]
  %v240 = vld [vmem:[%s1 + $0x190] sm:$0xf]
  %v241 = vld [vmem:[%s1 + $0x194] sm:$0xf]
  %v242 = vld [vmem:[%s1 + $0x198] sm:$0xf]
  %v243 = vld [vmem:[%s1 + $0x19c] sm:$0xf]
  %v244 = vld [vmem:[%s1 + $0x1a0] sm:$0xf]
  %v245 = vld [vmem:[%s1 + $0x1a4] sm:$0xf]
  %v246 = vld [vmem:[%s1 + $0x1a8] sm:$0xf]
  %v247 = vld [vmem:[%s1 + $0x1ac] sm:$0xf]
  %v248 = vld [vmem:[%s1 + $0x1b0] sm:$0xf]
  %v249 = vld [vmem:[%s1 + $0x1b4] sm:$0xf]
  %v250 = vld [vmem:[%s1 + $0x1b8] sm:$0xf]
  %v251 = vld [vmem:[%s1 + $0x1bc] sm:$0xf]
  %v252 = vld [vmem:[%s1 + $0x1c0] sm:$0xf]
  %v253 = vld [vmem:[%s1 + $0x1c4] sm:$0xf]
  %v254 = vld [vmem:[%s1 + $0x1c8] sm:$0xf]
  %v255 = vld [vmem:[%s1 + $0x1cc] sm:$0xf]
  %v256 = vld [vmem:[%s1 + $0x1d0] sm:$0xf]
  %v257 = vld [vmem:[%s1 + $0x1d4] sm:$0xf]
  %v258 = vld [vmem:[%s1 + $0x1d8] sm:$0xf]
  %v259 = vld [vmem:[%s1 + $0x1dc] sm:$0xf]
  %v260 = vld [vmem:[%s1 + $0x1e0] sm:$0xf]
  %v261 = vld [vmem:[%s1 + $0x1e4] sm:$0xf]
  %v262 = vld [vmem:[%s1 + $0x1e8] sm:$0xf]
  %v263 = vld [vmem:[%s1 + $0x1ec] sm:$0xf]
  %v264 = vld [vmem:[%s1 + $0x1f0] sm:$0xf]
  %v265 = vld [vmem:[%s1 + $0x1f4] sm:$0xf]
  %v266 = vld [vmem:[%s1 + $0x1f8] sm:$0xf]
  %v267 = vld [vmem:[%s1 + $0x1fc] sm:$0xf]
  %v396 = vunpack.c.l.b16 %v12
  %v397 = vunpack.c.h.b16 %v12
  %v398 = vunpack.c.l.b16 %v13
  %v399 = vunpack.c.h.b16 %v13
  %v400 = vunpack.c.l.b16 %v14
  %v401 = vunpack.c.h.b16 %v14
  %v402 = vunpack.c.l.b16 %v15
  %v403 = vunpack.c.h.b16 %v15
  %v404 = vunpack.c.l.b16 %v16
  %v405 = vunpack.c.h.b16 %v16
  %v406 = vunpack.c.l.b16 %v17
  %v407 = vunpack.c.h.b16 %v17
  %v408 = vunpack.c.l.b16 %v18
  %v409 = vunpack.c.h.b16 %v18
  %v410 = vunpack.c.l.b16 %v19
  %v411 = vunpack.c.h.b16 %v19
  %v412 = vunpack.c.l.b16 %v20
  %v413 = vunpack.c.h.b16 %v20
  %v414 = vunpack.c.l.b16 %v21
  %v415 = vunpack.c.h.b16 %v21
  %v416 = vunpack.c.l.b16 %v22
  %v417 = vunpack.c.h.b16 %v22
  %v418 = vunpack.c.l.b16 %v23
  %v419 = vunpack.c.h.b16 %v23
  %v420 = vunpack.c.l.b16 %v24
  %v421 = vunpack.c.h.b16 %v24
  %v422 = vunpack.c.l.b16 %v25
  %v423 = vunpack.c.h.b16 %v25
  %v424 = vunpack.c.l.b16 %v26
  %v425 = vunpack.c.h.b16 %v26
  %v426 = vunpack.c.l.b16 %v27
  %v427 = vunpack.c.h.b16 %v27
  %v428 = vunpack.c.l.b16 %v28
  %v429 = vunpack.c.h.b16 %v28
  %v430 = vunpack.c.l.b16 %v29
  %v431 = vunpack.c.h.b16 %v29
  %v432 = vunpack.c.l.b16 %v30
  %v433 = vunpack.c.h.b16 %v30
  %v434 = vunpack.c.l.b16 %v31
  %v435 = vunpack.c.h.b16 %v31
  %v436 = vunpack.c.l.b16 %v32
  %v437 = vunpack.c.h.b16 %v32
  %v438 = vunpack.c.l.b16 %v33
  %v439 = vunpack.c.h.b16 %v33
  %v440 = vunpack.c.l.b16 %v34
  %v441 = vunpack.c.h.b16 %v34
  %v442 = vunpack.c.l.b16 %v35
  %v443 = vunpack.c.h.b16 %v35
  %v444 = vunpack.c.l.b16 %v36
  %v445 = vunpack.c.h.b16 %v36
  %v446 = vunpack.c.l.b16 %v37
  %v447 = vunpack.c.h.b16 %v37
  %v448 = vunpack.c.l.b16 %v38
  %v449 = vunpack.c.h.b16 %v38
  %v450 = vunpack.c.l.b16 %v39
  %v451 = vunpack.c.h.b16 %v39
  %v452 = vunpack.c.l.b16 %v40
  %v453 = vunpack.c.h.b16 %v40
  %v454 = vunpack.c.l.b16 %v41
  %v455 = vunpack.c.h.b16 %v41
  %v456 = vunpack.c.l.b16 %v42
  %v457 = vunpack.c.h.b16 %v42
  %v458 = vunpack.c.l.b16 %v43
  %v459 = vunpack.c.h.b16 %v43
  %v460 = vunpack.c.l.b16 %v44
  %v461 = vunpack.c.h.b16 %v44
  %v462 = vunpack.c.l.b16 %v45
  %v463 = vunpack.c.h.b16 %v45
  %v464 = vunpack.c.l.b16 %v46
  %v465 = vunpack.c.h.b16 %v46
  %v466 = vunpack.c.l.b16 %v47
  %v467 = vunpack.c.h.b16 %v47
  %v468 = vunpack.c.l.b16 %v48
  %v469 = vunpack.c.h.b16 %v48
  %v470 = vunpack.c.l.b16 %v49
  %v471 = vunpack.c.h.b16 %v49
  %v472 = vunpack.c.l.b16 %v50
  %v473 = vunpack.c.h.b16 %v50
  %v474 = vunpack.c.l.b16 %v51
  %v475 = vunpack.c.h.b16 %v51
  %v476 = vunpack.c.l.b16 %v52
  %v477 = vunpack.c.h.b16 %v52
  %v478 = vunpack.c.l.b16 %v53
  %v479 = vunpack.c.h.b16 %v53
  %v480 = vunpack.c.l.b16 %v54
  %v481 = vunpack.c.h.b16 %v54
  %v482 = vunpack.c.l.b16 %v55
  %v483 = vunpack.c.h.b16 %v55
  %v484 = vunpack.c.l.b16 %v56
  %v485 = vunpack.c.h.b16 %v56
  %v486 = vunpack.c.l.b16 %v57
  %v487 = vunpack.c.h.b16 %v57
  %v488 = vunpack.c.l.b16 %v58
  %v489 = vunpack.c.h.b16 %v58
  %v490 = vunpack.c.l.b16 %v59
  %v491 = vunpack.c.h.b16 %v59
  %v492 = vunpack.c.l.b16 %v60
  %v493 = vunpack.c.h.b16 %v60
  %v494 = vunpack.c.l.b16 %v61
  %v495 = vunpack.c.h.b16 %v61
  %v496 = vunpack.c.l.b16 %v62
  %v497 = vunpack.c.h.b16 %v62
  %v498 = vunpack.c.l.b16 %v63
  %v499 = vunpack.c.h.b16 %v63
  %v500 = vunpack.c.l.b16 %v64
  %v501 = vunpack.c.h.b16 %v64
  %v502 = vunpack.c.l.b16 %v65
  %v503 = vunpack.c.h.b16 %v65
  %v504 = vunpack.c.l.b16 %v66
  %v505 = vunpack.c.h.b16 %v66
  %v506 = vunpack.c.l.b16 %v67
  %v507 = vunpack.c.h.b16 %v67
  %v508 = vunpack.c.l.b16 %v68
  %v509 = vunpack.c.h.b16 %v68
  %v510 = vunpack.c.l.b16 %v69
  %v511 = vunpack.c.h.b16 %v69
  %v512 = vunpack.c.l.b16 %v70
  %v513 = vunpack.c.h.b16 %v70
  %v514 = vunpack.c.l.b16 %v71
  %v515 = vunpack.c.h.b16 %v71
  %v516 = vunpack.c.l.b16 %v72
  %v517 = vunpack.c.h.b16 %v72
  %v518 = vunpack.c.l.b16 %v73
  %v519 = vunpack.c.h.b16 %v73
  %v520 = vunpack.c.l.b16 %v74
  %v521 = vunpack.c.h.b16 %v74
  %v522 = vunpack.c.l.b16 %v75
  %v523 = vunpack.c.h.b16 %v75
  %v524 = vunpack.c.l.b16 %v76
  %v525 = vunpack.c.h.b16 %v76
  %v526 = vunpack.c.l.b16 %v77
  %v527 = vunpack.c.h.b16 %v77
  %v528 = vunpack.c.l.b16 %v78
  %v529 = vunpack.c.h.b16 %v78
  %v530 = vunpack.c.l.b16 %v79
  %v531 = vunpack.c.h.b16 %v79
  %v532 = vunpack.c.l.b16 %v80
  %v533 = vunpack.c.h.b16 %v80
  %v534 = vunpack.c.l.b16 %v81
  %v535 = vunpack.c.h.b16 %v81
  %v536 = vunpack.c.l.b16 %v82
  %v537 = vunpack.c.h.b16 %v82
  %v538 = vunpack.c.l.b16 %v83
  %v539 = vunpack.c.h.b16 %v83
  %v540 = vunpack.c.l.b16 %v84
  %v541 = vunpack.c.h.b16 %v84
  %v542 = vunpack.c.l.b16 %v85
  %v543 = vunpack.c.h.b16 %v85
  %v544 = vunpack.c.l.b16 %v86
  %v545 = vunpack.c.h.b16 %v86
  %v546 = vunpack.c.l.b16 %v87
  %v547 = vunpack.c.h.b16 %v87
  %v548 = vunpack.c.l.b16 %v88
  %v549 = vunpack.c.h.b16 %v88
  %v550 = vunpack.c.l.b16 %v89
  %v551 = vunpack.c.h.b16 %v89
  %v552 = vunpack.c.l.b16 %v90
  %v553 = vunpack.c.h.b16 %v90
  %v554 = vunpack.c.l.b16 %v91
  %v555 = vunpack.c.h.b16 %v91
  %v556 = vunpack.c.l.b16 %v92
  %v557 = vunpack.c.h.b16 %v92
  %v558 = vunpack.c.l.b16 %v93
  %v559 = vunpack.c.h.b16 %v93
  %v560 = vunpack.c.l.b16 %v94
  %v561 = vunpack.c.h.b16 %v94
  %v562 = vunpack.c.l.b16 %v95
  %v563 = vunpack.c.h.b16 %v95
  %v564 = vunpack.c.l.b16 %v96
  %v565 = vunpack.c.h.b16 %v96
  %v566 = vunpack.c.l.b16 %v97
  %v567 = vunpack.c.h.b16 %v97
  %v568 = vunpack.c.l.b16 %v98
  %v569 = vunpack.c.h.b16 %v98
  %v570 = vunpack.c.l.b16 %v99
  %v571 = vunpack.c.h.b16 %v99
  %v572 = vunpack.c.l.b16 %v100
  %v573 = vunpack.c.h.b16 %v100
  %v574 = vunpack.c.l.b16 %v101
  %v575 = vunpack.c.h.b16 %v101
  %v576 = vunpack.c.l.b16 %v102
  %v577 = vunpack.c.h.b16 %v102
  %v578 = vunpack.c.l.b16 %v103
  %v579 = vunpack.c.h.b16 %v103
  %v580 = vunpack.c.l.b16 %v104
  %v581 = vunpack.c.h.b16 %v104
  %v582 = vunpack.c.l.b16 %v105
  %v583 = vunpack.c.h.b16 %v105
  %v584 = vunpack.c.l.b16 %v106
  %v585 = vunpack.c.h.b16 %v106
  %v586 = vunpack.c.l.b16 %v107
  %v587 = vunpack.c.h.b16 %v107
  %v588 = vunpack.c.l.b16 %v108
  %v589 = vunpack.c.h.b16 %v108
  %v590 = vunpack.c.l.b16 %v109
  %v591 = vunpack.c.h.b16 %v109
  %v592 = vunpack.c.l.b16 %v110
  %v593 = vunpack.c.h.b16 %v110
  %v594 = vunpack.c.l.b16 %v111
  %v595 = vunpack.c.h.b16 %v111
  %v596 = vunpack.c.l.b16 %v112
  %v597 = vunpack.c.h.b16 %v112
  %v598 = vunpack.c.l.b16 %v113
  %v599 = vunpack.c.h.b16 %v113
  %v600 = vunpack.c.l.b16 %v114
  %v601 = vunpack.c.h.b16 %v114
  %v602 = vunpack.c.l.b16 %v115
  %v603 = vunpack.c.h.b16 %v115
  %v604 = vunpack.c.l.b16 %v116
  %v605 = vunpack.c.h.b16 %v116
  %v606 = vunpack.c.l.b16 %v117
  %v607 = vunpack.c.h.b16 %v117
  %v608 = vunpack.c.l.b16 %v118
  %v609 = vunpack.c.h.b16 %v118
  %v610 = vunpack.c.l.b16 %v119
  %v611 = vunpack.c.h.b16 %v119
  %v612 = vunpack.c.l.b16 %v120
  %v613 = vunpack.c.h.b16 %v120
  %v614 = vunpack.c.l.b16 %v121
  %v615 = vunpack.c.h.b16 %v121
  %v616 = vunpack.c.l.b16 %v122
  %v617 = vunpack.c.h.b16 %v122
  %v618 = vunpack.c.l.b16 %v123
  %v619 = vunpack.c.h.b16 %v123
  %v620 = vunpack.c.l.b16 %v124
  %v621 = vunpack.c.h.b16 %v124
  %v622 = vunpack.c.l.b16 %v125
  %v623 = vunpack.c.h.b16 %v125
  %v624 = vunpack.c.l.b16 %v126
  %v625 = vunpack.c.h.b16 %v126
  %v626 = vunpack.c.l.b16 %v127
  %v627 = vunpack.c.h.b16 %v127
  %v628 = vunpack.c.l.b16 %v128
  %v629 = vunpack.c.h.b16 %v128
  %v630 = vunpack.c.l.b16 %v129
  %v631 = vunpack.c.h.b16 %v129
  %v632 = vunpack.c.l.b16 %v130
  %v633 = vunpack.c.h.b16 %v130
  %v634 = vunpack.c.l.b16 %v131
  %v635 = vunpack.c.h.b16 %v131
  %v636 = vunpack.c.l.b16 %v132
  %v637 = vunpack.c.h.b16 %v132
  %v638 = vunpack.c.l.b16 %v133
  %v639 = vunpack.c.h.b16 %v133
  %v640 = vunpack.c.l.b16 %v134
  %v641 = vunpack.c.h.b16 %v134
  %v642 = vunpack.c.l.b16 %v135
  %v643 = vunpack.c.h.b16 %v135
  %v644 = vunpack.c.l.b16 %v136
  %v645 = vunpack.c.h.b16 %v136
  %v646 = vunpack.c.l.b16 %v137
  %v647 = vunpack.c.h.b16 %v137
  %v648 = vunpack.c.l.b16 %v138
  %v649 = vunpack.c.h.b16 %v138
  %v650 = vunpack.c.l.b16 %v139
  %v651 = vunpack.c.h.b16 %v139
  %v652 = vpack.c.b16 %v404, %v396
  %v653 = vpack.c.b16 %v405, %v397
  %v654 = vpack.c.b16 %v406, %v398
  %v655 = vpack.c.b16 %v407, %v399
  %v656 = vpack.c.b16 %v408, %v400
  %v657 = vpack.c.b16 %v409, %v401
  %v658 = vpack.c.b16 %v410, %v402
  %v659 = vpack.c.b16 %v411, %v403
  %v660 = vpack.c.b16 %v420, %v412
  %v661 = vpack.c.b16 %v421, %v413
  %v662 = vpack.c.b16 %v422, %v414
  %v663 = vpack.c.b16 %v423, %v415
  %v664 = vpack.c.b16 %v424, %v416
  %v665 = vpack.c.b16 %v425, %v417
  %v666 = vpack.c.b16 %v426, %v418
  %v667 = vpack.c.b16 %v427, %v419
  %v668 = vpack.c.b16 %v436, %v428
  %v669 = vpack.c.b16 %v437, %v429
  %v670 = vpack.c.b16 %v438, %v430
  %v671 = vpack.c.b16 %v439, %v431
  %v672 = vpack.c.b16 %v440, %v432
  %v673 = vpack.c.b16 %v441, %v433
  %v674 = vpack.c.b16 %v442, %v434
  %v675 = vpack.c.b16 %v443, %v435
  %v676 = vpack.c.b16 %v452, %v444
  %v677 = vpack.c.b16 %v453, %v445
  %v678 = vpack.c.b16 %v454, %v446
  %v679 = vpack.c.b16 %v455, %v447
  %v680 = vpack.c.b16 %v456, %v448
  %v681 = vpack.c.b16 %v457, %v449
  %v682 = vpack.c.b16 %v458, %v450
  %v683 = vpack.c.b16 %v459, %v451
  %v684 = vpack.c.b16 %v468, %v460
  %v685 = vpack.c.b16 %v469, %v461
  %v686 = vpack.c.b16 %v470, %v462
  %v687 = vpack.c.b16 %v471, %v463
  %v688 = vpack.c.b16 %v472, %v464
  %v689 = vpack.c.b16 %v473, %v465
  %v690 = vpack.c.b16 %v474, %v466
  %v691 = vpack.c.b16 %v475, %v467
  %v692 = vpack.c.b16 %v484, %v476
  %v693 = vpack.c.b16 %v485, %v477
  %v694 = vpack.c.b16 %v486, %v478
  %v695 = vpack.c.b16 %v487, %v479
  %v696 = vpack.c.b16 %v488, %v480
  %v697 = vpack.c.b16 %v489, %v481
  %v698 = vpack.c.b16 %v490, %v482
  %v699 = vpack.c.b16 %v491, %v483
  %v700 = vpack.c.b16 %v500, %v492
  %v701 = vpack.c.b16 %v501, %v493
  %v702 = vpack.c.b16 %v502, %v494
  %v703 = vpack.c.b16 %v503, %v495
  %v704 = vpack.c.b16 %v504, %v496
  %v705 = vpack.c.b16 %v505, %v497
  %v706 = vpack.c.b16 %v506, %v498
  %v707 = vpack.c.b16 %v507, %v499
  %v708 = vpack.c.b16 %v516, %v508
  %v709 = vpack.c.b16 %v517, %v509
  %v710 = vpack.c.b16 %v518, %v510
  %v711 = vpack.c.b16 %v519, %v511
  %v712 = vpack.c.b16 %v520, %v512
  %v713 = vpack.c.b16 %v521, %v513
  %v714 = vpack.c.b16 %v522, %v514
  %v715 = vpack.c.b16 %v523, %v515
  %v716 = vpack.c.b16 %v532, %v524
  %v717 = vpack.c.b16 %v533, %v525
  %v718 = vpack.c.b16 %v534, %v526
  %v719 = vpack.c.b16 %v535, %v527
  %v720 = vpack.c.b16 %v536, %v528
  %v721 = vpack.c.b16 %v537, %v529
  %v722 = vpack.c.b16 %v538, %v530
  %v723 = vpack.c.b16 %v539, %v531
  %v724 = vpack.c.b16 %v548, %v540
  %v725 = vpack.c.b16 %v549, %v541
  %v726 = vpack.c.b16 %v550, %v542
  %v727 = vpack.c.b16 %v551, %v543
  %v728 = vpack.c.b16 %v552, %v544
  %v729 = vpack.c.b16 %v553, %v545
  %v730 = vpack.c.b16 %v554, %v546
  %v731 = vpack.c.b16 %v555, %v547
  %v732 = vpack.c.b16 %v564, %v556
  %v733 = vpack.c.b16 %v565, %v557
  %v734 = vpack.c.b16 %v566, %v558
  %v735 = vpack.c.b16 %v567, %v559
  %v736 = vpack.c.b16 %v568, %v560
  %v737 = vpack.c.b16 %v569, %v561
  %v738 = vpack.c.b16 %v570, %v562
  %v739 = vpack.c.b16 %v571, %v563
  %v740 = vpack.c.b16 %v580, %v572
  %v741 = vpack.c.b16 %v581, %v573
  %v742 = vpack.c.b16 %v582, %v574
  %v743 = vpack.c.b16 %v583, %v575
  %v744 = vpack.c.b16 %v584, %v576
  %v745 = vpack.c.b16 %v585, %v577
  %v746 = vpack.c.b16 %v586, %v578
  %v747 = vpack.c.b16 %v587, %v579
  %v748 = vpack.c.b16 %v596, %v588
  %v749 = vpack.c.b16 %v597, %v589
  %v750 = vpack.c.b16 %v598, %v590
  %v751 = vpack.c.b16 %v599, %v591
  %v752 = vpack.c.b16 %v600, %v592
  %v753 = vpack.c.b16 %v601, %v593
  %v754 = vpack.c.b16 %v602, %v594
  %v755 = vpack.c.b16 %v603, %v595
  %v756 = vpack.c.b16 %v612, %v604
  %v757 = vpack.c.b16 %v613, %v605
  %v758 = vpack.c.b16 %v614, %v606
  %v759 = vpack.c.b16 %v615, %v607
  %v760 = vpack.c.b16 %v616, %v608
  %v761 = vpack.c.b16 %v617, %v609
  %v762 = vpack.c.b16 %v618, %v610
  %v763 = vpack.c.b16 %v619, %v611
  %v764 = vpack.c.b16 %v628, %v620
  %v765 = vpack.c.b16 %v629, %v621
  %v766 = vpack.c.b16 %v630, %v622
  %v767 = vpack.c.b16 %v631, %v623
  %v768 = vpack.c.b16 %v632, %v624
  %v769 = vpack.c.b16 %v633, %v625
  %v770 = vpack.c.b16 %v634, %v626
  %v771 = vpack.c.b16 %v635, %v627
  %v772 = vpack.c.b16 %v644, %v636
  %v773 = vpack.c.b16 %v645, %v637
  %v774 = vpack.c.b16 %v646, %v638
  %v775 = vpack.c.b16 %v647, %v639
  %v776 = vpack.c.b16 %v648, %v640
  %v777 = vpack.c.b16 %v649, %v641
  %v778 = vpack.c.b16 %v650, %v642
  %v779 = vpack.c.b16 %v651, %v643
  %v1036 = vunpack.c.l.b16 %v140
  %v1037 = vunpack.c.l.b16 %v141
  %v1038 = vunpack.c.l.b16 %v142
  %v1039 = vunpack.c.l.b16 %v143
  %v1040 = vunpack.c.l.b16 %v144
  %v1041 = vunpack.c.l.b16 %v145
  %v1042 = vunpack.c.l.b16 %v146
  %v1043 = vunpack.c.l.b16 %v147
  %v1044 = vunpack.c.l.b16 %v148
  %v1045 = vunpack.c.l.b16 %v149
  %v1046 = vunpack.c.l.b16 %v150
  %v1047 = vunpack.c.l.b16 %v151
  %v1048 = vunpack.c.l.b16 %v152
  %v1049 = vunpack.c.l.b16 %v153
  %v1050 = vunpack.c.l.b16 %v154
  %v1051 = vunpack.c.l.b16 %v155
  %v1052 = vunpack.c.l.b16 %v156
  %v1053 = vunpack.c.l.b16 %v157
  %v1054 = vunpack.c.l.b16 %v158
  %v1055 = vunpack.c.l.b16 %v159
  %v1056 = vunpack.c.l.b16 %v160
  %v1057 = vunpack.c.l.b16 %v161
  %v1058 = vunpack.c.l.b16 %v162
  %v1059 = vunpack.c.l.b16 %v163
  %v1060 = vunpack.c.l.b16 %v164
  %v1061 = vunpack.c.l.b16 %v165
  %v1062 = vunpack.c.l.b16 %v166
  %v1063 = vunpack.c.l.b16 %v167
  %v1064 = vunpack.c.l.b16 %v168
  %v1065 = vunpack.c.l.b16 %v169
  %v1066 = vunpack.c.l.b16 %v170
  %v1067 = vunpack.c.l.b16 %v171
  %v1068 = vunpack.c.l.b16 %v172
  %v1069 = vunpack.c.l.b16 %v173
  %v1070 = vunpack.c.l.b16 %v174
  %v1071 = vunpack.c.l.b16 %v175
  %v1072 = vunpack.c.l.b16 %v176
  %v1073 = vunpack.c.l.b16 %v177
  %v1074 = vunpack.c.l.b16 %v178
  %v1075 = vunpack.c.l.b16 %v179
  %v1076 = vunpack.c.l.b16 %v180
  %v1077 = vunpack.c.l.b16 %v181
  %v1078 = vunpack.c.l.b16 %v182
  %v1079 = vunpack.c.l.b16 %v183
  %v1080 = vunpack.c.l.b16 %v184
  %v1081 = vunpack.c.l.b16 %v185
  %v1082 = vunpack.c.l.b16 %v186
  %v1083 = vunpack.c.l.b16 %v187
  %v1084 = vunpack.c.l.b16 %v188
  %v1085 = vunpack.c.l.b16 %v189
  %v1086 = vunpack.c.l.b16 %v190
  %v1087 = vunpack.c.l.b16 %v191
  %v1088 = vunpack.c.l.b16 %v192
  %v1089 = vunpack.c.l.b16 %v193
  %v1090 = vunpack.c.l.b16 %v194
  %v1091 = vunpack.c.l.b16 %v195
  %v1092 = vunpack.c.l.b16 %v196
  %v1093 = vunpack.c.l.b16 %v197
  %v1094 = vunpack.c.l.b16 %v198
  %v1095 = vunpack.c.l.b16 %v199
  %v1096 = vunpack.c.l.b16 %v200
  %v1097 = vunpack.c.l.b16 %v201
  %v1098 = vunpack.c.l.b16 %v202
  %v1099 = vunpack.c.l.b16 %v203
  %v1100 = vunpack.c.l.b16 %v204
  %v1101 = vunpack.c.l.b16 %v205
  %v1102 = vunpack.c.l.b16 %v206
  %v1103 = vunpack.c.l.b16 %v207
  %v1104 = vunpack.c.l.b16 %v208
  %v1105 = vunpack.c.l.b16 %v209
  %v1106 = vunpack.c.l.b16 %v210
  %v1107 = vunpack.c.l.b16 %v211
  %v1108 = vunpack.c.l.b16 %v212
  %v1109 = vunpack.c.l.b16 %v213
  %v1110 = vunpack.c.l.b16 %v214
  %v1111 = vunpack.c.l.b16 %v215
  %v1112 = vunpack.c.l.b16 %v216
  %v1113 = vunpack.c.l.b16 %v217
  %v1114 = vunpack.c.l.b16 %v218
  %v1115 = vunpack.c.l.b16 %v219
  %v1116 = vunpack.c.l.b16 %v220
  %v1117 = vunpack.c.l.b16 %v221
  %v1118 = vunpack.c.l.b16 %v222
  %v1119 = vunpack.c.l.b16 %v223
  %v1120 = vunpack.c.l.b16 %v224
  %v1121 = vunpack.c.l.b16 %v225
  %v1122 = vunpack.c.l.b16 %v226
  %v1123 = vunpack.c.l.b16 %v227
  %v1124 = vunpack.c.l.b16 %v228
  %v1125 = vunpack.c.l.b16 %v229
  %v1126 = vunpack.c.l.b16 %v230
  %v1127 = vunpack.c.l.b16 %v231
  %v1128 = vunpack.c.l.b16 %v232
  %v1129 = vunpack.c.l.b16 %v233
  %v1130 = vunpack.c.l.b16 %v234
  %v1131 = vunpack.c.l.b16 %v235
  %v1132 = vunpack.c.l.b16 %v236
  %v1133 = vunpack.c.l.b16 %v237
  %v1134 = vunpack.c.l.b16 %v238
  %v1135 = vunpack.c.l.b16 %v239
  %v1136 = vunpack.c.l.b16 %v240
  %v1137 = vunpack.c.l.b16 %v241
  %v1138 = vunpack.c.l.b16 %v242
  %v1139 = vunpack.c.l.b16 %v243
  %v1140 = vunpack.c.l.b16 %v244
  %v1141 = vunpack.c.l.b16 %v245
  %v1142 = vunpack.c.l.b16 %v246
  %v1143 = vunpack.c.l.b16 %v247
  %v1144 = vunpack.c.l.b16 %v248
  %v1145 = vunpack.c.l.b16 %v249
  %v1146 = vunpack.c.l.b16 %v250
  %v1147 = vunpack.c.l.b16 %v251
  %v1148 = vunpack.c.l.b16 %v252
  %v1149 = vunpack.c.l.b16 %v253
  %v1150 = vunpack.c.l.b16 %v254
  %v1151 = vunpack.c.l.b16 %v255
  %v1152 = vunpack.c.l.b16 %v256
  %v1153 = vunpack.c.l.b16 %v257
  %v1154 = vunpack.c.l.b16 %v258
  %v1155 = vunpack.c.l.b16 %v259
  %v1156 = vunpack.c.l.b16 %v260
  %v1157 = vunpack.c.l.b16 %v261
  %v1158 = vunpack.c.l.b16 %v262
  %v1159 = vunpack.c.l.b16 %v263
  %v1160 = vunpack.c.l.b16 %v264
  %v1161 = vunpack.c.l.b16 %v265
  %v1162 = vunpack.c.l.b16 %v266
  %v1163 = vunpack.c.l.b16 %v267
  %v1164 = vpack.c.b16 %v1037, %v1036
  %v1165 = vpack.c.b16 %v1039, %v1038
  %v1166 = vpack.c.b16 %v1041, %v1040
  %v1167 = vpack.c.b16 %v1043, %v1042
  %v1168 = vpack.c.b16 %v1045, %v1044
  %v1169 = vpack.c.b16 %v1047, %v1046
  %v1170 = vpack.c.b16 %v1049, %v1048
  %v1171 = vpack.c.b16 %v1051, %v1050
  %v1172 = vpack.c.b16 %v1053, %v1052
  %v1173 = vpack.c.b16 %v1055, %v1054
  %v1174 = vpack.c.b16 %v1057, %v1056
  %v1175 = vpack.c.b16 %v1059, %v1058
  %v1176 = vpack.c.b16 %v1061, %v1060
  %v1177 = vpack.c.b16 %v1063, %v1062
  %v1178 = vpack.c.b16 %v1065, %v1064
  %v1179 = vpack.c.b16 %v1067, %v1066
  %v1180 = vpack.c.b16 %v1069, %v1068
  %v1181 = vpack.c.b16 %v1071, %v1070
  %v1182 = vpack.c.b16 %v1073, %v1072
  %v1183 = vpack.c.b16 %v1075, %v1074
  %v1184 = vpack.c.b16 %v1077, %v1076
  %v1185 = vpack.c.b16 %v1079, %v1078
  %v1186 = vpack.c.b16 %v1081, %v1080
  %v1187 = vpack.c.b16 %v1083, %v1082
  %v1188 = vpack.c.b16 %v1085, %v1084
  %v1189 = vpack.c.b16 %v1087, %v1086
  %v1190 = vpack.c.b16 %v1089, %v1088
  %v1191 = vpack.c.b16 %v1091, %v1090
  %v1192 = vpack.c.b16 %v1093, %v1092
  %v1193 = vpack.c.b16 %v1095, %v1094
  %v1194 = vpack.c.b16 %v1097, %v1096
  %v1195 = vpack.c.b16 %v1099, %v1098
  %v1196 = vpack.c.b16 %v1101, %v1100
  %v1197 = vpack.c.b16 %v1103, %v1102
  %v1198 = vpack.c.b16 %v1105, %v1104
  %v1199 = vpack.c.b16 %v1107, %v1106
  %v1200 = vpack.c.b16 %v1109, %v1108
  %v1201 = vpack.c.b16 %v1111, %v1110
  %v1202 = vpack.c.b16 %v1113, %v1112
  %v1203 = vpack.c.b16 %v1115, %v1114
  %v1204 = vpack.c.b16 %v1117, %v1116
  %v1205 = vpack.c.b16 %v1119, %v1118
  %v1206 = vpack.c.b16 %v1121, %v1120
  %v1207 = vpack.c.b16 %v1123, %v1122
  %v1208 = vpack.c.b16 %v1125, %v1124
  %v1209 = vpack.c.b16 %v1127, %v1126
  %v1210 = vpack.c.b16 %v1129, %v1128
  %v1211 = vpack.c.b16 %v1131, %v1130
  %v1212 = vpack.c.b16 %v1133, %v1132
  %v1213 = vpack.c.b16 %v1135, %v1134
  %v1214 = vpack.c.b16 %v1137, %v1136
  %v1215 = vpack.c.b16 %v1139, %v1138
  %v1216 = vpack.c.b16 %v1141, %v1140
  %v1217 = vpack.c.b16 %v1143, %v1142
  %v1218 = vpack.c.b16 %v1145, %v1144
  %v1219 = vpack.c.b16 %v1147, %v1146
  %v1220 = vpack.c.b16 %v1149, %v1148
  %v1221 = vpack.c.b16 %v1151, %v1150
  %v1222 = vpack.c.b16 %v1153, %v1152
  %v1223 = vpack.c.b16 %v1155, %v1154
  %v1224 = vpack.c.b16 %v1157, %v1156
  %v1225 = vpack.c.b16 %v1159, %v1158
  %v1226 = vpack.c.b16 %v1161, %v1160
  %v1227 = vpack.c.b16 %v1163, %v1162
  %1292 = vmatprep.subr.bf16.mxu0 0
  %1293 = vmatpush1.bf16.msra.mxu0 %v1164
  %1294 = vmatprep.subr.bf16.mxu0 0
  %1295 = vmatpush1.bf16.msra.mxu0 %v1165
  %1296 = vmatprep.subr.bf16.mxu0 0
  %1297 = vmatpush1.bf16.msra.mxu0 %v1166
  %1298 = vmatprep.subr.bf16.mxu0 0
  %1299 = vmatpush1.bf16.msra.mxu0 %v1167
  %1300 = vmatprep.subr.bf16.mxu0 0
  %1301 = vmatpush1.bf16.msra.mxu0 %v1168
  %1302 = vmatprep.subr.bf16.mxu0 0
  %1303 = vmatpush1.bf16.msra.mxu0 %v1169
  %1304 = vmatprep.subr.bf16.mxu0 0
  %1305 = vmatpush1.bf16.msra.mxu0 %v1170
  %1306 = vmatprep.subr.bf16.mxu0 0
  %1307 = vmatpush1.bf16.msra.mxu0 %v1171
  %1308 = vmatprep.subr.bf16.mxu0 0
  %1309 = vmatpush1.bf16.msra.mxu0 %v1172
  %1310 = vmatprep.subr.bf16.mxu0 0
  %1311 = vmatpush1.bf16.msra.mxu0 %v1173
  %1312 = vmatprep.subr.bf16.mxu0 0
  %1313 = vmatpush1.bf16.msra.mxu0 %v1174
  %1314 = vmatprep.subr.bf16.mxu0 0
  %1315 = vmatpush1.bf16.msra.mxu0 %v1175
  %1316 = vmatprep.subr.bf16.mxu0 0
  %1317 = vmatpush1.bf16.msra.mxu0 %v1176
  %1318 = vmatprep.subr.bf16.mxu0 0
  %1319 = vmatpush1.bf16.msra.mxu0 %v1177
  %1320 = vmatprep.subr.bf16.mxu0 0
  %1321 = vmatpush1.bf16.msra.mxu0 %v1178
  %1322 = vmatprep.subr.bf16.mxu0 0
  %1323 = vmatpush1.bf16.msra.mxu0 %v1179
  %1324 = vmatprep.mubr.bf16.mxu0 %v653
  %1325 = vmatmul.mubr.bf16.gmra.mrb[0].mxu0 %v652
  %v1326 = vpop.f32.mrb[0].mxu0
  %v1327 = vadd.f32 0.0, %v1326
  %v1328 = vpop.f32.mrb[0].mxu0
  %v1329 = vpop.f32.mrb[0].mxu0
  %v1330 = vadd.f32 0.0, %v1329
  %v1331 = vpop.f32.mrb[0].mxu0
  %1332 = vmatprep.mubr.bf16.mxu0 %v661
  %1333 = vmatmul.mubr.bf16.gmra.mrb[0].mxu0 %v660
  %v1334 = vpop.f32.mrb[0].mxu0
  %v1335 = vadd.f32 0.0, %v1334
  %v1336 = vpop.f32.mrb[0].mxu0
  %v1337 = vpop.f32.mrb[0].mxu0
  %v1338 = vadd.f32 0.0, %v1337
  %v1339 = vpop.f32.mrb[0].mxu0
  %1340 = vmatprep.mubr.bf16.mxu0 %v669
  %1341 = vmatmul.mubr.bf16.gmra.mrb[0].mxu0 %v668
  %v1342 = vpop.f32.mrb[0].mxu0
  %v1343 = vadd.f32 0.0, %v1342
  %v1344 = vpop.f32.mrb[0].mxu0
  %v1345 = vpop.f32.mrb[0].mxu0
  %v1346 = vadd.f32 0.0, %v1345
  %v1347 = vpop.f32.mrb[0].mxu0
  %1348 = vmatprep.mubr.bf16.mxu0 %v677
  %1349 = vmatmul.mubr.bf16.gmra.mrb[0].mxu0 %v676
  %v1350 = vpop.f32.mrb[0].mxu0
  %v1351 = vadd.f32 0.0, %v1350
  %v1352 = vpop.f32.mrb[0].mxu0
  %v1353 = vpop.f32.mrb[0].mxu0
  %v1354 = vadd.f32 0.0, %v1353
  %v1355 = vpop.f32.mrb[0].mxu0
  %1356 = vmatprep.mubr.bf16.mxu0 %v685
  %1357 = vmatmul.mubr.bf16.gmra.mrb[0].mxu0 %v684
  %v1358 = vpop.f32.mrb[0].mxu0
  %v1359 = vadd.f32 0.0, %v1358
  %v1360 = vpop.f32.mrb[0].mxu0
  %v1361 = vpop.f32.mrb[0].mxu0
  %v1362 = vadd.f32 0.0, %v1361
  %v1363 = vpop.f32.mrb[0].mxu0
  %1364 = vmatprep.mubr.bf16.mxu0 %v693
  %1365 = vmatmul.mubr.bf16.gmra.mrb[0].mxu0 %v692
  %v1366 = vpop.f32.mrb[0].mxu0
  %v1367 = vadd.f32 0.0, %v1366
  %v1368 = vpop.f32.mrb[0].mxu0
  %v1369 = vpop.f32.mrb[0].mxu0
  %v1370 = vadd.f32 0.0, %v1369
  %v1371 = vpop.f32.mrb[0].mxu0
  %1372 = vmatprep.mubr.bf16.mxu0 %v701
  %1373 = vmatmul.mubr.bf16.gmra.mrb[0].mxu0 %v700
  %v1374 = vpop.f32.mrb[0].mxu0
  %v1375 = vadd.f32 0.0, %v1374
  %v1376 = vpop.f32.mrb[0].mxu0
  %v1377 = vpop.f32.mrb[0].mxu0
  %v1378 = vadd.f32 0.0, %v1377
  %v1379 = vpop.f32.mrb[0].mxu0
  %1380 = vmatprep.mubr.bf16.mxu0 %v709
  %1381 = vmatmul.mubr.bf16.gmra.mrb[0].mxu0 %v708
  %v1382 = vpop.f32.mrb[0].mxu0
  %v1383 = vadd.f32 0.0, %v1382
  %v1384 = vpop.f32.mrb[0].mxu0
  %v1385 = vpop.f32.mrb[0].mxu0
  %v1386 = vadd.f32 0.0, %v1385
  %v1387 = vpop.f32.mrb[0].mxu0
  %1388 = vmatprep.mubr.bf16.mxu0 %v717
  %1389 = vmatmul.mubr.bf16.gmra.mrb[0].mxu0 %v716
  %v1390 = vpop.f32.mrb[0].mxu0
  %v1391 = vadd.f32 0.0, %v1390
  %v1392 = vpop.f32.mrb[0].mxu0
  %v1393 = vpop.f32.mrb[0].mxu0
  %v1394 = vadd.f32 0.0, %v1393
  %v1395 = vpop.f32.mrb[0].mxu0
  %1396 = vmatprep.mubr.bf16.mxu0 %v725
  %1397 = vmatmul.mubr.bf16.gmra.mrb[0].mxu0 %v724
  %v1398 = vpop.f32.mrb[0].mxu0
  %v1399 = vadd.f32 0.0, %v1398
  %v1400 = vpop.f32.mrb[0].mxu0
  %v1401 = vpop.f32.mrb[0].mxu0
  %v1402 = vadd.f32 0.0, %v1401
  %v1403 = vpop.f32.mrb[0].mxu0
  %1404 = vmatprep.mubr.bf16.mxu0 %v733
  %1405 = vmatmul.mubr.bf16.gmra.mrb[0].mxu0 %v732
  %v1406 = vpop.f32.mrb[0].mxu0
  %v1407 = vadd.f32 0.0, %v1406
  %v1408 = vpop.f32.mrb[0].mxu0
  %v1409 = vpop.f32.mrb[0].mxu0
  %v1410 = vadd.f32 0.0, %v1409
  %v1411 = vpop.f32.mrb[0].mxu0
  %1412 = vmatprep.mubr.bf16.mxu0 %v741
  %1413 = vmatmul.mubr.bf16.gmra.mrb[0].mxu0 %v740
  %v1414 = vpop.f32.mrb[0].mxu0
  %v1415 = vadd.f32 0.0, %v1414
  %v1416 = vpop.f32.mrb[0].mxu0
  %v1417 = vpop.f32.mrb[0].mxu0
  %v1418 = vadd.f32 0.0, %v1417
  %v1419 = vpop.f32.mrb[0].mxu0
  %1420 = vmatprep.mubr.bf16.mxu0 %v749
  %1421 = vmatmul.mubr.bf16.gmra.mrb[0].mxu0 %v748
  %v1422 = vpop.f32.mrb[0].mxu0
  %v1423 = vadd.f32 0.0, %v1422
  %v1424 = vpop.f32.mrb[0].mxu0
  %v1425 = vpop.f32.mrb[0].mxu0
  %v1426 = vadd.f32 0.0, %v1425
  %v1427 = vpop.f32.mrb[0].mxu0
  %1428 = vmatprep.mubr.bf16.mxu0 %v757
  %1429 = vmatmul.mubr.bf16.gmra.mrb[0].mxu0 %v756
  %v1430 = vpop.f32.mrb[0].mxu0
  %v1431 = vadd.f32 0.0, %v1430
  %v1432 = vpop.f32.mrb[0].mxu0
  %v1433 = vpop.f32.mrb[0].mxu0
  %v1434 = vadd.f32 0.0, %v1433
  %v1435 = vpop.f32.mrb[0].mxu0
  %1436 = vmatprep.mubr.bf16.mxu0 %v765
  %1437 = vmatmul.mubr.bf16.gmra.mrb[0].mxu0 %v764
  %v1438 = vpop.f32.mrb[0].mxu0
  %v1439 = vadd.f32 0.0, %v1438
  %v1440 = vpop.f32.mrb[0].mxu0
  %v1441 = vpop.f32.mrb[0].mxu0
  %v1442 = vadd.f32 0.0, %v1441
  %v1443 = vpop.f32.mrb[0].mxu0
  %1444 = vmatprep.mubr.bf16.mxu0 %v773
  %1445 = vmatmul.mubr.bf16.gmra.mrb[0].mxu0 %v772
  %v1446 = vpop.f32.mrb[0].mxu0
  %v1447 = vadd.f32 0.0, %v1446
  %v1448 = vpop.f32.mrb[0].mxu0
  %v1449 = vpop.f32.mrb[0].mxu0
  %v1450 = vadd.f32 0.0, %v1449
  %v1451 = vpop.f32.mrb[0].mxu0
  %1452 = vdwg.mxu0
  %1453 = vmatprep.subr.bf16.mxu0 0
  %1454 = vmatpush1.bf16.msra.mxu0 %v1180
  %1455 = vmatprep.subr.bf16.mxu0 0
  %1456 = vmatpush1.bf16.msra.mxu0 %v1181
  %1457 = vmatprep.subr.bf16.mxu0 0
  %1458 = vmatpush1.bf16.msra.mxu0 %v1182
  %1459 = vmatprep.subr.bf16.mxu0 0
  %1460 = vmatpush1.bf16.msra.mxu0 %v1183
  %1461 = vmatprep.subr.bf16.mxu0 0
  %1462 = vmatpush1.bf16.msra.mxu0 %v1184
  %1463 = vmatprep.subr.bf16.mxu0 0
  %1464 = vmatpush1.bf16.msra.mxu0 %v1185
  %1465 = vmatprep.subr.bf16.mxu0 0
  %1466 = vmatpush1.bf16.msra.mxu0 %v1186
  %1467 = vmatprep.subr.bf16.mxu0 0
  %1468 = vmatpush1.bf16.msra.mxu0 %v1187
  %1469 = vmatprep.subr.bf16.mxu0 0
  %1470 = vmatpush1.bf16.msra.mxu0 %v1188
  %1471 = vmatprep.subr.bf16.mxu0 0
  %1472 = vmatpush1.bf16.msra.mxu0 %v1189
  %1473 = vmatprep.subr.bf16.mxu0 0
  %1474 = vmatpush1.bf16.msra.mxu0 %v1190
  %1475 = vmatprep.subr.bf16.mxu0 0
  %1476 = vmatpush1.bf16.msra.mxu0 %v1191
  %1477 = vmatprep.subr.bf16.mxu0 0
  %1478 = vmatpush1.bf16.msra.mxu0 %v1192
  %1479 = vmatprep.subr.bf16.mxu0 0
  %1480 = vmatpush1.bf16.msra.mxu0 %v1193
  %1481 = vmatprep.subr.bf16.mxu0 0
  %1482 = vmatpush1.bf16.msra.mxu0 %v1194
  %1483 = vmatprep.subr.bf16.mxu0 0
  %1484 = vmatpush1.bf16.msra.mxu0 %v1195
  %1485 = vmatprep.mubr.bf16.mxu0 %v655
  %1486 = vmatmul.mubr.bf16.gmra.mrb[0].mxu0 %v654
  %v1487 = vpop.f32.mrb[0].mxu0
  %v1488 = vadd.f32 %v1327, %v1487
  %v1489 = vpop.f32.mrb[0].mxu0
  %v1490 = vpop.f32.mrb[0].mxu0
  %v1491 = vadd.f32 %v1330, %v1490
  %v1492 = vpop.f32.mrb[0].mxu0
  %1493 = vmatprep.mubr.bf16.mxu0 %v663
  %1494 = vmatmul.mubr.bf16.gmra.mrb[0].mxu0 %v662
  %v1495 = vpop.f32.mrb[0].mxu0
  %v1496 = vadd.f32 %v1335, %v1495
  %v1497 = vpop.f32.mrb[0].mxu0
  %v1498 = vpop.f32.mrb[0].mxu0
  %v1499 = vadd.f32 %v1338, %v1498
  %v1500 = vpop.f32.mrb[0].mxu0
  %1501 = vmatprep.mubr.bf16.mxu0 %v671
  %1502 = vmatmul.mubr.bf16.gmra.mrb[0].mxu0 %v670
  %v1503 = vpop.f32.mrb[0].mxu0
  %v1504 = vadd.f32 %v1343, %v1503
  %v1505 = vpop.f32.mrb[0].mxu0
  %v1506 = vpop.f32.mrb[0].mxu0
  %v1507 = vadd.f32 %v1346, %v1506
  %v1508 = vpop.f32.mrb[0].mxu0
  %1509 = vmatprep.mubr.bf16.mxu0 %v679
  %1510 = vmatmul.mubr.bf16.gmra.mrb[0].mxu0 %v678
  %v1511 = vpop.f32.mrb[0].mxu0
  %v1512 = vadd.f32 %v1351, %v1511
  %v1513 = vpop.f32.mrb[0].mxu0
  %v1514 = vpop.f32.mrb[0].mxu0
  %v1515 = vadd.f32 %v1354, %v1514
  %v1516 = vpop.f32.mrb[0].mxu0
  %1517 = vmatprep.mubr.bf16.mxu0 %v687
  %1518 = vmatmul.mubr.bf16.gmra.mrb[0].mxu0 %v686
  %v1519 = vpop.f32.mrb[0].mxu0
  %v1520 = vadd.f32 %v1359, %v1519
  %v1521 = vpop.f32.mrb[0].mxu0
  %v1522 = vpop.f32.mrb[0].mxu0
  %v1523 = vadd.f32 %v1362, %v1522
  %v1524 = vpop.f32.mrb[0].mxu0
  %1525 = vmatprep.mubr.bf16.mxu0 %v695
  %1526 = vmatmul.mubr.bf16.gmra.mrb[0].mxu0 %v694
  %v1527 = vpop.f32.mrb[0].mxu0
  %v1528 = vadd.f32 %v1367, %v1527
  %v1529 = vpop.f32.mrb[0].mxu0
  %v1530 = vpop.f32.mrb[0].mxu0
  %v1531 = vadd.f32 %v1370, %v1530
  %v1532 = vpop.f32.mrb[0].mxu0
  %1533 = vmatprep.mubr.bf16.mxu0 %v703
  %1534 = vmatmul.mubr.bf16.gmra.mrb[0].mxu0 %v702
  %v1535 = vpop.f32.mrb[0].mxu0
  %v1536 = vadd.f32 %v1375, %v1535
  %v1537 = vpop.f32.mrb[0].mxu0
  %v1538 = vpop.f32.mrb[0].mxu0
  %v1539 = vadd.f32 %v1378, %v1538
  %v1540 = vpop.f32.mrb[0].mxu0
  %1541 = vmatprep.mubr.bf16.mxu0 %v711
  %1542 = vmatmul.mubr.bf16.gmra.mrb[0].mxu0 %v710
  %v1543 = vpop.f32.mrb[0].mxu0
  %v1544 = vadd.f32 %v1383, %v1543
  %v1545 = vpop.f32.mrb[0].mxu0
  %v1546 = vpop.f32.mrb[0].mxu0
  %v1547 = vadd.f32 %v1386, %v1546
  %v1548 = vpop.f32.mrb[0].mxu0
  %1549 = vmatprep.mubr.bf16.mxu0 %v719
  %1550 = vmatmul.mubr.bf16.gmra.mrb[0].mxu0 %v718
  %v1551 = vpop.f32.mrb[0].mxu0
  %v1552 = vadd.f32 %v1391, %v1551
  %v1553 = vpop.f32.mrb[0].mxu0
  %v1554 = vpop.f32.mrb[0].mxu0
  %v1555 = vadd.f32 %v1394, %v1554
  %v1556 = vpop.f32.mrb[0].mxu0
  %1557 = vmatprep.mubr.bf16.mxu0 %v727
  %1558 = vmatmul.mubr.bf16.gmra.mrb[0].mxu0 %v726
  %v1559 = vpop.f32.mrb[0].mxu0
  %v1560 = vadd.f32 %v1399, %v1559
  %v1561 = vpop.f32.mrb[0].mxu0
  %v1562 = vpop.f32.mrb[0].mxu0
  %v1563 = vadd.f32 %v1402, %v1562
  %v1564 = vpop.f32.mrb[0].mxu0
  %1565 = vmatprep.mubr.bf16.mxu0 %v735
  %1566 = vmatmul.mubr.bf16.gmra.mrb[0].mxu0 %v734
  %v1567 = vpop.f32.mrb[0].mxu0
  %v1568 = vadd.f32 %v1407, %v1567
  %v1569 = vpop.f32.mrb[0].mxu0
  %v1570 = vpop.f32.mrb[0].mxu0
  %v1571 = vadd.f32 %v1410, %v1570
  %v1572 = vpop.f32.mrb[0].mxu0
  %1573 = vmatprep.mubr.bf16.mxu0 %v743
  %1574 = vmatmul.mubr.bf16.gmra.mrb[0].mxu0 %v742
  %v1575 = vpop.f32.mrb[0].mxu0
  %v1576 = vadd.f32 %v1415, %v1575
  %v1577 = vpop.f32.mrb[0].mxu0
  %v1578 = vpop.f32.mrb[0].mxu0
  %v1579 = vadd.f32 %v1418, %v1578
  %v1580 = vpop.f32.mrb[0].mxu0
  %1581 = vmatprep.mubr.bf16.mxu0 %v751
  %1582 = vmatmul.mubr.bf16.gmra.mrb[0].mxu0 %v750
  %v1583 = vpop.f32.mrb[0].mxu0
  %v1584 = vadd.f32 %v1423, %v1583
  %v1585 = vpop.f32.mrb[0].mxu0
  %v1586 = vpop.f32.mrb[0].mxu0
  %v1587 = vadd.f32 %v1426, %v1586
  %v1588 = vpop.f32.mrb[0].mxu0
  %1589 = vmatprep.mubr.bf16.mxu0 %v759
  %1590 = vmatmul.mubr.bf16.gmra.mrb[0].mxu0 %v758
  %v1591 = vpop.f32.mrb[0].mxu0
  %v1592 = vadd.f32 %v1431, %v1591
  %v1593 = vpop.f32.mrb[0].mxu0
  %v1594 = vpop.f32.mrb[0].mxu0
  %v1595 = vadd.f32 %v1434, %v1594
  %v1596 = vpop.f32.mrb[0].mxu0
  %1597 = vmatprep.mubr.bf16.mxu0 %v767
  %1598 = vmatmul.mubr.bf16.gmra.mrb[0].mxu0 %v766
  %v1599 = vpop.f32.mrb[0].mxu0
  %v1600 = vadd.f32 %v1439, %v1599
  %v1601 = vpop.f32.mrb[0].mxu0
  %v1602 = vpop.f32.mrb[0].mxu0
  %v1603 = vadd.f32 %v1442, %v1602
  %v1604 = vpop.f32.mrb[0].mxu0
  %1605 = vmatprep.mubr.bf16.mxu0 %v775
  %1606 = vmatmul.mubr.bf16.gmra.mrb[0].mxu0 %v774
  %v1607 = vpop.f32.mrb[0].mxu0
  %v1608 = vadd.f32 %v1447, %v1607
  %v1609 = vpop.f32.mrb[0].mxu0
  %v1610 = vpop.f32.mrb[0].mxu0
  %v1611 = vadd.f32 %v1450, %v1610
  %v1612 = vpop.f32.mrb[0].mxu0
  %1613 = vdwg.mxu0
  %1614 = vmatprep.subr.bf16.mxu0 0
  %1615 = vmatpush1.bf16.msra.mxu0 %v1196
  %1616 = vmatprep.subr.bf16.mxu0 0
  %1617 = vmatpush1.bf16.msra.mxu0 %v1197
  %1618 = vmatprep.subr.bf16.mxu0 0
  %1619 = vmatpush1.bf16.msra.mxu0 %v1198
  %1620 = vmatprep.subr.bf16.mxu0 0
  %1621 = vmatpush1.bf16.msra.mxu0 %v1199
  %1622 = vmatprep.subr.bf16.mxu0 0
  %1623 = vmatpush1.bf16.msra.mxu0 %v1200
  %1624 = vmatprep.subr.bf16.mxu0 0
  %1625 = vmatpush1.bf16.msra.mxu0 %v1201
  %1626 = vmatprep.subr.bf16.mxu0 0
  %1627 = vmatpush1.bf16.msra.mxu0 %v1202
  %1628 = vmatprep.subr.bf16.mxu0 0
  %1629 = vmatpush1.bf16.msra.mxu0 %v1203
  %1630 = vmatprep.subr.bf16.mxu0 0
  %1631 = vmatpush1.bf16.msra.mxu0 %v1204
  %1632 = vmatprep.subr.bf16.mxu0 0
  %1633 = vmatpush1.bf16.msra.mxu0 %v1205
  %1634 = vmatprep.subr.bf16.mxu0 0
  %1635 = vmatpush1.bf16.msra.mxu0 %v1206
  %1636 = vmatprep.subr.bf16.mxu0 0
  %1637 = vmatpush1.bf16.msra.mxu0 %v1207
  %1638 = vmatprep.subr.bf16.mxu0 0
  %1639 = vmatpush1.bf16.msra.mxu0 %v1208
  %1640 = vmatprep.subr.bf16.mxu0 0
  %1641 = vmatpush1.bf16.msra.mxu0 %v1209
  %1642 = vmatprep.subr.bf16.mxu0 0
  %1643 = vmatpush1.bf16.msra.mxu0 %v1210
  %1644 = vmatprep.subr.bf16.mxu0 0
  %1645 = vmatpush1.bf16.msra.mxu0 %v1211
  %1646 = vmatprep.mubr.bf16.mxu0 %v657
  %1647 = vmatmul.mubr.bf16.gmra.mrb[0].mxu0 %v656
  %v1648 = vpop.f32.mrb[0].mxu0
  %v1649 = vadd.f32 %v1488, %v1648
  %v1650 = vpop.f32.mrb[0].mxu0
  %v1651 = vpop.f32.mrb[0].mxu0
  %v1652 = vadd.f32 %v1491, %v1651
  %v1653 = vpop.f32.mrb[0].mxu0
  %1654 = vmatprep.mubr.bf16.mxu0 %v665
  %1655 = vmatmul.mubr.bf16.gmra.mrb[0].mxu0 %v664
  %v1656 = vpop.f32.mrb[0].mxu0
  %v1657 = vadd.f32 %v1496, %v1656
  %v1658 = vpop.f32.mrb[0].mxu0
  %v1659 = vpop.f32.mrb[0].mxu0
  %v1660 = vadd.f32 %v1499, %v1659
  %v1661 = vpop.f32.mrb[0].mxu0
  %1662 = vmatprep.mubr.bf16.mxu0 %v673
  %1663 = vmatmul.mubr.bf16.gmra.mrb[0].mxu0 %v672
  %v1664 = vpop.f32.mrb[0].mxu0
  %v1665 = vadd.f32 %v1504, %v1664
  %v1666 = vpop.f32.mrb[0].mxu0
  %v1667 = vpop.f32.mrb[0].mxu0
  %v1668 = vadd.f32 %v1507, %v1667
  %v1669 = vpop.f32.mrb[0].mxu0
  %1670 = vmatprep.mubr.bf16.mxu0 %v681
  %1671 = vmatmul.mubr.bf16.gmra.mrb[0].mxu0 %v680
  %v1672 = vpop.f32.mrb[0].mxu0
  %v1673 = vadd.f32 %v1512, %v1672
  %v1674 = vpop.f32.mrb[0].mxu0
  %v1675 = vpop.f32.mrb[0].mxu0
  %v1676 = vadd.f32 %v1515, %v1675
  %v1677 = vpop.f32.mrb[0].mxu0
  %1678 = vmatprep.mubr.bf16.mxu0 %v689
  %1679 = vmatmul.mubr.bf16.gmra.mrb[0].mxu0 %v688
  %v1680 = vpop.f32.mrb[0].mxu0
  %v1681 = vadd.f32 %v1520, %v1680
  %v1682 = vpop.f32.mrb[0].mxu0
  %v1683 = vpop.f32.mrb[0].mxu0
  %v1684 = vadd.f32 %v1523, %v1683
  %v1685 = vpop.f32.mrb[0].mxu0
  %1686 = vmatprep.mubr.bf16.mxu0 %v697
  %1687 = vmatmul.mubr.bf16.gmra.mrb[0].mxu0 %v696
  %v1688 = vpop.f32.mrb[0].mxu0
  %v1689 = vadd.f32 %v1528, %v1688
  %v1690 = vpop.f32.mrb[0].mxu0
  %v1691 = vpop.f32.mrb[0].mxu0
  %v1692 = vadd.f32 %v1531, %v1691
  %v1693 = vpop.f32.mrb[0].mxu0
  %1694 = vmatprep.mubr.bf16.mxu0 %v705
  %1695 = vmatmul.mubr.bf16.gmra.mrb[0].mxu0 %v704
  %v1696 = vpop.f32.mrb[0].mxu0
  %v1697 = vadd.f32 %v1536, %v1696
  %v1698 = vpop.f32.mrb[0].mxu0
  %v1699 = vpop.f32.mrb[0].mxu0
  %v1700 = vadd.f32 %v1539, %v1699
  %v1701 = vpop.f32.mrb[0].mxu0
  %1702 = vmatprep.mubr.bf16.mxu0 %v713
  %1703 = vmatmul.mubr.bf16.gmra.mrb[0].mxu0 %v712
  %v1704 = vpop.f32.mrb[0].mxu0
  %v1705 = vadd.f32 %v1544, %v1704
  %v1706 = vpop.f32.mrb[0].mxu0
  %v1707 = vpop.f32.mrb[0].mxu0
  %v1708 = vadd.f32 %v1547, %v1707
  %v1709 = vpop.f32.mrb[0].mxu0
  %1710 = vmatprep.mubr.bf16.mxu0 %v721
  %1711 = vmatmul.mubr.bf16.gmra.mrb[0].mxu0 %v720
  %v1712 = vpop.f32.mrb[0].mxu0
  %v1713 = vadd.f32 %v1552, %v1712
  %v1714 = vpop.f32.mrb[0].mxu0
  %v1715 = vpop.f32.mrb[0].mxu0
  %v1716 = vadd.f32 %v1555, %v1715
  %v1717 = vpop.f32.mrb[0].mxu0
  %1718 = vmatprep.mubr.bf16.mxu0 %v729
  %1719 = vmatmul.mubr.bf16.gmra.mrb[0].mxu0 %v728
  %v1720 = vpop.f32.mrb[0].mxu0
  %v1721 = vadd.f32 %v1560, %v1720
  %v1722 = vpop.f32.mrb[0].mxu0
  %v1723 = vpop.f32.mrb[0].mxu0
  %v1724 = vadd.f32 %v1563, %v1723
  %v1725 = vpop.f32.mrb[0].mxu0
  %1726 = vmatprep.mubr.bf16.mxu0 %v737
  %1727 = vmatmul.mubr.bf16.gmra.mrb[0].mxu0 %v736
  %v1728 = vpop.f32.mrb[0].mxu0
  %v1729 = vadd.f32 %v1568, %v1728
  %v1730 = vpop.f32.mrb[0].mxu0
  %v1731 = vpop.f32.mrb[0].mxu0
  %v1732 = vadd.f32 %v1571, %v1731
  %v1733 = vpop.f32.mrb[0].mxu0
  %1734 = vmatprep.mubr.bf16.mxu0 %v745
  %1735 = vmatmul.mubr.bf16.gmra.mrb[0].mxu0 %v744
  %v1736 = vpop.f32.mrb[0].mxu0
  %v1737 = vadd.f32 %v1576, %v1736
  %v1738 = vpop.f32.mrb[0].mxu0
  %v1739 = vpop.f32.mrb[0].mxu0
  %v1740 = vadd.f32 %v1579, %v1739
  %v1741 = vpop.f32.mrb[0].mxu0
  %1742 = vmatprep.mubr.bf16.mxu0 %v753
  %1743 = vmatmul.mubr.bf16.gmra.mrb[0].mxu0 %v752
  %v1744 = vpop.f32.mrb[0].mxu0
  %v1745 = vadd.f32 %v1584, %v1744
  %v1746 = vpop.f32.mrb[0].mxu0
  %v1747 = vpop.f32.mrb[0].mxu0
  %v1748 = vadd.f32 %v1587, %v1747
  %v1749 = vpop.f32.mrb[0].mxu0
  %1750 = vmatprep.mubr.bf16.mxu0 %v761
  %1751 = vmatmul.mubr.bf16.gmra.mrb[0].mxu0 %v760
  %v1752 = vpop.f32.mrb[0].mxu0
  %v1753 = vadd.f32 %v1592, %v1752
  %v1754 = vpop.f32.mrb[0].mxu0
  %v1755 = vpop.f32.mrb[0].mxu0
  %v1756 = vadd.f32 %v1595, %v1755
  %v1757 = vpop.f32.mrb[0].mxu0
  %1758 = vmatprep.mubr.bf16.mxu0 %v769
  %1759 = vmatmul.mubr.bf16.gmra.mrb[0].mxu0 %v768
  %v1760 = vpop.f32.mrb[0].mxu0
  %v1761 = vadd.f32 %v1600, %v1760
  %v1762 = vpop.f32.mrb[0].mxu0
  %v1763 = vpop.f32.mrb[0].mxu0
  %v1764 = vadd.f32 %v1603, %v1763
  %v1765 = vpop.f32.mrb[0].mxu0
  %1766 = vmatprep.mubr.bf16.mxu0 %v777
  %1767 = vmatmul.mubr.bf16.gmra.mrb[0].mxu0 %v776
  %v1768 = vpop.f32.mrb[0].mxu0
  %v1769 = vadd.f32 %v1608, %v1768
  %v1770 = vpop.f32.mrb[0].mxu0
  %v1771 = vpop.f32.mrb[0].mxu0
  %v1772 = vadd.f32 %v1611, %v1771
  %v1773 = vpop.f32.mrb[0].mxu0
  %1774 = vdwg.mxu0
  %1775 = vmatprep.subr.bf16.mxu0 0
  %1776 = vmatpush1.bf16.msra.mxu0 %v1212
  %1777 = vmatprep.subr.bf16.mxu0 0
  %1778 = vmatpush1.bf16.msra.mxu0 %v1213
  %1779 = vmatprep.subr.bf16.mxu0 0
  %1780 = vmatpush1.bf16.msra.mxu0 %v1214
  %1781 = vmatprep.subr.bf16.mxu0 0
  %1782 = vmatpush1.bf16.msra.mxu0 %v1215
  %1783 = vmatprep.subr.bf16.mxu0 0
  %1784 = vmatpush1.bf16.msra.mxu0 %v1216
  %1785 = vmatprep.subr.bf16.mxu0 0
  %1786 = vmatpush1.bf16.msra.mxu0 %v1217
  %1787 = vmatprep.subr.bf16.mxu0 0
  %1788 = vmatpush1.bf16.msra.mxu0 %v1218
  %1789 = vmatprep.subr.bf16.mxu0 0
  %1790 = vmatpush1.bf16.msra.mxu0 %v1219
  %1791 = vmatprep.subr.bf16.mxu0 0
  %1792 = vmatpush1.bf16.msra.mxu0 %v1220
  %1793 = vmatprep.subr.bf16.mxu0 0
  %1794 = vmatpush1.bf16.msra.mxu0 %v1221
  %1795 = vmatprep.subr.bf16.mxu0 0
  %1796 = vmatpush1.bf16.msra.mxu0 %v1222
  %1797 = vmatprep.subr.bf16.mxu0 0
  %1798 = vmatpush1.bf16.msra.mxu0 %v1223
  %1799 = vmatprep.subr.bf16.mxu0 0
  %1800 = vmatpush1.bf16.msra.mxu0 %v1224
  %1801 = vmatprep.subr.bf16.mxu0 0
  %1802 = vmatpush1.bf16.msra.mxu0 %v1225
  %1803 = vmatprep.subr.bf16.mxu0 0
  %1804 = vmatpush1.bf16.msra.mxu0 %v1226
  %1805 = vmatprep.subr.bf16.mxu0 0
  %1806 = vmatpush1.bf16.msra.mxu0 %v1227
  %1807 = vmatprep.mubr.bf16.mxu0 %v659
  %1808 = vmatmul.mubr.bf16.gmra.mrb[0].mxu0 %v658
  %v1809 = vpop.f32.mrb[0].mxu0
  %v1810 = vadd.f32 %v1649, %v1809
  %v1811 = vpop.f32.mrb[0].mxu0
  %v1812 = vpop.f32.mrb[0].mxu0
  %v1813 = vadd.f32 %v1652, %v1812
  %v1814 = vpop.f32.mrb[0].mxu0
  %1815 = vmatprep.mubr.bf16.mxu0 %v667
  %1816 = vmatmul.mubr.bf16.gmra.mrb[0].mxu0 %v666
  %v1817 = vpop.f32.mrb[0].mxu0
  %v1818 = vadd.f32 %v1657, %v1817
  %v1819 = vpop.f32.mrb[0].mxu0
  %v1820 = vpop.f32.mrb[0].mxu0
  %v1821 = vadd.f32 %v1660, %v1820
  %v1822 = vpop.f32.mrb[0].mxu0
  %1823 = vmatprep.mubr.bf16.mxu0 %v675
  %1824 = vmatmul.mubr.bf16.gmra.mrb[0].mxu0 %v674
  %v1825 = vpop.f32.mrb[0].mxu0
  %v1826 = vadd.f32 %v1665, %v1825
  %v1827 = vpop.f32.mrb[0].mxu0
  %v1828 = vpop.f32.mrb[0].mxu0
  %v1829 = vadd.f32 %v1668, %v1828
  %v1830 = vpop.f32.mrb[0].mxu0
  %1831 = vmatprep.mubr.bf16.mxu0 %v683
  %1832 = vmatmul.mubr.bf16.gmra.mrb[0].mxu0 %v682
  %v1833 = vpop.f32.mrb[0].mxu0
  %v1834 = vadd.f32 %v1673, %v1833
  %v1835 = vpop.f32.mrb[0].mxu0
  %v1836 = vpop.f32.mrb[0].mxu0
  %v1837 = vadd.f32 %v1676, %v1836
  %v1838 = vpop.f32.mrb[0].mxu0
  %1839 = vmatprep.mubr.bf16.mxu0 %v691
  %1840 = vmatmul.mubr.bf16.gmra.mrb[0].mxu0 %v690
  %v1841 = vpop.f32.mrb[0].mxu0
  %v1842 = vadd.f32 %v1681, %v1841
  %v1843 = vpop.f32.mrb[0].mxu0
  %v1844 = vpop.f32.mrb[0].mxu0
  %v1845 = vadd.f32 %v1684, %v1844
  %v1846 = vpop.f32.mrb[0].mxu0
  %1847 = vmatprep.mubr.bf16.mxu0 %v699
  %1848 = vmatmul.mubr.bf16.gmra.mrb[0].mxu0 %v698
  %v1849 = vpop.f32.mrb[0].mxu0
  %v1850 = vadd.f32 %v1689, %v1849
  %v1851 = vpop.f32.mrb[0].mxu0
  %v1852 = vpop.f32.mrb[0].mxu0
  %v1853 = vadd.f32 %v1692, %v1852
  %v1854 = vpop.f32.mrb[0].mxu0
  %1855 = vmatprep.mubr.bf16.mxu0 %v707
  %1856 = vmatmul.mubr.bf16.gmra.mrb[0].mxu0 %v706
  %v1857 = vpop.f32.mrb[0].mxu0
  %v1858 = vadd.f32 %v1697, %v1857
  %v1859 = vpop.f32.mrb[0].mxu0
  %v1860 = vpop.f32.mrb[0].mxu0
  %v1861 = vadd.f32 %v1700, %v1860
  %v1862 = vpop.f32.mrb[0].mxu0
  %1863 = vmatprep.mubr.bf16.mxu0 %v715
  %1864 = vmatmul.mubr.bf16.gmra.mrb[0].mxu0 %v714
  %v1865 = vpop.f32.mrb[0].mxu0
  %v1866 = vadd.f32 %v1705, %v1865
  %v1867 = vpop.f32.mrb[0].mxu0
  %v1868 = vpop.f32.mrb[0].mxu0
  %v1869 = vadd.f32 %v1708, %v1868
  %v1870 = vpop.f32.mrb[0].mxu0
  %1871 = vmatprep.mubr.bf16.mxu0 %v723
  %1872 = vmatmul.mubr.bf16.gmra.mrb[0].mxu0 %v722
  %v1873 = vpop.f32.mrb[0].mxu0
  %v1874 = vadd.f32 %v1713, %v1873
  %v1875 = vpop.f32.mrb[0].mxu0
  %v1876 = vpop.f32.mrb[0].mxu0
  %v1877 = vadd.f32 %v1716, %v1876
  %v1878 = vpop.f32.mrb[0].mxu0
  %1879 = vmatprep.mubr.bf16.mxu0 %v731
  %1880 = vmatmul.mubr.bf16.gmra.mrb[0].mxu0 %v730
  %v1881 = vpop.f32.mrb[0].mxu0
  %v1882 = vadd.f32 %v1721, %v1881
  %v1883 = vpop.f32.mrb[0].mxu0
  %v1884 = vpop.f32.mrb[0].mxu0
  %v1885 = vadd.f32 %v1724, %v1884
  %v1886 = vpop.f32.mrb[0].mxu0
  %1887 = vmatprep.mubr.bf16.mxu0 %v739
  %1888 = vmatmul.mubr.bf16.gmra.mrb[0].mxu0 %v738
  %v1889 = vpop.f32.mrb[0].mxu0
  %v1890 = vadd.f32 %v1729, %v1889
  %v1891 = vpop.f32.mrb[0].mxu0
  %v1892 = vpop.f32.mrb[0].mxu0
  %v1893 = vadd.f32 %v1732, %v1892
  %v1894 = vpop.f32.mrb[0].mxu0
  %1895 = vmatprep.mubr.bf16.mxu0 %v747
  %1896 = vmatmul.mubr.bf16.gmra.mrb[0].mxu0 %v746
  %v1897 = vpop.f32.mrb[0].mxu0
  %v1898 = vadd.f32 %v1737, %v1897
  %v1899 = vpop.f32.mrb[0].mxu0
  %v1900 = vpop.f32.mrb[0].mxu0
  %v1901 = vadd.f32 %v1740, %v1900
  %v1902 = vpop.f32.mrb[0].mxu0
  %1903 = vmatprep.mubr.bf16.mxu0 %v755
  %1904 = vmatmul.mubr.bf16.gmra.mrb[0].mxu0 %v754
  %v1905 = vpop.f32.mrb[0].mxu0
  %v1906 = vadd.f32 %v1745, %v1905
  %v1907 = vpop.f32.mrb[0].mxu0
  %v1908 = vpop.f32.mrb[0].mxu0
  %v1909 = vadd.f32 %v1748, %v1908
  %v1910 = vpop.f32.mrb[0].mxu0
  %1911 = vmatprep.mubr.bf16.mxu0 %v763
  %1912 = vmatmul.mubr.bf16.gmra.mrb[0].mxu0 %v762
  %v1913 = vpop.f32.mrb[0].mxu0
  %v1914 = vadd.f32 %v1753, %v1913
  %v1915 = vpop.f32.mrb[0].mxu0
  %v1916 = vpop.f32.mrb[0].mxu0
  %v1917 = vadd.f32 %v1756, %v1916
  %v1918 = vpop.f32.mrb[0].mxu0
  %1919 = vmatprep.mubr.bf16.mxu0 %v771
  %1920 = vmatmul.mubr.bf16.gmra.mrb[0].mxu0 %v770
  %v1921 = vpop.f32.mrb[0].mxu0
  %v1922 = vadd.f32 %v1761, %v1921
  %v1923 = vpop.f32.mrb[0].mxu0
  %v1924 = vpop.f32.mrb[0].mxu0
  %v1925 = vadd.f32 %v1764, %v1924
  %v1926 = vpop.f32.mrb[0].mxu0
  %1927 = vmatprep.mubr.bf16.mxu0 %v779
  %1928 = vmatmul.mubr.bf16.gmra.mrb[0].mxu0 %v778
  %v1929 = vpop.f32.mrb[0].mxu0
  %v1930 = vadd.f32 %v1769, %v1929
  %v1931 = vpop.f32.mrb[0].mxu0
  %v1932 = vpop.f32.mrb[0].mxu0
  %v1933 = vadd.f32 %v1772, %v1932
  %v1934 = vpop.f32.mrb[0].mxu0
  %1935 = vdwg.mxu0
  %1936 = vst [vmem:[%s2] sm:$0xff] %v1810
  %1937 = vst [vmem:[%s2 + $0x8] sm:$0xff] %v1813
  %1938 = vst [vmem:[%s2 + $0x10] sm:$0xff] %v1818
  %1939 = vst [vmem:[%s2 + $0x18] sm:$0xff] %v1821
  %1940 = vst [vmem:[%s2 + $0x20] sm:$0xff] %v1826
  %1941 = vst [vmem:[%s2 + $0x28] sm:$0xff] %v1829
  %1942 = vst [vmem:[%s2 + $0x30] sm:$0xff] %v1834
  %1943 = vst [vmem:[%s2 + $0x38] sm:$0xff] %v1837
  %1944 = vst [vmem:[%s2 + $0x40] sm:$0xff] %v1842
  %1945 = vst [vmem:[%s2 + $0x48] sm:$0xff] %v1845
  %1946 = vst [vmem:[%s2 + $0x50] sm:$0xff] %v1850
  %1947 = vst [vmem:[%s2 + $0x58] sm:$0xff] %v1853
  %1948 = vst [vmem:[%s2 + $0x60] sm:$0xff] %v1858
  %1949 = vst [vmem:[%s2 + $0x68] sm:$0xff] %v1861
  %1950 = vst [vmem:[%s2 + $0x70] sm:$0xff] %v1866
  %1951 = vst [vmem:[%s2 + $0x78] sm:$0xff] %v1869
  %1952 = vst [vmem:[%s2 + $0x80] sm:$0xff] %v1874
  %1953 = vst [vmem:[%s2 + $0x88] sm:$0xff] %v1877
  %1954 = vst [vmem:[%s2 + $0x90] sm:$0xff] %v1882
  %1955 = vst [vmem:[%s2 + $0x98] sm:$0xff] %v1885
  %1956 = vst [vmem:[%s2 + $0xa0] sm:$0xff] %v1890
  %1957 = vst [vmem:[%s2 + $0xa8] sm:$0xff] %v1893
  %1958 = vst [vmem:[%s2 + $0xb0] sm:$0xff] %v1898
  %1959 = vst [vmem:[%s2 + $0xb8] sm:$0xff] %v1901
  %1960 = vst [vmem:[%s2 + $0xc0] sm:$0xff] %v1906
  %1961 = vst [vmem:[%s2 + $0xc8] sm:$0xff] %v1909
  %1962 = vst [vmem:[%s2 + $0xd0] sm:$0xff] %v1914
  %1963 = vst [vmem:[%s2 + $0xd8] sm:$0xff] %v1917
  %1964 = vst [vmem:[%s2 + $0xe0] sm:$0xff] %v1922
  %1965 = vst [vmem:[%s2 + $0xe8] sm:$0xff] %v1925
  %1966 = vst [vmem:[%s2 + $0xf0] sm:$0xff] %v1930
  %1967 = vst [vmem:[%s2 + $0xf8] sm:$0xff] %v1933
  // Predicated region
  $region10: #{cifar_discriminator_forward.8} parent=0 // pred_check
    _
  $region11: #{cifar_discriminator_forward.8} parent=0 // pred_check_branch
    %1969 = sbr.rel (0) target = $region13
  $region12: #{cifar_discriminator_forward.8} parent=0 // pred_region
    _
  $region13: #{cifar_discriminator_forward.8} parent=0 // pred_fallthru
    _
  // Predicated region
  $region14: #{cifar_discriminator_forward.8} parent=0 // pred_check
    _
  $region15: #{cifar_discriminator_forward.8} parent=0 // pred_check_branch
    %1971 = sbr.rel (0) target = $region17
  $region16: #{cifar_discriminator_forward.8} parent=0 // pred_region
    _
  $region17: #{cifar_discriminator_forward.8} parent=0 // pred_fallthru
    _

// kernel: cifar_discriminator_forward.11
$region0: #{cifar_discriminator_forward.11}
  #allocation0 [shape = 'u32[]', space=smem, size = 0x4, offset = 0x4, fixed_abs, tag = 'smem constant byte address 0x4 - core index']
  #allocation1 [shape = 'u32[144,128]{1,0:T(1,128)}', space=vmem, size = 0x12000, scoped, tag = 'internal scratch']
  %s0 = inlined_call_operand.vmem [shape: f32[128,128], index: 0, kind: input, shape index: {}]
  %s1 = inlined_call_operand.vmem [shape: f32[1,128], index: 1, kind: input, shape index: {}]
  %s2 = inlined_call_operand.vmem [shape: f32[1,128], index: 2, kind: input, shape index: {}]
  %s3 = inlined_call_operand.vmem [shape: bf16[128,128], index: 3, kind: output, shape index: {}]
  %s4 = sld [smem:[#allocation0]]
  $region22: #{cifar_discriminator_forward.11} parent=0
    _
  %s6 = ssub.s32 1, %s4
  %s7 = scalar_select 0, %s6, %s4
  // Predicated region
  $region2: #{cifar_discriminator_forward.11} parent=0 // pred_check
    _
  $region3: #{cifar_discriminator_forward.11} parent=0 // pred_check_branch
    %9 = sbr.rel (0) target = $region5
  $region4: #{cifar_discriminator_forward.11} parent=0 // pred_region
    _
  $region5: #{cifar_discriminator_forward.11} parent=0 // pred_fallthru
    _
  // Predicated region
  $region6: #{cifar_discriminator_forward.11} parent=0 // pred_check
    _
  $region7: #{cifar_discriminator_forward.11} parent=0 // pred_check_branch
    %11 = sbr.rel (0) target = $region9
  $region8: #{cifar_discriminator_forward.11} parent=0 // pred_region
    _
  $region9: #{cifar_discriminator_forward.11} parent=0 // pred_fallthru
    _
  // Predicated region
  $region10: #{cifar_discriminator_forward.11} parent=0 // pred_check
    _
  $region11: #{cifar_discriminator_forward.11} parent=0 // pred_check_branch
    %13 = sbr.rel (0) target = $region13
  $region12: #{cifar_discriminator_forward.11} parent=0 // pred_region
    _
  $region13: #{cifar_discriminator_forward.11} parent=0 // pred_fallthru
    _
  %v14 = vld [vmem:[%s0] sm:$0xff]
  %v15 = vld [vmem:[%s0 + $0x8] sm:$0xff]
  %v16 = vld [vmem:[%s0 + $0x10] sm:$0xff]
  %v17 = vld [vmem:[%s0 + $0x18] sm:$0xff]
  %v18 = vld [vmem:[%s0 + $0x20] sm:$0xff]
  %v19 = vld [vmem:[%s0 + $0x28] sm:$0xff]
  %v20 = vld [vmem:[%s0 + $0x30] sm:$0xff]
  %v21 = vld [vmem:[%s0 + $0x38] sm:$0xff]
  %v22 = vld [vmem:[%s0 + $0x40] sm:$0xff]
  %v23 = vld [vmem:[%s0 + $0x48] sm:$0xff]
  %v24 = vld [vmem:[%s0 + $0x50] sm:$0xff]
  %v25 = vld [vmem:[%s0 + $0x58] sm:$0xff]
  %v26 = vld [vmem:[%s0 + $0x60] sm:$0xff]
  %v27 = vld [vmem:[%s0 + $0x68] sm:$0xff]
  %v28 = vld [vmem:[%s0 + $0x70] sm:$0xff]
  %v29 = vld [vmem:[%s0 + $0x78] sm:$0xff]
  %v30 = vld [vmem:[%s1] sm:$0x1]
  %v32 = vlaneseq
  %v33 = vshrl.u32 %v32, 7
  %v34 = vsub.s32 0, %v33
  %v35 = vrot.slane %v30, %v34
  %v37 = vmul.f32 %v14, %v35
  %v38 = vmul.f32 %v15, %v35
  %v39 = vmul.f32 %v16, %v35
  %v40 = vmul.f32 %v17, %v35
  %v41 = vmul.f32 %v18, %v35
  %v42 = vmul.f32 %v19, %v35
  %v43 = vmul.f32 %v20, %v35
  %v44 = vmul.f32 %v21, %v35
  %v45 = vmul.f32 %v22, %v35
  %v46 = vmul.f32 %v23, %v35
  %v47 = vmul.f32 %v24, %v35
  %v48 = vmul.f32 %v25, %v35
  %v49 = vmul.f32 %v26, %v35
  %v50 = vmul.f32 %v27, %v35
  %v51 = vmul.f32 %v28, %v35
  %v52 = vmul.f32 %v29, %v35
  %v53 = vld [vmem:[%s2] sm:$0x1]
  %v55 = vlaneseq
  %v56 = vshrl.u32 %v55, 7
  %v57 = vsub.s32 0, %v56
  %v58 = vrot.slane %v53, %v57
  %v60 = vadd.f32 %v37, %v58
  %v61 = vadd.f32 %v38, %v58
  %v62 = vadd.f32 %v39, %v58
  %v63 = vadd.f32 %v40, %v58
  %v64 = vadd.f32 %v41, %v58
  %v65 = vadd.f32 %v42, %v58
  %v66 = vadd.f32 %v43, %v58
  %v67 = vadd.f32 %v44, %v58
  %v68 = vadd.f32 %v45, %v58
  %v69 = vadd.f32 %v46, %v58
  %v70 = vadd.f32 %v47, %v58
  %v71 = vadd.f32 %v48, %v58
  %v72 = vadd.f32 %v49, %v58
  %v73 = vadd.f32 %v50, %v58
  %v74 = vadd.f32 %v51, %v58
  %v75 = vadd.f32 %v52, %v58
  %vm76 = vcmp.gt.f32.partialorder %v60, 0.0
  %vm77 = vcmp.gt.f32.partialorder %v61, 0.0
  %vm78 = vcmp.gt.f32.partialorder %v62, 0.0
  %vm79 = vcmp.gt.f32.partialorder %v63, 0.0
  %vm80 = vcmp.gt.f32.partialorder %v64, 0.0
  %vm81 = vcmp.gt.f32.partialorder %v65, 0.0
  %vm82 = vcmp.gt.f32.partialorder %v66, 0.0
  %vm83 = vcmp.gt.f32.partialorder %v67, 0.0
  %vm84 = vcmp.gt.f32.partialorder %v68, 0.0
  %vm85 = vcmp.gt.f32.partialorder %v69, 0.0
  %vm86 = vcmp.gt.f32.partialorder %v70, 0.0
  %vm87 = vcmp.gt.f32.partialorder %v71, 0.0
  %vm88 = vcmp.gt.f32.partialorder %v72, 0.0
  %vm89 = vcmp.gt.f32.partialorder %v73, 0.0
  %vm90 = vcmp.gt.f32.partialorder %v74, 0.0
  %vm91 = vcmp.gt.f32.partialorder %v75, 0.0
  %v92 = vmul.f32 %v60, 0.2
  %v93 = vmul.f32 %v61, 0.2
  %v94 = vmul.f32 %v62, 0.2
  %v95 = vmul.f32 %v63, 0.2
  %v96 = vmul.f32 %v64, 0.2
  %v97 = vmul.f32 %v65, 0.2
  %v98 = vmul.f32 %v66, 0.2
  %v99 = vmul.f32 %v67, 0.2
  %v100 = vmul.f32 %v68, 0.2
  %v101 = vmul.f32 %v69, 0.2
  %v102 = vmul.f32 %v70, 0.2
  %v103 = vmul.f32 %v71, 0.2
  %v104 = vmul.f32 %v72, 0.2
  %v105 = vmul.f32 %v73, 0.2
  %v106 = vmul.f32 %v74, 0.2
  %v107 = vmul.f32 %v75, 0.2
  %v108 = vsel %vm76, %v60, %v92
  %v109 = vsel %vm77, %v61, %v93
  %v110 = vsel %vm78, %v62, %v94
  %v111 = vsel %vm79, %v63, %v95
  %v112 = vsel %vm80, %v64, %v96
  %v113 = vsel %vm81, %v65, %v97
  %v114 = vsel %vm82, %v66, %v98
  %v115 = vsel %vm83, %v67, %v99
  %v116 = vsel %vm84, %v68, %v100
  %v117 = vsel %vm85, %v69, %v101
  %v118 = vsel %vm86, %v70, %v102
  %v119 = vsel %vm87, %v71, %v103
  %v120 = vsel %vm88, %v72, %v104
  %v121 = vsel %vm89, %v73, %v105
  %v122 = vsel %vm90, %v74, %v106
  %v123 = vsel %vm91, %v75, %v107
  %v124 = vpack.c.bf16 %v109, %v108
  %v125 = vpack.c.bf16 %v111, %v110
  %v126 = vpack.c.bf16 %v113, %v112
  %v127 = vpack.c.bf16 %v115, %v114
  %v128 = vpack.c.bf16 %v117, %v116
  %v129 = vpack.c.bf16 %v119, %v118
  %v130 = vpack.c.bf16 %v121, %v120
  %v131 = vpack.c.bf16 %v123, %v122
  %v140 = vunpack.c.l.b16 %v124
  %v141 = vunpack.c.h.b16 %v124
  %v142 = vunpack.c.l.b16 %v125
  %v143 = vunpack.c.h.b16 %v125
  %v144 = vunpack.c.l.b16 %v126
  %v145 = vunpack.c.h.b16 %v126
  %v146 = vunpack.c.l.b16 %v127
  %v147 = vunpack.c.h.b16 %v127
  %v148 = vunpack.c.l.b16 %v128
  %v149 = vunpack.c.h.b16 %v128
  %v150 = vunpack.c.l.b16 %v129
  %v151 = vunpack.c.h.b16 %v129
  %v152 = vunpack.c.l.b16 %v130
  %v153 = vunpack.c.h.b16 %v130
  %v154 = vunpack.c.l.b16 %v131
  %v155 = vunpack.c.h.b16 %v131
  %v156 = vpack.c.b16 %v140, %v140
  %v157 = vpack.c.b16 %v141, %v141
  %v158 = vpack.c.b16 %v142, %v142
  %v159 = vpack.c.b16 %v143, %v143
  %v160 = vpack.c.b16 %v144, %v144
  %v161 = vpack.c.b16 %v145, %v145
  %v162 = vpack.c.b16 %v146, %v146
  %v163 = vpack.c.b16 %v147, %v147
  %v164 = vpack.c.b16 %v148, %v148
  %v165 = vpack.c.b16 %v149, %v149
  %v166 = vpack.c.b16 %v150, %v150
  %v167 = vpack.c.b16 %v151, %v151
  %v168 = vpack.c.b16 %v152, %v152
  %v169 = vpack.c.b16 %v153, %v153
  %v170 = vpack.c.b16 %v154, %v154
  %v171 = vpack.c.b16 %v155, %v155
  %188 = vst [vmem:[%s3] sm:$0xf] %v156
  %189 = vst [vmem:[%s3 + $0x4] sm:$0xf] %v157
  %190 = vst [vmem:[%s3 + $0x8] sm:$0xf] %v158
  %191 = vst [vmem:[%s3 + $0xc] sm:$0xf] %v159
  %192 = vst [vmem:[%s3 + $0x10] sm:$0xf] %v160
  %193 = vst [vmem:[%s3 + $0x14] sm:$0xf] %v161
  %194 = vst [vmem:[%s3 + $0x18] sm:$0xf] %v162
  %195 = vst [vmem:[%s3 + $0x1c] sm:$0xf] %v163
  %196 = vst [vmem:[%s3 + $0x20] sm:$0xf] %v164
  %197 = vst [vmem:[%s3 + $0x24] sm:$0xf] %v165
  %198 = vst [vmem:[%s3 + $0x28] sm:$0xf] %v166
  %199 = vst [vmem:[%s3 + $0x2c] sm:$0xf] %v167
  %200 = vst [vmem:[%s3 + $0x30] sm:$0xf] %v168
  %201 = vst [vmem:[%s3 + $0x34] sm:$0xf] %v169
  %202 = vst [vmem:[%s3 + $0x38] sm:$0xf] %v170
  %203 = vst [vmem:[%s3 + $0x3c] sm:$0xf] %v171
  // Predicated region
  $region14: #{cifar_discriminator_forward.11} parent=0 // pred_check
    _
  $region15: #{cifar_discriminator_forward.11} parent=0 // pred_check_branch
    %205 = sbr.rel (0) target = $region17
  $region16: #{cifar_discriminator_forward.11} parent=0 // pred_region
    _
  $region17: #{cifar_discriminator_forward.11} parent=0 // pred_fallthru
    _
  // Predicated region
  $region18: #{cifar_discriminator_forward.11} parent=0 // pred_check
    _
  $region19: #{cifar_discriminator_forward.11} parent=0 // pred_check_branch
    %207 = sbr.rel (0) target = $region21
  $region20: #{cifar_discriminator_forward.11} parent=0 // pred_region
    _
  $region21: #{cifar_discriminator_forward.11} parent=0 // pred_fallthru
    _

// kernel: cifar_discriminator_forward.10
$region0: #{cifar_discriminator_forward.10}
  #allocation0 [shape = 'u32[]', space=smem, size = 0x4, offset = 0x4, fixed_abs, tag = 'smem constant byte address 0x4 - core index']
  #allocation1 [shape = 'u32[144,128]{1,0:T(1,128)}', space=vmem, size = 0x12000, scoped, tag = 'internal scratch']
  %s0 = inlined_call_operand.vmem [shape: bf16[128,1024], index: 0, kind: input, shape index: {}]
  %s1 = inlined_call_operand.vmem [shape: bf16[1024,128], index: 1, kind: input, shape index: {}]
  %s2 = inlined_call_operand.vmem [shape: f32[128,128], index: 2, kind: output, shape index: {}]
  %s3 = sld [smem:[#allocation0]]
  $region18: #{cifar_discriminator_forward.10} parent=0
    _
  %s5 = ssub.s32 1, %s3
  %s6 = scalar_select 0, %s5, %s3
  // Predicated region
  $region2: #{cifar_discriminator_forward.10} parent=0 // pred_check
    _
  $region3: #{cifar_discriminator_forward.10} parent=0 // pred_check_branch
    %8 = sbr.rel (0) target = $region5
  $region4: #{cifar_discriminator_forward.10} parent=0 // pred_region
    _
  $region5: #{cifar_discriminator_forward.10} parent=0 // pred_fallthru
    _
  // Predicated region
  $region6: #{cifar_discriminator_forward.10} parent=0 // pred_check
    _
  $region7: #{cifar_discriminator_forward.10} parent=0 // pred_check_branch
    %10 = sbr.rel (0) target = $region9
  $region8: #{cifar_discriminator_forward.10} parent=0 // pred_region
    _
  $region9: #{cifar_discriminator_forward.10} parent=0 // pred_fallthru
    _
  %v12 = vld [vmem:[%s0] sm:$0xff]
  %v13 = vld [vmem:[%s0 + $0x8] sm:$0xff]
  %v14 = vld [vmem:[%s0 + $0x10] sm:$0xff]
  %v15 = vld [vmem:[%s0 + $0x18] sm:$0xff]
  %v16 = vld [vmem:[%s0 + $0x20] sm:$0xff]
  %v17 = vld [vmem:[%s0 + $0x28] sm:$0xff]
  %v18 = vld [vmem:[%s0 + $0x30] sm:$0xff]
  %v19 = vld [vmem:[%s0 + $0x38] sm:$0xff]
  %v20 = vld [vmem:[%s0 + $0x40] sm:$0xff]
  %v21 = vld [vmem:[%s0 + $0x48] sm:$0xff]
  %v22 = vld [vmem:[%s0 + $0x50] sm:$0xff]
  %v23 = vld [vmem:[%s0 + $0x58] sm:$0xff]
  %v24 = vld [vmem:[%s0 + $0x60] sm:$0xff]
  %v25 = vld [vmem:[%s0 + $0x68] sm:$0xff]
  %v26 = vld [vmem:[%s0 + $0x70] sm:$0xff]
  %v27 = vld [vmem:[%s0 + $0x78] sm:$0xff]
  %v28 = vld [vmem:[%s0 + $0x80] sm:$0xff]
  %v29 = vld [vmem:[%s0 + $0x88] sm:$0xff]
  %v30 = vld [vmem:[%s0 + $0x90] sm:$0xff]
  %v31 = vld [vmem:[%s0 + $0x98] sm:$0xff]
  %v32 = vld [vmem:[%s0 + $0xa0] sm:$0xff]
  %v33 = vld [vmem:[%s0 + $0xa8] sm:$0xff]
  %v34 = vld [vmem:[%s0 + $0xb0] sm:$0xff]
  %v35 = vld [vmem:[%s0 + $0xb8] sm:$0xff]
  %v36 = vld [vmem:[%s0 + $0xc0] sm:$0xff]
  %v37 = vld [vmem:[%s0 + $0xc8] sm:$0xff]
  %v38 = vld [vmem:[%s0 + $0xd0] sm:$0xff]
  %v39 = vld [vmem:[%s0 + $0xd8] sm:$0xff]
  %v40 = vld [vmem:[%s0 + $0xe0] sm:$0xff]
  %v41 = vld [vmem:[%s0 + $0xe8] sm:$0xff]
  %v42 = vld [vmem:[%s0 + $0xf0] sm:$0xff]
  %v43 = vld [vmem:[%s0 + $0xf8] sm:$0xff]
  %v44 = vld [vmem:[%s0 + $0x100] sm:$0xff]
  %v45 = vld [vmem:[%s0 + $0x108] sm:$0xff]
  %v46 = vld [vmem:[%s0 + $0x110] sm:$0xff]
  %v47 = vld [vmem:[%s0 + $0x118] sm:$0xff]
  %v48 = vld [vmem:[%s0 + $0x120] sm:$0xff]
  %v49 = vld [vmem:[%s0 + $0x128] sm:$0xff]
  %v50 = vld [vmem:[%s0 + $0x130] sm:$0xff]
  %v51 = vld [vmem:[%s0 + $0x138] sm:$0xff]
  %v52 = vld [vmem:[%s0 + $0x140] sm:$0xff]
  %v53 = vld [vmem:[%s0 + $0x148] sm:$0xff]
  %v54 = vld [vmem:[%s0 + $0x150] sm:$0xff]
  %v55 = vld [vmem:[%s0 + $0x158] sm:$0xff]
  %v56 = vld [vmem:[%s0 + $0x160] sm:$0xff]
  %v57 = vld [vmem:[%s0 + $0x168] sm:$0xff]
  %v58 = vld [vmem:[%s0 + $0x170] sm:$0xff]
  %v59 = vld [vmem:[%s0 + $0x178] sm:$0xff]
  %v60 = vld [vmem:[%s0 + $0x180] sm:$0xff]
  %v61 = vld [vmem:[%s0 + $0x188] sm:$0xff]
  %v62 = vld [vmem:[%s0 + $0x190] sm:$0xff]
  %v63 = vld [vmem:[%s0 + $0x198] sm:$0xff]
  %v64 = vld [vmem:[%s0 + $0x1a0] sm:$0xff]
  %v65 = vld [vmem:[%s0 + $0x1a8] sm:$0xff]
  %v66 = vld [vmem:[%s0 + $0x1b0] sm:$0xff]
  %v67 = vld [vmem:[%s0 + $0x1b8] sm:$0xff]
  %v68 = vld [vmem:[%s0 + $0x1c0] sm:$0xff]
  %v69 = vld [vmem:[%s0 + $0x1c8] sm:$0xff]
  %v70 = vld [vmem:[%s0 + $0x1d0] sm:$0xff]
  %v71 = vld [vmem:[%s0 + $0x1d8] sm:$0xff]
  %v72 = vld [vmem:[%s0 + $0x1e0] sm:$0xff]
  %v73 = vld [vmem:[%s0 + $0x1e8] sm:$0xff]
  %v74 = vld [vmem:[%s0 + $0x1f0] sm:$0xff]
  %v75 = vld [vmem:[%s0 + $0x1f8] sm:$0xff]
  %v76 = vld [vmem:[%s1] sm:$0xf]
  %v77 = vld [vmem:[%s1 + $0x4] sm:$0xf]
  %v78 = vld [vmem:[%s1 + $0x8] sm:$0xf]
  %v79 = vld [vmem:[%s1 + $0xc] sm:$0xf]
  %v80 = vld [vmem:[%s1 + $0x10] sm:$0xf]
  %v81 = vld [vmem:[%s1 + $0x14] sm:$0xf]
  %v82 = vld [vmem:[%s1 + $0x18] sm:$0xf]
  %v83 = vld [vmem:[%s1 + $0x1c] sm:$0xf]
  %v84 = vld [vmem:[%s1 + $0x20] sm:$0xf]
  %v85 = vld [vmem:[%s1 + $0x24] sm:$0xf]
  %v86 = vld [vmem:[%s1 + $0x28] sm:$0xf]
  %v87 = vld [vmem:[%s1 + $0x2c] sm:$0xf]
  %v88 = vld [vmem:[%s1 + $0x30] sm:$0xf]
  %v89 = vld [vmem:[%s1 + $0x34] sm:$0xf]
  %v90 = vld [vmem:[%s1 + $0x38] sm:$0xf]
  %v91 = vld [vmem:[%s1 + $0x3c] sm:$0xf]
  %v92 = vld [vmem:[%s1 + $0x40] sm:$0xf]
  %v93 = vld [vmem:[%s1 + $0x44] sm:$0xf]
  %v94 = vld [vmem:[%s1 + $0x48] sm:$0xf]
  %v95 = vld [vmem:[%s1 + $0x4c] sm:$0xf]
  %v96 = vld [vmem:[%s1 + $0x50] sm:$0xf]
  %v97 = vld [vmem:[%s1 + $0x54] sm:$0xf]
  %v98 = vld [vmem:[%s1 + $0x58] sm:$0xf]
  %v99 = vld [vmem:[%s1 + $0x5c] sm:$0xf]
  %v100 = vld [vmem:[%s1 + $0x60] sm:$0xf]
  %v101 = vld [vmem:[%s1 + $0x64] sm:$0xf]
  %v102 = vld [vmem:[%s1 + $0x68] sm:$0xf]
  %v103 = vld [vmem:[%s1 + $0x6c] sm:$0xf]
  %v104 = vld [vmem:[%s1 + $0x70] sm:$0xf]
  %v105 = vld [vmem:[%s1 + $0x74] sm:$0xf]
  %v106 = vld [vmem:[%s1 + $0x78] sm:$0xf]
  %v107 = vld [vmem:[%s1 + $0x7c] sm:$0xf]
  %v108 = vld [vmem:[%s1 + $0x80] sm:$0xf]
  %v109 = vld [vmem:[%s1 + $0x84] sm:$0xf]
  %v110 = vld [vmem:[%s1 + $0x88] sm:$0xf]
  %v111 = vld [vmem:[%s1 + $0x8c] sm:$0xf]
  %v112 = vld [vmem:[%s1 + $0x90] sm:$0xf]
  %v113 = vld [vmem:[%s1 + $0x94] sm:$0xf]
  %v114 = vld [vmem:[%s1 + $0x98] sm:$0xf]
  %v115 = vld [vmem:[%s1 + $0x9c] sm:$0xf]
  %v116 = vld [vmem:[%s1 + $0xa0] sm:$0xf]
  %v117 = vld [vmem:[%s1 + $0xa4] sm:$0xf]
  %v118 = vld [vmem:[%s1 + $0xa8] sm:$0xf]
  %v119 = vld [vmem:[%s1 + $0xac] sm:$0xf]
  %v120 = vld [vmem:[%s1 + $0xb0] sm:$0xf]
  %v121 = vld [vmem:[%s1 + $0xb4] sm:$0xf]
  %v122 = vld [vmem:[%s1 + $0xb8] sm:$0xf]
  %v123 = vld [vmem:[%s1 + $0xbc] sm:$0xf]
  %v124 = vld [vmem:[%s1 + $0xc0] sm:$0xf]
  %v125 = vld [vmem:[%s1 + $0xc4] sm:$0xf]
  %v126 = vld [vmem:[%s1 + $0xc8] sm:$0xf]
  %v127 = vld [vmem:[%s1 + $0xcc] sm:$0xf]
  %v128 = vld [vmem:[%s1 + $0xd0] sm:$0xf]
  %v129 = vld [vmem:[%s1 + $0xd4] sm:$0xf]
  %v130 = vld [vmem:[%s1 + $0xd8] sm:$0xf]
  %v131 = vld [vmem:[%s1 + $0xdc] sm:$0xf]
  %v132 = vld [vmem:[%s1 + $0xe0] sm:$0xf]
  %v133 = vld [vmem:[%s1 + $0xe4] sm:$0xf]
  %v134 = vld [vmem:[%s1 + $0xe8] sm:$0xf]
  %v135 = vld [vmem:[%s1 + $0xec] sm:$0xf]
  %v136 = vld [vmem:[%s1 + $0xf0] sm:$0xf]
  %v137 = vld [vmem:[%s1 + $0xf4] sm:$0xf]
  %v138 = vld [vmem:[%s1 + $0xf8] sm:$0xf]
  %v139 = vld [vmem:[%s1 + $0xfc] sm:$0xf]
  %v140 = vld [vmem:[%s1 + $0x100] sm:$0xf]
  %v141 = vld [vmem:[%s1 + $0x104] sm:$0xf]
  %v142 = vld [vmem:[%s1 + $0x108] sm:$0xf]
  %v143 = vld [vmem:[%s1 + $0x10c] sm:$0xf]
  %v144 = vld [vmem:[%s1 + $0x110] sm:$0xf]
  %v145 = vld [vmem:[%s1 + $0x114] sm:$0xf]
  %v146 = vld [vmem:[%s1 + $0x118] sm:$0xf]
  %v147 = vld [vmem:[%s1 + $0x11c] sm:$0xf]
  %v148 = vld [vmem:[%s1 + $0x120] sm:$0xf]
  %v149 = vld [vmem:[%s1 + $0x124] sm:$0xf]
  %v150 = vld [vmem:[%s1 + $0x128] sm:$0xf]
  %v151 = vld [vmem:[%s1 + $0x12c] sm:$0xf]
  %v152 = vld [vmem:[%s1 + $0x130] sm:$0xf]
  %v153 = vld [vmem:[%s1 + $0x134] sm:$0xf]
  %v154 = vld [vmem:[%s1 + $0x138] sm:$0xf]
  %v155 = vld [vmem:[%s1 + $0x13c] sm:$0xf]
  %v156 = vld [vmem:[%s1 + $0x140] sm:$0xf]
  %v157 = vld [vmem:[%s1 + $0x144] sm:$0xf]
  %v158 = vld [vmem:[%s1 + $0x148] sm:$0xf]
  %v159 = vld [vmem:[%s1 + $0x14c] sm:$0xf]
  %v160 = vld [vmem:[%s1 + $0x150] sm:$0xf]
  %v161 = vld [vmem:[%s1 + $0x154] sm:$0xf]
  %v162 = vld [vmem:[%s1 + $0x158] sm:$0xf]
  %v163 = vld [vmem:[%s1 + $0x15c] sm:$0xf]
  %v164 = vld [vmem:[%s1 + $0x160] sm:$0xf]
  %v165 = vld [vmem:[%s1 + $0x164] sm:$0xf]
  %v166 = vld [vmem:[%s1 + $0x168] sm:$0xf]
  %v167 = vld [vmem:[%s1 + $0x16c] sm:$0xf]
  %v168 = vld [vmem:[%s1 + $0x170] sm:$0xf]
  %v169 = vld [vmem:[%s1 + $0x174] sm:$0xf]
  %v170 = vld [vmem:[%s1 + $0x178] sm:$0xf]
  %v171 = vld [vmem:[%s1 + $0x17c] sm:$0xf]
  %v172 = vld [vmem:[%s1 + $0x180] sm:$0xf]
  %v173 = vld [vmem:[%s1 + $0x184] sm:$0xf]
  %v174 = vld [vmem:[%s1 + $0x188] sm:$0xf]
  %v175 = vld [vmem:[%s1 + $0x18c] sm:$0xf]
  %v176 = vld [vmem:[%s1 + $0x190] sm:$0xf]
  %v177 = vld [vmem:[%s1 + $0x194] sm:$0xf]
  %v178 = vld [vmem:[%s1 + $0x198] sm:$0xf]
  %v179 = vld [vmem:[%s1 + $0x19c] sm:$0xf]
  %v180 = vld [vmem:[%s1 + $0x1a0] sm:$0xf]
  %v181 = vld [vmem:[%s1 + $0x1a4] sm:$0xf]
  %v182 = vld [vmem:[%s1 + $0x1a8] sm:$0xf]
  %v183 = vld [vmem:[%s1 + $0x1ac] sm:$0xf]
  %v184 = vld [vmem:[%s1 + $0x1b0] sm:$0xf]
  %v185 = vld [vmem:[%s1 + $0x1b4] sm:$0xf]
  %v186 = vld [vmem:[%s1 + $0x1b8] sm:$0xf]
  %v187 = vld [vmem:[%s1 + $0x1bc] sm:$0xf]
  %v188 = vld [vmem:[%s1 + $0x1c0] sm:$0xf]
  %v189 = vld [vmem:[%s1 + $0x1c4] sm:$0xf]
  %v190 = vld [vmem:[%s1 + $0x1c8] sm:$0xf]
  %v191 = vld [vmem:[%s1 + $0x1cc] sm:$0xf]
  %v192 = vld [vmem:[%s1 + $0x1d0] sm:$0xf]
  %v193 = vld [vmem:[%s1 + $0x1d4] sm:$0xf]
  %v194 = vld [vmem:[%s1 + $0x1d8] sm:$0xf]
  %v195 = vld [vmem:[%s1 + $0x1dc] sm:$0xf]
  %v196 = vld [vmem:[%s1 + $0x1e0] sm:$0xf]
  %v197 = vld [vmem:[%s1 + $0x1e4] sm:$0xf]
  %v198 = vld [vmem:[%s1 + $0x1e8] sm:$0xf]
  %v199 = vld [vmem:[%s1 + $0x1ec] sm:$0xf]
  %v200 = vld [vmem:[%s1 + $0x1f0] sm:$0xf]
  %v201 = vld [vmem:[%s1 + $0x1f4] sm:$0xf]
  %v202 = vld [vmem:[%s1 + $0x1f8] sm:$0xf]
  %v203 = vld [vmem:[%s1 + $0x1fc] sm:$0xf]
  %v268 = vunpack.c.l.b16 %v12
  %v269 = vunpack.c.h.b16 %v12
  %v270 = vunpack.c.l.b16 %v13
  %v271 = vunpack.c.h.b16 %v13
  %v272 = vunpack.c.l.b16 %v14
  %v273 = vunpack.c.h.b16 %v14
  %v274 = vunpack.c.l.b16 %v15
  %v275 = vunpack.c.h.b16 %v15
  %v276 = vunpack.c.l.b16 %v16
  %v277 = vunpack.c.h.b16 %v16
  %v278 = vunpack.c.l.b16 %v17
  %v279 = vunpack.c.h.b16 %v17
  %v280 = vunpack.c.l.b16 %v18
  %v281 = vunpack.c.h.b16 %v18
  %v282 = vunpack.c.l.b16 %v19
  %v283 = vunpack.c.h.b16 %v19
  %v284 = vunpack.c.l.b16 %v20
  %v285 = vunpack.c.h.b16 %v20
  %v286 = vunpack.c.l.b16 %v21
  %v287 = vunpack.c.h.b16 %v21
  %v288 = vunpack.c.l.b16 %v22
  %v289 = vunpack.c.h.b16 %v22
  %v290 = vunpack.c.l.b16 %v23
  %v291 = vunpack.c.h.b16 %v23
  %v292 = vunpack.c.l.b16 %v24
  %v293 = vunpack.c.h.b16 %v24
  %v294 = vunpack.c.l.b16 %v25
  %v295 = vunpack.c.h.b16 %v25
  %v296 = vunpack.c.l.b16 %v26
  %v297 = vunpack.c.h.b16 %v26
  %v298 = vunpack.c.l.b16 %v27
  %v299 = vunpack.c.h.b16 %v27
  %v300 = vunpack.c.l.b16 %v28
  %v301 = vunpack.c.h.b16 %v28
  %v302 = vunpack.c.l.b16 %v29
  %v303 = vunpack.c.h.b16 %v29
  %v304 = vunpack.c.l.b16 %v30
  %v305 = vunpack.c.h.b16 %v30
  %v306 = vunpack.c.l.b16 %v31
  %v307 = vunpack.c.h.b16 %v31
  %v308 = vunpack.c.l.b16 %v32
  %v309 = vunpack.c.h.b16 %v32
  %v310 = vunpack.c.l.b16 %v33
  %v311 = vunpack.c.h.b16 %v33
  %v312 = vunpack.c.l.b16 %v34
  %v313 = vunpack.c.h.b16 %v34
  %v314 = vunpack.c.l.b16 %v35
  %v315 = vunpack.c.h.b16 %v35
  %v316 = vunpack.c.l.b16 %v36
  %v317 = vunpack.c.h.b16 %v36
  %v318 = vunpack.c.l.b16 %v37
  %v319 = vunpack.c.h.b16 %v37
  %v320 = vunpack.c.l.b16 %v38
  %v321 = vunpack.c.h.b16 %v38
  %v322 = vunpack.c.l.b16 %v39
  %v323 = vunpack.c.h.b16 %v39
  %v324 = vunpack.c.l.b16 %v40
  %v325 = vunpack.c.h.b16 %v40
  %v326 = vunpack.c.l.b16 %v41
  %v327 = vunpack.c.h.b16 %v41
  %v328 = vunpack.c.l.b16 %v42
  %v329 = vunpack.c.h.b16 %v42
  %v330 = vunpack.c.l.b16 %v43
  %v331 = vunpack.c.h.b16 %v43
  %v332 = vunpack.c.l.b16 %v44
  %v333 = vunpack.c.h.b16 %v44
  %v334 = vunpack.c.l.b16 %v45
  %v335 = vunpack.c.h.b16 %v45
  %v336 = vunpack.c.l.b16 %v46
  %v337 = vunpack.c.h.b16 %v46
  %v338 = vunpack.c.l.b16 %v47
  %v339 = vunpack.c.h.b16 %v47
  %v340 = vunpack.c.l.b16 %v48
  %v341 = vunpack.c.h.b16 %v48
  %v342 = vunpack.c.l.b16 %v49
  %v343 = vunpack.c.h.b16 %v49
  %v344 = vunpack.c.l.b16 %v50
  %v345 = vunpack.c.h.b16 %v50
  %v346 = vunpack.c.l.b16 %v51
  %v347 = vunpack.c.h.b16 %v51
  %v348 = vunpack.c.l.b16 %v52
  %v349 = vunpack.c.h.b16 %v52
  %v350 = vunpack.c.l.b16 %v53
  %v351 = vunpack.c.h.b16 %v53
  %v352 = vunpack.c.l.b16 %v54
  %v353 = vunpack.c.h.b16 %v54
  %v354 = vunpack.c.l.b16 %v55
  %v355 = vunpack.c.h.b16 %v55
  %v356 = vunpack.c.l.b16 %v56
  %v357 = vunpack.c.h.b16 %v56
  %v358 = vunpack.c.l.b16 %v57
  %v359 = vunpack.c.h.b16 %v57
  %v360 = vunpack.c.l.b16 %v58
  %v361 = vunpack.c.h.b16 %v58
  %v362 = vunpack.c.l.b16 %v59
  %v363 = vunpack.c.h.b16 %v59
  %v364 = vunpack.c.l.b16 %v60
  %v365 = vunpack.c.h.b16 %v60
  %v366 = vunpack.c.l.b16 %v61
  %v367 = vunpack.c.h.b16 %v61
  %v368 = vunpack.c.l.b16 %v62
  %v369 = vunpack.c.h.b16 %v62
  %v370 = vunpack.c.l.b16 %v63
  %v371 = vunpack.c.h.b16 %v63
  %v372 = vunpack.c.l.b16 %v64
  %v373 = vunpack.c.h.b16 %v64
  %v374 = vunpack.c.l.b16 %v65
  %v375 = vunpack.c.h.b16 %v65
  %v376 = vunpack.c.l.b16 %v66
  %v377 = vunpack.c.h.b16 %v66
  %v378 = vunpack.c.l.b16 %v67
  %v379 = vunpack.c.h.b16 %v67
  %v380 = vunpack.c.l.b16 %v68
  %v381 = vunpack.c.h.b16 %v68
  %v382 = vunpack.c.l.b16 %v69
  %v383 = vunpack.c.h.b16 %v69
  %v384 = vunpack.c.l.b16 %v70
  %v385 = vunpack.c.h.b16 %v70
  %v386 = vunpack.c.l.b16 %v71
  %v387 = vunpack.c.h.b16 %v71
  %v388 = vunpack.c.l.b16 %v72
  %v389 = vunpack.c.h.b16 %v72
  %v390 = vunpack.c.l.b16 %v73
  %v391 = vunpack.c.h.b16 %v73
  %v392 = vunpack.c.l.b16 %v74
  %v393 = vunpack.c.h.b16 %v74
  %v394 = vunpack.c.l.b16 %v75
  %v395 = vunpack.c.h.b16 %v75
  %v396 = vpack.c.b16 %v276, %v268
  %v397 = vpack.c.b16 %v277, %v269
  %v398 = vpack.c.b16 %v278, %v270
  %v399 = vpack.c.b16 %v279, %v271
  %v400 = vpack.c.b16 %v280, %v272
  %v401 = vpack.c.b16 %v281, %v273
  %v402 = vpack.c.b16 %v282, %v274
  %v403 = vpack.c.b16 %v283, %v275
  %v404 = vpack.c.b16 %v292, %v284
  %v405 = vpack.c.b16 %v293, %v285
  %v406 = vpack.c.b16 %v294, %v286
  %v407 = vpack.c.b16 %v295, %v287
  %v408 = vpack.c.b16 %v296, %v288
  %v409 = vpack.c.b16 %v297, %v289
  %v410 = vpack.c.b16 %v298, %v290
  %v411 = vpack.c.b16 %v299, %v291
  %v412 = vpack.c.b16 %v308, %v300
  %v413 = vpack.c.b16 %v309, %v301
  %v414 = vpack.c.b16 %v310, %v302
  %v415 = vpack.c.b16 %v311, %v303
  %v416 = vpack.c.b16 %v312, %v304
  %v417 = vpack.c.b16 %v313, %v305
  %v418 = vpack.c.b16 %v314, %v306
  %v419 = vpack.c.b16 %v315, %v307
  %v420 = vpack.c.b16 %v324, %v316
  %v421 = vpack.c.b16 %v325, %v317
  %v422 = vpack.c.b16 %v326, %v318
  %v423 = vpack.c.b16 %v327, %v319
  %v424 = vpack.c.b16 %v328, %v320
  %v425 = vpack.c.b16 %v329, %v321
  %v426 = vpack.c.b16 %v330, %v322
  %v427 = vpack.c.b16 %v331, %v323
  %v428 = vpack.c.b16 %v340, %v332
  %v429 = vpack.c.b16 %v341, %v333
  %v430 = vpack.c.b16 %v342, %v334
  %v431 = vpack.c.b16 %v343, %v335
  %v432 = vpack.c.b16 %v344, %v336
  %v433 = vpack.c.b16 %v345, %v337
  %v434 = vpack.c.b16 %v346, %v338
  %v435 = vpack.c.b16 %v347, %v339
  %v436 = vpack.c.b16 %v356, %v348
  %v437 = vpack.c.b16 %v357, %v349
  %v438 = vpack.c.b16 %v358, %v350
  %v439 = vpack.c.b16 %v359, %v351
  %v440 = vpack.c.b16 %v360, %v352
  %v441 = vpack.c.b16 %v361, %v353
  %v442 = vpack.c.b16 %v362, %v354
  %v443 = vpack.c.b16 %v363, %v355
  %v444 = vpack.c.b16 %v372, %v364
  %v445 = vpack.c.b16 %v373, %v365
  %v446 = vpack.c.b16 %v374, %v366
  %v447 = vpack.c.b16 %v375, %v367
  %v448 = vpack.c.b16 %v376, %v368
  %v449 = vpack.c.b16 %v377, %v369
  %v450 = vpack.c.b16 %v378, %v370
  %v451 = vpack.c.b16 %v379, %v371
  %v452 = vpack.c.b16 %v388, %v380
  %v453 = vpack.c.b16 %v389, %v381
  %v454 = vpack.c.b16 %v390, %v382
  %v455 = vpack.c.b16 %v391, %v383
  %v456 = vpack.c.b16 %v392, %v384
  %v457 = vpack.c.b16 %v393, %v385
  %v458 = vpack.c.b16 %v394, %v386
  %v459 = vpack.c.b16 %v395, %v387
  %v652 = vunpack.c.l.b16 %v76
  %v653 = vunpack.c.l.b16 %v77
  %v654 = vunpack.c.l.b16 %v78
  %v655 = vunpack.c.l.b16 %v79
  %v656 = vunpack.c.l.b16 %v80
  %v657 = vunpack.c.l.b16 %v81
  %v658 = vunpack.c.l.b16 %v82
  %v659 = vunpack.c.l.b16 %v83
  %v660 = vunpack.c.l.b16 %v84
  %v661 = vunpack.c.l.b16 %v85
  %v662 = vunpack.c.l.b16 %v86
  %v663 = vunpack.c.l.b16 %v87
  %v664 = vunpack.c.l.b16 %v88
  %v665 = vunpack.c.l.b16 %v89
  %v666 = vunpack.c.l.b16 %v90
  %v667 = vunpack.c.l.b16 %v91
  %v668 = vunpack.c.l.b16 %v92
  %v669 = vunpack.c.l.b16 %v93
  %v670 = vunpack.c.l.b16 %v94
  %v671 = vunpack.c.l.b16 %v95
  %v672 = vunpack.c.l.b16 %v96
  %v673 = vunpack.c.l.b16 %v97
  %v674 = vunpack.c.l.b16 %v98
  %v675 = vunpack.c.l.b16 %v99
  %v676 = vunpack.c.l.b16 %v100
  %v677 = vunpack.c.l.b16 %v101
  %v678 = vunpack.c.l.b16 %v102
  %v679 = vunpack.c.l.b16 %v103
  %v680 = vunpack.c.l.b16 %v104
  %v681 = vunpack.c.l.b16 %v105
  %v682 = vunpack.c.l.b16 %v106
  %v683 = vunpack.c.l.b16 %v107
  %v684 = vunpack.c.l.b16 %v108
  %v685 = vunpack.c.l.b16 %v109
  %v686 = vunpack.c.l.b16 %v110
  %v687 = vunpack.c.l.b16 %v111
  %v688 = vunpack.c.l.b16 %v112
  %v689 = vunpack.c.l.b16 %v113
  %v690 = vunpack.c.l.b16 %v114
  %v691 = vunpack.c.l.b16 %v115
  %v692 = vunpack.c.l.b16 %v116
  %v693 = vunpack.c.l.b16 %v117
  %v694 = vunpack.c.l.b16 %v118
  %v695 = vunpack.c.l.b16 %v119
  %v696 = vunpack.c.l.b16 %v120
  %v697 = vunpack.c.l.b16 %v121
  %v698 = vunpack.c.l.b16 %v122
  %v699 = vunpack.c.l.b16 %v123
  %v700 = vunpack.c.l.b16 %v124
  %v701 = vunpack.c.l.b16 %v125
  %v702 = vunpack.c.l.b16 %v126
  %v703 = vunpack.c.l.b16 %v127
  %v704 = vunpack.c.l.b16 %v128
  %v705 = vunpack.c.l.b16 %v129
  %v706 = vunpack.c.l.b16 %v130
  %v707 = vunpack.c.l.b16 %v131
  %v708 = vunpack.c.l.b16 %v132
  %v709 = vunpack.c.l.b16 %v133
  %v710 = vunpack.c.l.b16 %v134
  %v711 = vunpack.c.l.b16 %v135
  %v712 = vunpack.c.l.b16 %v136
  %v713 = vunpack.c.l.b16 %v137
  %v714 = vunpack.c.l.b16 %v138
  %v715 = vunpack.c.l.b16 %v139
  %v716 = vunpack.c.l.b16 %v140
  %v717 = vunpack.c.l.b16 %v141
  %v718 = vunpack.c.l.b16 %v142
  %v719 = vunpack.c.l.b16 %v143
  %v720 = vunpack.c.l.b16 %v144
  %v721 = vunpack.c.l.b16 %v145
  %v722 = vunpack.c.l.b16 %v146
  %v723 = vunpack.c.l.b16 %v147
  %v724 = vunpack.c.l.b16 %v148
  %v725 = vunpack.c.l.b16 %v149
  %v726 = vunpack.c.l.b16 %v150
  %v727 = vunpack.c.l.b16 %v151
  %v728 = vunpack.c.l.b16 %v152
  %v729 = vunpack.c.l.b16 %v153
  %v730 = vunpack.c.l.b16 %v154
  %v731 = vunpack.c.l.b16 %v155
  %v732 = vunpack.c.l.b16 %v156
  %v733 = vunpack.c.l.b16 %v157
  %v734 = vunpack.c.l.b16 %v158
  %v735 = vunpack.c.l.b16 %v159
  %v736 = vunpack.c.l.b16 %v160
  %v737 = vunpack.c.l.b16 %v161
  %v738 = vunpack.c.l.b16 %v162
  %v739 = vunpack.c.l.b16 %v163
  %v740 = vunpack.c.l.b16 %v164
  %v741 = vunpack.c.l.b16 %v165
  %v742 = vunpack.c.l.b16 %v166
  %v743 = vunpack.c.l.b16 %v167
  %v744 = vunpack.c.l.b16 %v168
  %v745 = vunpack.c.l.b16 %v169
  %v746 = vunpack.c.l.b16 %v170
  %v747 = vunpack.c.l.b16 %v171
  %v748 = vunpack.c.l.b16 %v172
  %v749 = vunpack.c.l.b16 %v173
  %v750 = vunpack.c.l.b16 %v174
  %v751 = vunpack.c.l.b16 %v175
  %v752 = vunpack.c.l.b16 %v176
  %v753 = vunpack.c.l.b16 %v177
  %v754 = vunpack.c.l.b16 %v178
  %v755 = vunpack.c.l.b16 %v179
  %v756 = vunpack.c.l.b16 %v180
  %v757 = vunpack.c.l.b16 %v181
  %v758 = vunpack.c.l.b16 %v182
  %v759 = vunpack.c.l.b16 %v183
  %v760 = vunpack.c.l.b16 %v184
  %v761 = vunpack.c.l.b16 %v185
  %v762 = vunpack.c.l.b16 %v186
  %v763 = vunpack.c.l.b16 %v187
  %v764 = vunpack.c.l.b16 %v188
  %v765 = vunpack.c.l.b16 %v189
  %v766 = vunpack.c.l.b16 %v190
  %v767 = vunpack.c.l.b16 %v191
  %v768 = vunpack.c.l.b16 %v192
  %v769 = vunpack.c.l.b16 %v193
  %v770 = vunpack.c.l.b16 %v194
  %v771 = vunpack.c.l.b16 %v195
  %v772 = vunpack.c.l.b16 %v196
  %v773 = vunpack.c.l.b16 %v197
  %v774 = vunpack.c.l.b16 %v198
  %v775 = vunpack.c.l.b16 %v199
  %v776 = vunpack.c.l.b16 %v200
  %v777 = vunpack.c.l.b16 %v201
  %v778 = vunpack.c.l.b16 %v202
  %v779 = vunpack.c.l.b16 %v203
  %v780 = vpack.c.b16 %v653, %v652
  %v781 = vpack.c.b16 %v655, %v654
  %v782 = vpack.c.b16 %v657, %v656
  %v783 = vpack.c.b16 %v659, %v658
  %v784 = vpack.c.b16 %v661, %v660
  %v785 = vpack.c.b16 %v663, %v662
  %v786 = vpack.c.b16 %v665, %v664
  %v787 = vpack.c.b16 %v667, %v666
  %v788 = vpack.c.b16 %v669, %v668
  %v789 = vpack.c.b16 %v671, %v670
  %v790 = vpack.c.b16 %v673, %v672
  %v791 = vpack.c.b16 %v675, %v674
  %v792 = vpack.c.b16 %v677, %v676
  %v793 = vpack.c.b16 %v679, %v678
  %v794 = vpack.c.b16 %v681, %v680
  %v795 = vpack.c.b16 %v683, %v682
  %v796 = vpack.c.b16 %v685, %v684
  %v797 = vpack.c.b16 %v687, %v686
  %v798 = vpack.c.b16 %v689, %v688
  %v799 = vpack.c.b16 %v691, %v690
  %v800 = vpack.c.b16 %v693, %v692
  %v801 = vpack.c.b16 %v695, %v694
  %v802 = vpack.c.b16 %v697, %v696
  %v803 = vpack.c.b16 %v699, %v698
  %v804 = vpack.c.b16 %v701, %v700
  %v805 = vpack.c.b16 %v703, %v702
  %v806 = vpack.c.b16 %v705, %v704
  %v807 = vpack.c.b16 %v707, %v706
  %v808 = vpack.c.b16 %v709, %v708
  %v809 = vpack.c.b16 %v711, %v710
  %v810 = vpack.c.b16 %v713, %v712
  %v811 = vpack.c.b16 %v715, %v714
  %v812 = vpack.c.b16 %v717, %v716
  %v813 = vpack.c.b16 %v719, %v718
  %v814 = vpack.c.b16 %v721, %v720
  %v815 = vpack.c.b16 %v723, %v722
  %v816 = vpack.c.b16 %v725, %v724
  %v817 = vpack.c.b16 %v727, %v726
  %v818 = vpack.c.b16 %v729, %v728
  %v819 = vpack.c.b16 %v731, %v730
  %v820 = vpack.c.b16 %v733, %v732
  %v821 = vpack.c.b16 %v735, %v734
  %v822 = vpack.c.b16 %v737, %v736
  %v823 = vpack.c.b16 %v739, %v738
  %v824 = vpack.c.b16 %v741, %v740
  %v825 = vpack.c.b16 %v743, %v742
  %v826 = vpack.c.b16 %v745, %v744
  %v827 = vpack.c.b16 %v747, %v746
  %v828 = vpack.c.b16 %v749, %v748
  %v829 = vpack.c.b16 %v751, %v750
  %v830 = vpack.c.b16 %v753, %v752
  %v831 = vpack.c.b16 %v755, %v754
  %v832 = vpack.c.b16 %v757, %v756
  %v833 = vpack.c.b16 %v759, %v758
  %v834 = vpack.c.b16 %v761, %v760
  %v835 = vpack.c.b16 %v763, %v762
  %v836 = vpack.c.b16 %v765, %v764
  %v837 = vpack.c.b16 %v767, %v766
  %v838 = vpack.c.b16 %v769, %v768
  %v839 = vpack.c.b16 %v771, %v770
  %v840 = vpack.c.b16 %v773, %v772
  %v841 = vpack.c.b16 %v775, %v774
  %v842 = vpack.c.b16 %v777, %v776
  %v843 = vpack.c.b16 %v779, %v778
  %908 = vmatprep.subr.bf16.mxu0 0
  %909 = vmatpush1.bf16.msra.mxu0 %v780
  %910 = vmatprep.subr.bf16.mxu0 0
  %911 = vmatpush1.bf16.msra.mxu0 %v781
  %912 = vmatprep.subr.bf16.mxu0 0
  %913 = vmatpush1.bf16.msra.mxu0 %v782
  %914 = vmatprep.subr.bf16.mxu0 0
  %915 = vmatpush1.bf16.msra.mxu0 %v783
  %916 = vmatprep.subr.bf16.mxu0 0
  %917 = vmatpush1.bf16.msra.mxu0 %v784
  %918 = vmatprep.subr.bf16.mxu0 0
  %919 = vmatpush1.bf16.msra.mxu0 %v785
  %920 = vmatprep.subr.bf16.mxu0 0
  %921 = vmatpush1.bf16.msra.mxu0 %v786
  %922 = vmatprep.subr.bf16.mxu0 0
  %923 = vmatpush1.bf16.msra.mxu0 %v787
  %924 = vmatprep.subr.bf16.mxu0 0
  %925 = vmatpush1.bf16.msra.mxu0 %v788
  %926 = vmatprep.subr.bf16.mxu0 0
  %927 = vmatpush1.bf16.msra.mxu0 %v789
  %928 = vmatprep.subr.bf16.mxu0 0
  %929 = vmatpush1.bf16.msra.mxu0 %v790
  %930 = vmatprep.subr.bf16.mxu0 0
  %931 = vmatpush1.bf16.msra.mxu0 %v791
  %932 = vmatprep.subr.bf16.mxu0 0
  %933 = vmatpush1.bf16.msra.mxu0 %v792
  %934 = vmatprep.subr.bf16.mxu0 0
  %935 = vmatpush1.bf16.msra.mxu0 %v793
  %936 = vmatprep.subr.bf16.mxu0 0
  %937 = vmatpush1.bf16.msra.mxu0 %v794
  %938 = vmatprep.subr.bf16.mxu0 0
  %939 = vmatpush1.bf16.msra.mxu0 %v795
  %940 = vmatprep.mubr.bf16.mxu0 %v397
  %941 = vmatmul.mubr.bf16.gmra.mrb[0].mxu0 %v396
  %v942 = vpop.f32.mrb[0].mxu0
  %v943 = vadd.f32 0.0, %v942
  %v944 = vpop.f32.mrb[0].mxu0
  %v945 = vpop.f32.mrb[0].mxu0
  %v946 = vadd.f32 0.0, %v945
  %v947 = vpop.f32.mrb[0].mxu0
  %948 = vmatprep.mubr.bf16.mxu0 %v405
  %949 = vmatmul.mubr.bf16.gmra.mrb[0].mxu0 %v404
  %v950 = vpop.f32.mrb[0].mxu0
  %v951 = vadd.f32 0.0, %v950
  %v952 = vpop.f32.mrb[0].mxu0
  %v953 = vpop.f32.mrb[0].mxu0
  %v954 = vadd.f32 0.0, %v953
  %v955 = vpop.f32.mrb[0].mxu0
  %956 = vmatprep.mubr.bf16.mxu0 %v413
  %957 = vmatmul.mubr.bf16.gmra.mrb[0].mxu0 %v412
  %v958 = vpop.f32.mrb[0].mxu0
  %v959 = vadd.f32 0.0, %v958
  %v960 = vpop.f32.mrb[0].mxu0
  %v961 = vpop.f32.mrb[0].mxu0
  %v962 = vadd.f32 0.0, %v961
  %v963 = vpop.f32.mrb[0].mxu0
  %964 = vmatprep.mubr.bf16.mxu0 %v421
  %965 = vmatmul.mubr.bf16.gmra.mrb[0].mxu0 %v420
  %v966 = vpop.f32.mrb[0].mxu0
  %v967 = vadd.f32 0.0, %v966
  %v968 = vpop.f32.mrb[0].mxu0
  %v969 = vpop.f32.mrb[0].mxu0
  %v970 = vadd.f32 0.0, %v969
  %v971 = vpop.f32.mrb[0].mxu0
  %972 = vmatprep.mubr.bf16.mxu0 %v429
  %973 = vmatmul.mubr.bf16.gmra.mrb[0].mxu0 %v428
  %v974 = vpop.f32.mrb[0].mxu0
  %v975 = vadd.f32 0.0, %v974
  %v976 = vpop.f32.mrb[0].mxu0
  %v977 = vpop.f32.mrb[0].mxu0
  %v978 = vadd.f32 0.0, %v977
  %v979 = vpop.f32.mrb[0].mxu0
  %980 = vmatprep.mubr.bf16.mxu0 %v437
  %981 = vmatmul.mubr.bf16.gmra.mrb[0].mxu0 %v436
  %v982 = vpop.f32.mrb[0].mxu0
  %v983 = vadd.f32 0.0, %v982
  %v984 = vpop.f32.mrb[0].mxu0
  %v985 = vpop.f32.mrb[0].mxu0
  %v986 = vadd.f32 0.0, %v985
  %v987 = vpop.f32.mrb[0].mxu0
  %988 = vmatprep.mubr.bf16.mxu0 %v445
  %989 = vmatmul.mubr.bf16.gmra.mrb[0].mxu0 %v444
  %v990 = vpop.f32.mrb[0].mxu0
  %v991 = vadd.f32 0.0, %v990
  %v992 = vpop.f32.mrb[0].mxu0
  %v993 = vpop.f32.mrb[0].mxu0
  %v994 = vadd.f32 0.0, %v993
  %v995 = vpop.f32.mrb[0].mxu0
  %996 = vmatprep.mubr.bf16.mxu0 %v453
  %997 = vmatmul.mubr.bf16.gmra.mrb[0].mxu0 %v452
  %v998 = vpop.f32.mrb[0].mxu0
  %v999 = vadd.f32 0.0, %v998
  %v1000 = vpop.f32.mrb[0].mxu0
  %v1001 = vpop.f32.mrb[0].mxu0
  %v1002 = vadd.f32 0.0, %v1001
  %v1003 = vpop.f32.mrb[0].mxu0
  %1004 = vdwg.mxu0
  %1005 = vmatprep.subr.bf16.mxu0 0
  %1006 = vmatpush1.bf16.msra.mxu0 %v796
  %1007 = vmatprep.subr.bf16.mxu0 0
  %1008 = vmatpush1.bf16.msra.mxu0 %v797
  %1009 = vmatprep.subr.bf16.mxu0 0
  %1010 = vmatpush1.bf16.msra.mxu0 %v798
  %1011 = vmatprep.subr.bf16.mxu0 0
  %1012 = vmatpush1.bf16.msra.mxu0 %v799
  %1013 = vmatprep.subr.bf16.mxu0 0
  %1014 = vmatpush1.bf16.msra.mxu0 %v800
  %1015 = vmatprep.subr.bf16.mxu0 0
  %1016 = vmatpush1.bf16.msra.mxu0 %v801
  %1017 = vmatprep.subr.bf16.mxu0 0
  %1018 = vmatpush1.bf16.msra.mxu0 %v802
  %1019 = vmatprep.subr.bf16.mxu0 0
  %1020 = vmatpush1.bf16.msra.mxu0 %v803
  %1021 = vmatprep.subr.bf16.mxu0 0
  %1022 = vmatpush1.bf16.msra.mxu0 %v804
  %1023 = vmatprep.subr.bf16.mxu0 0
  %1024 = vmatpush1.bf16.msra.mxu0 %v805
  %1025 = vmatprep.subr.bf16.mxu0 0
  %1026 = vmatpush1.bf16.msra.mxu0 %v806
  %1027 = vmatprep.subr.bf16.mxu0 0
  %1028 = vmatpush1.bf16.msra.mxu0 %v807
  %1029 = vmatprep.subr.bf16.mxu0 0
  %1030 = vmatpush1.bf16.msra.mxu0 %v808
  %1031 = vmatprep.subr.bf16.mxu0 0
  %1032 = vmatpush1.bf16.msra.mxu0 %v809
  %1033 = vmatprep.subr.bf16.mxu0 0
  %1034 = vmatpush1.bf16.msra.mxu0 %v810
  %1035 = vmatprep.subr.bf16.mxu0 0
  %1036 = vmatpush1.bf16.msra.mxu0 %v811
  %1037 = vmatprep.mubr.bf16.mxu0 %v399
  %1038 = vmatmul.mubr.bf16.gmra.mrb[0].mxu0 %v398
  %v1039 = vpop.f32.mrb[0].mxu0
  %v1040 = vadd.f32 %v943, %v1039
  %v1041 = vpop.f32.mrb[0].mxu0
  %v1042 = vpop.f32.mrb[0].mxu0
  %v1043 = vadd.f32 %v946, %v1042
  %v1044 = vpop.f32.mrb[0].mxu0
  %1045 = vmatprep.mubr.bf16.mxu0 %v407
  %1046 = vmatmul.mubr.bf16.gmra.mrb[0].mxu0 %v406
  %v1047 = vpop.f32.mrb[0].mxu0
  %v1048 = vadd.f32 %v951, %v1047
  %v1049 = vpop.f32.mrb[0].mxu0
  %v1050 = vpop.f32.mrb[0].mxu0
  %v1051 = vadd.f32 %v954, %v1050
  %v1052 = vpop.f32.mrb[0].mxu0
  %1053 = vmatprep.mubr.bf16.mxu0 %v415
  %1054 = vmatmul.mubr.bf16.gmra.mrb[0].mxu0 %v414
  %v1055 = vpop.f32.mrb[0].mxu0
  %v1056 = vadd.f32 %v959, %v1055
  %v1057 = vpop.f32.mrb[0].mxu0
  %v1058 = vpop.f32.mrb[0].mxu0
  %v1059 = vadd.f32 %v962, %v1058
  %v1060 = vpop.f32.mrb[0].mxu0
  %1061 = vmatprep.mubr.bf16.mxu0 %v423
  %1062 = vmatmul.mubr.bf16.gmra.mrb[0].mxu0 %v422
  %v1063 = vpop.f32.mrb[0].mxu0
  %v1064 = vadd.f32 %v967, %v1063
  %v1065 = vpop.f32.mrb[0].mxu0
  %v1066 = vpop.f32.mrb[0].mxu0
  %v1067 = vadd.f32 %v970, %v1066
  %v1068 = vpop.f32.mrb[0].mxu0
  %1069 = vmatprep.mubr.bf16.mxu0 %v431
  %1070 = vmatmul.mubr.bf16.gmra.mrb[0].mxu0 %v430
  %v1071 = vpop.f32.mrb[0].mxu0
  %v1072 = vadd.f32 %v975, %v1071
  %v1073 = vpop.f32.mrb[0].mxu0
  %v1074 = vpop.f32.mrb[0].mxu0
  %v1075 = vadd.f32 %v978, %v1074
  %v1076 = vpop.f32.mrb[0].mxu0
  %1077 = vmatprep.mubr.bf16.mxu0 %v439
  %1078 = vmatmul.mubr.bf16.gmra.mrb[0].mxu0 %v438
  %v1079 = vpop.f32.mrb[0].mxu0
  %v1080 = vadd.f32 %v983, %v1079
  %v1081 = vpop.f32.mrb[0].mxu0
  %v1082 = vpop.f32.mrb[0].mxu0
  %v1083 = vadd.f32 %v986, %v1082
  %v1084 = vpop.f32.mrb[0].mxu0
  %1085 = vmatprep.mubr.bf16.mxu0 %v447
  %1086 = vmatmul.mubr.bf16.gmra.mrb[0].mxu0 %v446
  %v1087 = vpop.f32.mrb[0].mxu0
  %v1088 = vadd.f32 %v991, %v1087
  %v1089 = vpop.f32.mrb[0].mxu0
  %v1090 = vpop.f32.mrb[0].mxu0
  %v1091 = vadd.f32 %v994, %v1090
  %v1092 = vpop.f32.mrb[0].mxu0
  %1093 = vmatprep.mubr.bf16.mxu0 %v455
  %1094 = vmatmul.mubr.bf16.gmra.mrb[0].mxu0 %v454
  %v1095 = vpop.f32.mrb[0].mxu0
  %v1096 = vadd.f32 %v999, %v1095
  %v1097 = vpop.f32.mrb[0].mxu0
  %v1098 = vpop.f32.mrb[0].mxu0
  %v1099 = vadd.f32 %v1002, %v1098
  %v1100 = vpop.f32.mrb[0].mxu0
  %1101 = vdwg.mxu0
  %1102 = vmatprep.subr.bf16.mxu0 0
  %1103 = vmatpush1.bf16.msra.mxu0 %v812
  %1104 = vmatprep.subr.bf16.mxu0 0
  %1105 = vmatpush1.bf16.msra.mxu0 %v813
  %1106 = vmatprep.subr.bf16.mxu0 0
  %1107 = vmatpush1.bf16.msra.mxu0 %v814
  %1108 = vmatprep.subr.bf16.mxu0 0
  %1109 = vmatpush1.bf16.msra.mxu0 %v815
  %1110 = vmatprep.subr.bf16.mxu0 0
  %1111 = vmatpush1.bf16.msra.mxu0 %v816
  %1112 = vmatprep.subr.bf16.mxu0 0
  %1113 = vmatpush1.bf16.msra.mxu0 %v817
  %1114 = vmatprep.subr.bf16.mxu0 0
  %1115 = vmatpush1.bf16.msra.mxu0 %v818
  %1116 = vmatprep.subr.bf16.mxu0 0
  %1117 = vmatpush1.bf16.msra.mxu0 %v819
  %1118 = vmatprep.subr.bf16.mxu0 0
  %1119 = vmatpush1.bf16.msra.mxu0 %v820
  %1120 = vmatprep.subr.bf16.mxu0 0
  %1121 = vmatpush1.bf16.msra.mxu0 %v821
  %1122 = vmatprep.subr.bf16.mxu0 0
  %1123 = vmatpush1.bf16.msra.mxu0 %v822
  %1124 = vmatprep.subr.bf16.mxu0 0
  %1125 = vmatpush1.bf16.msra.mxu0 %v823
  %1126 = vmatprep.subr.bf16.mxu0 0
  %1127 = vmatpush1.bf16.msra.mxu0 %v824
  %1128 = vmatprep.subr.bf16.mxu0 0
  %1129 = vmatpush1.bf16.msra.mxu0 %v825
  %1130 = vmatprep.subr.bf16.mxu0 0
  %1131 = vmatpush1.bf16.msra.mxu0 %v826
  %1132 = vmatprep.subr.bf16.mxu0 0
  %1133 = vmatpush1.bf16.msra.mxu0 %v827
  %1134 = vmatprep.mubr.bf16.mxu0 %v401
  %1135 = vmatmul.mubr.bf16.gmra.mrb[0].mxu0 %v400
  %v1136 = vpop.f32.mrb[0].mxu0
  %v1137 = vadd.f32 %v1040, %v1136
  %v1138 = vpop.f32.mrb[0].mxu0
  %v1139 = vpop.f32.mrb[0].mxu0
  %v1140 = vadd.f32 %v1043, %v1139
  %v1141 = vpop.f32.mrb[0].mxu0
  %1142 = vmatprep.mubr.bf16.mxu0 %v409
  %1143 = vmatmul.mubr.bf16.gmra.mrb[0].mxu0 %v408
  %v1144 = vpop.f32.mrb[0].mxu0
  %v1145 = vadd.f32 %v1048, %v1144
  %v1146 = vpop.f32.mrb[0].mxu0
  %v1147 = vpop.f32.mrb[0].mxu0
  %v1148 = vadd.f32 %v1051, %v1147
  %v1149 = vpop.f32.mrb[0].mxu0
  %1150 = vmatprep.mubr.bf16.mxu0 %v417
  %1151 = vmatmul.mubr.bf16.gmra.mrb[0].mxu0 %v416
  %v1152 = vpop.f32.mrb[0].mxu0
  %v1153 = vadd.f32 %v1056, %v1152
  %v1154 = vpop.f32.mrb[0].mxu0
  %v1155 = vpop.f32.mrb[0].mxu0
  %v1156 = vadd.f32 %v1059, %v1155
  %v1157 = vpop.f32.mrb[0].mxu0
  %1158 = vmatprep.mubr.bf16.mxu0 %v425
  %1159 = vmatmul.mubr.bf16.gmra.mrb[0].mxu0 %v424
  %v1160 = vpop.f32.mrb[0].mxu0
  %v1161 = vadd.f32 %v1064, %v1160
  %v1162 = vpop.f32.mrb[0].mxu0
  %v1163 = vpop.f32.mrb[0].mxu0
  %v1164 = vadd.f32 %v1067, %v1163
  %v1165 = vpop.f32.mrb[0].mxu0
  %1166 = vmatprep.mubr.bf16.mxu0 %v433
  %1167 = vmatmul.mubr.bf16.gmra.mrb[0].mxu0 %v432
  %v1168 = vpop.f32.mrb[0].mxu0
  %v1169 = vadd.f32 %v1072, %v1168
  %v1170 = vpop.f32.mrb[0].mxu0
  %v1171 = vpop.f32.mrb[0].mxu0
  %v1172 = vadd.f32 %v1075, %v1171
  %v1173 = vpop.f32.mrb[0].mxu0
  %1174 = vmatprep.mubr.bf16.mxu0 %v441
  %1175 = vmatmul.mubr.bf16.gmra.mrb[0].mxu0 %v440
  %v1176 = vpop.f32.mrb[0].mxu0
  %v1177 = vadd.f32 %v1080, %v1176
  %v1178 = vpop.f32.mrb[0].mxu0
  %v1179 = vpop.f32.mrb[0].mxu0
  %v1180 = vadd.f32 %v1083, %v1179
  %v1181 = vpop.f32.mrb[0].mxu0
  %1182 = vmatprep.mubr.bf16.mxu0 %v449
  %1183 = vmatmul.mubr.bf16.gmra.mrb[0].mxu0 %v448
  %v1184 = vpop.f32.mrb[0].mxu0
  %v1185 = vadd.f32 %v1088, %v1184
  %v1186 = vpop.f32.mrb[0].mxu0
  %v1187 = vpop.f32.mrb[0].mxu0
  %v1188 = vadd.f32 %v1091, %v1187
  %v1189 = vpop.f32.mrb[0].mxu0
  %1190 = vmatprep.mubr.bf16.mxu0 %v457
  %1191 = vmatmul.mubr.bf16.gmra.mrb[0].mxu0 %v456
  %v1192 = vpop.f32.mrb[0].mxu0
  %v1193 = vadd.f32 %v1096, %v1192
  %v1194 = vpop.f32.mrb[0].mxu0
  %v1195 = vpop.f32.mrb[0].mxu0
  %v1196 = vadd.f32 %v1099, %v1195
  %v1197 = vpop.f32.mrb[0].mxu0
  %1198 = vdwg.mxu0
  %1199 = vmatprep.subr.bf16.mxu0 0
  %1200 = vmatpush1.bf16.msra.mxu0 %v828
  %1201 = vmatprep.subr.bf16.mxu0 0
  %1202 = vmatpush1.bf16.msra.mxu0 %v829
  %1203 = vmatprep.subr.bf16.mxu0 0
  %1204 = vmatpush1.bf16.msra.mxu0 %v830
  %1205 = vmatprep.subr.bf16.mxu0 0
  %1206 = vmatpush1.bf16.msra.mxu0 %v831
  %1207 = vmatprep.subr.bf16.mxu0 0
  %1208 = vmatpush1.bf16.msra.mxu0 %v832
  %1209 = vmatprep.subr.bf16.mxu0 0
  %1210 = vmatpush1.bf16.msra.mxu0 %v833
  %1211 = vmatprep.subr.bf16.mxu0 0
  %1212 = vmatpush1.bf16.msra.mxu0 %v834
  %1213 = vmatprep.subr.bf16.mxu0 0
  %1214 = vmatpush1.bf16.msra.mxu0 %v835
  %1215 = vmatprep.subr.bf16.mxu0 0
  %1216 = vmatpush1.bf16.msra.mxu0 %v836
  %1217 = vmatprep.subr.bf16.mxu0 0
  %1218 = vmatpush1.bf16.msra.mxu0 %v837
  %1219 = vmatprep.subr.bf16.mxu0 0
  %1220 = vmatpush1.bf16.msra.mxu0 %v838
  %1221 = vmatprep.subr.bf16.mxu0 0
  %1222 = vmatpush1.bf16.msra.mxu0 %v839
  %1223 = vmatprep.subr.bf16.mxu0 0
  %1224 = vmatpush1.bf16.msra.mxu0 %v840
  %1225 = vmatprep.subr.bf16.mxu0 0
  %1226 = vmatpush1.bf16.msra.mxu0 %v841
  %1227 = vmatprep.subr.bf16.mxu0 0
  %1228 = vmatpush1.bf16.msra.mxu0 %v842
  %1229 = vmatprep.subr.bf16.mxu0 0
  %1230 = vmatpush1.bf16.msra.mxu0 %v843
  %1231 = vmatprep.mubr.bf16.mxu0 %v403
  %1232 = vmatmul.mubr.bf16.gmra.mrb[0].mxu0 %v402
  %v1233 = vpop.f32.mrb[0].mxu0
  %v1234 = vadd.f32 %v1137, %v1233
  %v1235 = vpop.f32.mrb[0].mxu0
  %v1236 = vpop.f32.mrb[0].mxu0
  %v1237 = vadd.f32 %v1140, %v1236
  %v1238 = vpop.f32.mrb[0].mxu0
  %1239 = vmatprep.mubr.bf16.mxu0 %v411
  %1240 = vmatmul.mubr.bf16.gmra.mrb[0].mxu0 %v410
  %v1241 = vpop.f32.mrb[0].mxu0
  %v1242 = vadd.f32 %v1145, %v1241
  %v1243 = vpop.f32.mrb[0].mxu0
  %v1244 = vpop.f32.mrb[0].mxu0
  %v1245 = vadd.f32 %v1148, %v1244
  %v1246 = vpop.f32.mrb[0].mxu0
  %1247 = vmatprep.mubr.bf16.mxu0 %v419
  %1248 = vmatmul.mubr.bf16.gmra.mrb[0].mxu0 %v418
  %v1249 = vpop.f32.mrb[0].mxu0
  %v1250 = vadd.f32 %v1153, %v1249
  %v1251 = vpop.f32.mrb[0].mxu0
  %v1252 = vpop.f32.mrb[0].mxu0
  %v1253 = vadd.f32 %v1156, %v1252
  %v1254 = vpop.f32.mrb[0].mxu0
  %1255 = vmatprep.mubr.bf16.mxu0 %v427
  %1256 = vmatmul.mubr.bf16.gmra.mrb[0].mxu0 %v426
  %v1257 = vpop.f32.mrb[0].mxu0
  %v1258 = vadd.f32 %v1161, %v1257
  %v1259 = vpop.f32.mrb[0].mxu0
  %v1260 = vpop.f32.mrb[0].mxu0
  %v1261 = vadd.f32 %v1164, %v1260
  %v1262 = vpop.f32.mrb[0].mxu0
  %1263 = vmatprep.mubr.bf16.mxu0 %v435
  %1264 = vmatmul.mubr.bf16.gmra.mrb[0].mxu0 %v434
  %v1265 = vpop.f32.mrb[0].mxu0
  %v1266 = vadd.f32 %v1169, %v1265
  %v1267 = vpop.f32.mrb[0].mxu0
  %v1268 = vpop.f32.mrb[0].mxu0
  %v1269 = vadd.f32 %v1172, %v1268
  %v1270 = vpop.f32.mrb[0].mxu0
  %1271 = vmatprep.mubr.bf16.mxu0 %v443
  %1272 = vmatmul.mubr.bf16.gmra.mrb[0].mxu0 %v442
  %v1273 = vpop.f32.mrb[0].mxu0
  %v1274 = vadd.f32 %v1177, %v1273
  %v1275 = vpop.f32.mrb[0].mxu0
  %v1276 = vpop.f32.mrb[0].mxu0
  %v1277 = vadd.f32 %v1180, %v1276
  %v1278 = vpop.f32.mrb[0].mxu0
  %1279 = vmatprep.mubr.bf16.mxu0 %v451
  %1280 = vmatmul.mubr.bf16.gmra.mrb[0].mxu0 %v450
  %v1281 = vpop.f32.mrb[0].mxu0
  %v1282 = vadd.f32 %v1185, %v1281
  %v1283 = vpop.f32.mrb[0].mxu0
  %v1284 = vpop.f32.mrb[0].mxu0
  %v1285 = vadd.f32 %v1188, %v1284
  %v1286 = vpop.f32.mrb[0].mxu0
  %1287 = vmatprep.mubr.bf16.mxu0 %v459
  %1288 = vmatmul.mubr.bf16.gmra.mrb[0].mxu0 %v458
  %v1289 = vpop.f32.mrb[0].mxu0
  %v1290 = vadd.f32 %v1193, %v1289
  %v1291 = vpop.f32.mrb[0].mxu0
  %v1292 = vpop.f32.mrb[0].mxu0
  %v1293 = vadd.f32 %v1196, %v1292
  %v1294 = vpop.f32.mrb[0].mxu0
  %1295 = vdwg.mxu0
  %1296 = vst [vmem:[%s2] sm:$0xff] %v1234
  %1297 = vst [vmem:[%s2 + $0x8] sm:$0xff] %v1237
  %1298 = vst [vmem:[%s2 + $0x10] sm:$0xff] %v1242
  %1299 = vst [vmem:[%s2 + $0x18] sm:$0xff] %v1245
  %1300 = vst [vmem:[%s2 + $0x20] sm:$0xff] %v1250
  %1301 = vst [vmem:[%s2 + $0x28] sm:$0xff] %v1253
  %1302 = vst [vmem:[%s2 + $0x30] sm:$0xff] %v1258
  %1303 = vst [vmem:[%s2 + $0x38] sm:$0xff] %v1261
  %1304 = vst [vmem:[%s2 + $0x40] sm:$0xff] %v1266
  %1305 = vst [vmem:[%s2 + $0x48] sm:$0xff] %v1269
  %1306 = vst [vmem:[%s2 + $0x50] sm:$0xff] %v1274
  %1307 = vst [vmem:[%s2 + $0x58] sm:$0xff] %v1277
  %1308 = vst [vmem:[%s2 + $0x60] sm:$0xff] %v1282
  %1309 = vst [vmem:[%s2 + $0x68] sm:$0xff] %v1285
  %1310 = vst [vmem:[%s2 + $0x70] sm:$0xff] %v1290
  %1311 = vst [vmem:[%s2 + $0x78] sm:$0xff] %v1293
  // Predicated region
  $region10: #{cifar_discriminator_forward.10} parent=0 // pred_check
    _
  $region11: #{cifar_discriminator_forward.10} parent=0 // pred_check_branch
    %1313 = sbr.rel (0) target = $region13
  $region12: #{cifar_discriminator_forward.10} parent=0 // pred_region
    _
  $region13: #{cifar_discriminator_forward.10} parent=0 // pred_fallthru
    _
  // Predicated region
  $region14: #{cifar_discriminator_forward.10} parent=0 // pred_check
    _
  $region15: #{cifar_discriminator_forward.10} parent=0 // pred_check_branch
    %1315 = sbr.rel (0) target = $region17
  $region16: #{cifar_discriminator_forward.10} parent=0 // pred_region
    _
  $region17: #{cifar_discriminator_forward.10} parent=0 // pred_fallthru
    _

// kernel: cifar_discriminator_forward.13
$region0: #{cifar_discriminator_forward.13}
  #allocation0 [shape = 'u32[]', space=smem, size = 0x4, offset = 0x4, fixed_abs, tag = 'smem constant byte address 0x4 - core index']
  #allocation1 [shape = 'u32[144,128]{1,0:T(1,128)}', space=vmem, size = 0x12000, scoped, tag = 'internal scratch']
  %s0 = inlined_call_operand.vmem [shape: f32[32,256], index: 0, kind: input, shape index: {}]
  %s1 = inlined_call_operand.vmem [shape: f32[1,256], index: 1, kind: input, shape index: {}]
  %s2 = inlined_call_operand.vmem [shape: f32[1,256], index: 2, kind: input, shape index: {}]
  %s3 = inlined_call_operand.vmem [shape: bf16[32,256], index: 3, kind: output, shape index: {}]
  %s4 = sld [smem:[#allocation0]]
  $region22: #{cifar_discriminator_forward.13} parent=0
    _
  %s6 = ssub.s32 1, %s4
  %s7 = scalar_select 0, %s6, %s4
  // Predicated region
  $region2: #{cifar_discriminator_forward.13} parent=0 // pred_check
    _
  $region3: #{cifar_discriminator_forward.13} parent=0 // pred_check_branch
    %9 = sbr.rel (0) target = $region5
  $region4: #{cifar_discriminator_forward.13} parent=0 // pred_region
    _
  $region5: #{cifar_discriminator_forward.13} parent=0 // pred_fallthru
    _
  // Predicated region
  $region6: #{cifar_discriminator_forward.13} parent=0 // pred_check
    _
  $region7: #{cifar_discriminator_forward.13} parent=0 // pred_check_branch
    %11 = sbr.rel (0) target = $region9
  $region8: #{cifar_discriminator_forward.13} parent=0 // pred_region
    _
  $region9: #{cifar_discriminator_forward.13} parent=0 // pred_fallthru
    _
  // Predicated region
  $region10: #{cifar_discriminator_forward.13} parent=0 // pred_check
    _
  $region11: #{cifar_discriminator_forward.13} parent=0 // pred_check_branch
    %13 = sbr.rel (0) target = $region13
  $region12: #{cifar_discriminator_forward.13} parent=0 // pred_region
    _
  $region13: #{cifar_discriminator_forward.13} parent=0 // pred_fallthru
    _
  %v14 = vld [vmem:[%s0] sm:$0xff]
  %v15 = vld [vmem:[%s0 + $0x8] sm:$0xff]
  %v16 = vld [vmem:[%s0 + $0x10] sm:$0xff]
  %v17 = vld [vmem:[%s0 + $0x18] sm:$0xff]
  %v18 = vld [vmem:[%s0 + $0x20] sm:$0xff]
  %v19 = vld [vmem:[%s0 + $0x28] sm:$0xff]
  %v20 = vld [vmem:[%s0 + $0x30] sm:$0xff]
  %v21 = vld [vmem:[%s0 + $0x38] sm:$0xff]
  %v22 = vld [vmem:[%s1] sm:$0x3]
  %v24 = vlaneseq
  %v25 = vshrl.u32 %v24, 7
  %v26 = vsub.s32 0, %v25
  %v27 = vrot.slane %v22, %v26
  %v28 = vlaneseq
  %v29 = vshrl.u32 %v28, 7
  %v30 = vsub.s32 1, %v29
  %v31 = vrot.slane %v22, %v30
  %v34 = vmul.f32 %v14, %v27
  %v35 = vmul.f32 %v15, %v31
  %v36 = vmul.f32 %v16, %v27
  %v37 = vmul.f32 %v17, %v31
  %v38 = vmul.f32 %v18, %v27
  %v39 = vmul.f32 %v19, %v31
  %v40 = vmul.f32 %v20, %v27
  %v41 = vmul.f32 %v21, %v31
  %v42 = vld [vmem:[%s2] sm:$0x3]
  %v44 = vlaneseq
  %v45 = vshrl.u32 %v44, 7
  %v46 = vsub.s32 0, %v45
  %v47 = vrot.slane %v42, %v46
  %v48 = vlaneseq
  %v49 = vshrl.u32 %v48, 7
  %v50 = vsub.s32 1, %v49
  %v51 = vrot.slane %v42, %v50
  %v54 = vadd.f32 %v34, %v47
  %v55 = vadd.f32 %v35, %v51
  %v56 = vadd.f32 %v36, %v47
  %v57 = vadd.f32 %v37, %v51
  %v58 = vadd.f32 %v38, %v47
  %v59 = vadd.f32 %v39, %v51
  %v60 = vadd.f32 %v40, %v47
  %v61 = vadd.f32 %v41, %v51
  %vm62 = vcmp.gt.f32.partialorder %v54, 0.0
  %vm63 = vcmp.gt.f32.partialorder %v55, 0.0
  %vm64 = vcmp.gt.f32.partialorder %v56, 0.0
  %vm65 = vcmp.gt.f32.partialorder %v57, 0.0
  %vm66 = vcmp.gt.f32.partialorder %v58, 0.0
  %vm67 = vcmp.gt.f32.partialorder %v59, 0.0
  %vm68 = vcmp.gt.f32.partialorder %v60, 0.0
  %vm69 = vcmp.gt.f32.partialorder %v61, 0.0
  %v70 = vmul.f32 %v54, 0.2
  %v71 = vmul.f32 %v55, 0.2
  %v72 = vmul.f32 %v56, 0.2
  %v73 = vmul.f32 %v57, 0.2
  %v74 = vmul.f32 %v58, 0.2
  %v75 = vmul.f32 %v59, 0.2
  %v76 = vmul.f32 %v60, 0.2
  %v77 = vmul.f32 %v61, 0.2
  %v78 = vsel %vm62, %v54, %v70
  %v79 = vsel %vm63, %v55, %v71
  %v80 = vsel %vm64, %v56, %v72
  %v81 = vsel %vm65, %v57, %v73
  %v82 = vsel %vm66, %v58, %v74
  %v83 = vsel %vm67, %v59, %v75
  %v84 = vsel %vm68, %v60, %v76
  %v85 = vsel %vm69, %v61, %v77
  %v86 = vpack.c.bf16 %v80, %v78
  %v87 = vpack.c.bf16 %v81, %v79
  %v88 = vpack.c.bf16 %v84, %v82
  %v89 = vpack.c.bf16 %v85, %v83
  %v94 = vunpack.c.l.b16 %v86
  %v95 = vunpack.c.l.b16 %v87
  %v96 = vunpack.c.h.b16 %v86
  %v97 = vunpack.c.h.b16 %v87
  %v98 = vunpack.c.l.b16 %v88
  %v99 = vunpack.c.l.b16 %v89
  %v100 = vunpack.c.h.b16 %v88
  %v101 = vunpack.c.h.b16 %v89
  %v102 = vpack.c.b16 %v95, %v94
  %v103 = vpack.c.b16 %v97, %v96
  %v104 = vpack.c.b16 %v99, %v98
  %v105 = vpack.c.b16 %v101, %v100
  %110 = vst [vmem:[%s3] sm:$0xff] %v102
  %111 = vst [vmem:[%s3 + $0x8] sm:$0xff] %v103
  %112 = vst [vmem:[%s3 + $0x10] sm:$0xff] %v104
  %113 = vst [vmem:[%s3 + $0x18] sm:$0xff] %v105
  // Predicated region
  $region14: #{cifar_discriminator_forward.13} parent=0 // pred_check
    _
  $region15: #{cifar_discriminator_forward.13} parent=0 // pred_check_branch
    %115 = sbr.rel (0) target = $region17
  $region16: #{cifar_discriminator_forward.13} parent=0 // pred_region
    _
  $region17: #{cifar_discriminator_forward.13} parent=0 // pred_fallthru
    _
  // Predicated region
  $region18: #{cifar_discriminator_forward.13} parent=0 // pred_check
    _
  $region19: #{cifar_discriminator_forward.13} parent=0 // pred_check_branch
    %117 = sbr.rel (0) target = $region21
  $region20: #{cifar_discriminator_forward.13} parent=0 // pred_region
    _
  $region21: #{cifar_discriminator_forward.13} parent=0 // pred_fallthru
    _

// kernel: cifar_discriminator_forward.12
$region0: #{cifar_discriminator_forward.12}
  #allocation0 [shape = 'u32[]', space=smem, size = 0x4, offset = 0x4, fixed_abs, tag = 'smem constant byte address 0x4 - core index']
  #allocation1 [shape = 'u32[144,128]{1,0:T(1,128)}', space=vmem, size = 0x12000, scoped, tag = 'internal scratch']
  %s0 = inlined_call_operand.vmem [shape: bf16[32,2048], index: 0, kind: input, shape index: {}]
  %s1 = inlined_call_operand.vmem [shape: bf16[2048,256], index: 1, kind: input, shape index: {}]
  %s2 = inlined_call_operand.vmem [shape: f32[32,256], index: 2, kind: output, shape index: {}]
  %s3 = sld [smem:[#allocation0]]
  $region18: #{cifar_discriminator_forward.12} parent=0
    _
  %s5 = ssub.s32 1, %s3
  %s6 = scalar_select 0, %s5, %s3
  // Predicated region
  $region2: #{cifar_discriminator_forward.12} parent=0 // pred_check
    _
  $region3: #{cifar_discriminator_forward.12} parent=0 // pred_check_branch
    %8 = sbr.rel (0) target = $region5
  $region4: #{cifar_discriminator_forward.12} parent=0 // pred_region
    _
  $region5: #{cifar_discriminator_forward.12} parent=0 // pred_fallthru
    _
  // Predicated region
  $region6: #{cifar_discriminator_forward.12} parent=0 // pred_check
    _
  $region7: #{cifar_discriminator_forward.12} parent=0 // pred_check_branch
    %10 = sbr.rel (0) target = $region9
  $region8: #{cifar_discriminator_forward.12} parent=0 // pred_region
    _
  $region9: #{cifar_discriminator_forward.12} parent=0 // pred_fallthru
    _
  %v11 = vld [vmem:[%s0] sm:$0xff]
  %v12 = vld [vmem:[%s0 + $0x8] sm:$0xff]
  %v13 = vld [vmem:[%s0 + $0x10] sm:$0xff]
  %v14 = vld [vmem:[%s0 + $0x18] sm:$0xff]
  %v15 = vld [vmem:[%s0 + $0x20] sm:$0xff]
  %v16 = vld [vmem:[%s0 + $0x28] sm:$0xff]
  %v17 = vld [vmem:[%s0 + $0x30] sm:$0xff]
  %v18 = vld [vmem:[%s0 + $0x38] sm:$0xff]
  %v19 = vld [vmem:[%s0 + $0x40] sm:$0xff]
  %v20 = vld [vmem:[%s0 + $0x48] sm:$0xff]
  %v21 = vld [vmem:[%s0 + $0x50] sm:$0xff]
  %v22 = vld [vmem:[%s0 + $0x58] sm:$0xff]
  %v23 = vld [vmem:[%s0 + $0x60] sm:$0xff]
  %v24 = vld [vmem:[%s0 + $0x68] sm:$0xff]
  %v25 = vld [vmem:[%s0 + $0x70] sm:$0xff]
  %v26 = vld [vmem:[%s0 + $0x78] sm:$0xff]
  %v27 = vld [vmem:[%s0 + $0x80] sm:$0xff]
  %v28 = vld [vmem:[%s0 + $0x88] sm:$0xff]
  %v29 = vld [vmem:[%s0 + $0x90] sm:$0xff]
  %v30 = vld [vmem:[%s0 + $0x98] sm:$0xff]
  %v31 = vld [vmem:[%s0 + $0xa0] sm:$0xff]
  %v32 = vld [vmem:[%s0 + $0xa8] sm:$0xff]
  %v33 = vld [vmem:[%s0 + $0xb0] sm:$0xff]
  %v34 = vld [vmem:[%s0 + $0xb8] sm:$0xff]
  %v35 = vld [vmem:[%s0 + $0xc0] sm:$0xff]
  %v36 = vld [vmem:[%s0 + $0xc8] sm:$0xff]
  %v37 = vld [vmem:[%s0 + $0xd0] sm:$0xff]
  %v38 = vld [vmem:[%s0 + $0xd8] sm:$0xff]
  %v39 = vld [vmem:[%s0 + $0xe0] sm:$0xff]
  %v40 = vld [vmem:[%s0 + $0xe8] sm:$0xff]
  %v41 = vld [vmem:[%s0 + $0xf0] sm:$0xff]
  %v42 = vld [vmem:[%s0 + $0xf8] sm:$0xff]
  %v43 = vld [vmem:[%s1] sm:$0xff]
  %v44 = vld [vmem:[%s1 + $0x8] sm:$0xff]
  %v45 = vld [vmem:[%s1 + $0x10] sm:$0xff]
  %v46 = vld [vmem:[%s1 + $0x18] sm:$0xff]
  %v47 = vld [vmem:[%s1 + $0x20] sm:$0xff]
  %v48 = vld [vmem:[%s1 + $0x28] sm:$0xff]
  %v49 = vld [vmem:[%s1 + $0x30] sm:$0xff]
  %v50 = vld [vmem:[%s1 + $0x38] sm:$0xff]
  %v51 = vld [vmem:[%s1 + $0x40] sm:$0xff]
  %v52 = vld [vmem:[%s1 + $0x48] sm:$0xff]
  %v53 = vld [vmem:[%s1 + $0x50] sm:$0xff]
  %v54 = vld [vmem:[%s1 + $0x58] sm:$0xff]
  %v55 = vld [vmem:[%s1 + $0x60] sm:$0xff]
  %v56 = vld [vmem:[%s1 + $0x68] sm:$0xff]
  %v57 = vld [vmem:[%s1 + $0x70] sm:$0xff]
  %v58 = vld [vmem:[%s1 + $0x78] sm:$0xff]
  %v59 = vld [vmem:[%s1 + $0x80] sm:$0xff]
  %v60 = vld [vmem:[%s1 + $0x88] sm:$0xff]
  %v61 = vld [vmem:[%s1 + $0x90] sm:$0xff]
  %v62 = vld [vmem:[%s1 + $0x98] sm:$0xff]
  %v63 = vld [vmem:[%s1 + $0xa0] sm:$0xff]
  %v64 = vld [vmem:[%s1 + $0xa8] sm:$0xff]
  %v65 = vld [vmem:[%s1 + $0xb0] sm:$0xff]
  %v66 = vld [vmem:[%s1 + $0xb8] sm:$0xff]
  %v67 = vld [vmem:[%s1 + $0xc0] sm:$0xff]
  %v68 = vld [vmem:[%s1 + $0xc8] sm:$0xff]
  %v69 = vld [vmem:[%s1 + $0xd0] sm:$0xff]
  %v70 = vld [vmem:[%s1 + $0xd8] sm:$0xff]
  %v71 = vld [vmem:[%s1 + $0xe0] sm:$0xff]
  %v72 = vld [vmem:[%s1 + $0xe8] sm:$0xff]
  %v73 = vld [vmem:[%s1 + $0xf0] sm:$0xff]
  %v74 = vld [vmem:[%s1 + $0xf8] sm:$0xff]
  %v75 = vld [vmem:[%s1 + $0x100] sm:$0xff]
  %v76 = vld [vmem:[%s1 + $0x108] sm:$0xff]
  %v77 = vld [vmem:[%s1 + $0x110] sm:$0xff]
  %v78 = vld [vmem:[%s1 + $0x118] sm:$0xff]
  %v79 = vld [vmem:[%s1 + $0x120] sm:$0xff]
  %v80 = vld [vmem:[%s1 + $0x128] sm:$0xff]
  %v81 = vld [vmem:[%s1 + $0x130] sm:$0xff]
  %v82 = vld [vmem:[%s1 + $0x138] sm:$0xff]
  %v83 = vld [vmem:[%s1 + $0x140] sm:$0xff]
  %v84 = vld [vmem:[%s1 + $0x148] sm:$0xff]
  %v85 = vld [vmem:[%s1 + $0x150] sm:$0xff]
  %v86 = vld [vmem:[%s1 + $0x158] sm:$0xff]
  %v87 = vld [vmem:[%s1 + $0x160] sm:$0xff]
  %v88 = vld [vmem:[%s1 + $0x168] sm:$0xff]
  %v89 = vld [vmem:[%s1 + $0x170] sm:$0xff]
  %v90 = vld [vmem:[%s1 + $0x178] sm:$0xff]
  %v91 = vld [vmem:[%s1 + $0x180] sm:$0xff]
  %v92 = vld [vmem:[%s1 + $0x188] sm:$0xff]
  %v93 = vld [vmem:[%s1 + $0x190] sm:$0xff]
  %v94 = vld [vmem:[%s1 + $0x198] sm:$0xff]
  %v95 = vld [vmem:[%s1 + $0x1a0] sm:$0xff]
  %v96 = vld [vmem:[%s1 + $0x1a8] sm:$0xff]
  %v97 = vld [vmem:[%s1 + $0x1b0] sm:$0xff]
  %v98 = vld [vmem:[%s1 + $0x1b8] sm:$0xff]
  %v99 = vld [vmem:[%s1 + $0x1c0] sm:$0xff]
  %v100 = vld [vmem:[%s1 + $0x1c8] sm:$0xff]
  %v101 = vld [vmem:[%s1 + $0x1d0] sm:$0xff]
  %v102 = vld [vmem:[%s1 + $0x1d8] sm:$0xff]
  %v103 = vld [vmem:[%s1 + $0x1e0] sm:$0xff]
  %v104 = vld [vmem:[%s1 + $0x1e8] sm:$0xff]
  %v105 = vld [vmem:[%s1 + $0x1f0] sm:$0xff]
  %v106 = vld [vmem:[%s1 + $0x1f8] sm:$0xff]
  %v107 = vld [vmem:[%s1 + $0x200] sm:$0xff]
  %v108 = vld [vmem:[%s1 + $0x208] sm:$0xff]
  %v109 = vld [vmem:[%s1 + $0x210] sm:$0xff]
  %v110 = vld [vmem:[%s1 + $0x218] sm:$0xff]
  %v111 = vld [vmem:[%s1 + $0x220] sm:$0xff]
  %v112 = vld [vmem:[%s1 + $0x228] sm:$0xff]
  %v113 = vld [vmem:[%s1 + $0x230] sm:$0xff]
  %v114 = vld [vmem:[%s1 + $0x238] sm:$0xff]
  %v115 = vld [vmem:[%s1 + $0x240] sm:$0xff]
  %v116 = vld [vmem:[%s1 + $0x248] sm:$0xff]
  %v117 = vld [vmem:[%s1 + $0x250] sm:$0xff]
  %v118 = vld [vmem:[%s1 + $0x258] sm:$0xff]
  %v119 = vld [vmem:[%s1 + $0x260] sm:$0xff]
  %v120 = vld [vmem:[%s1 + $0x268] sm:$0xff]
  %v121 = vld [vmem:[%s1 + $0x270] sm:$0xff]
  %v122 = vld [vmem:[%s1 + $0x278] sm:$0xff]
  %v123 = vld [vmem:[%s1 + $0x280] sm:$0xff]
  %v124 = vld [vmem:[%s1 + $0x288] sm:$0xff]
  %v125 = vld [vmem:[%s1 + $0x290] sm:$0xff]
  %v126 = vld [vmem:[%s1 + $0x298] sm:$0xff]
  %v127 = vld [vmem:[%s1 + $0x2a0] sm:$0xff]
  %v128 = vld [vmem:[%s1 + $0x2a8] sm:$0xff]
  %v129 = vld [vmem:[%s1 + $0x2b0] sm:$0xff]
  %v130 = vld [vmem:[%s1 + $0x2b8] sm:$0xff]
  %v131 = vld [vmem:[%s1 + $0x2c0] sm:$0xff]
  %v132 = vld [vmem:[%s1 + $0x2c8] sm:$0xff]
  %v133 = vld [vmem:[%s1 + $0x2d0] sm:$0xff]
  %v134 = vld [vmem:[%s1 + $0x2d8] sm:$0xff]
  %v135 = vld [vmem:[%s1 + $0x2e0] sm:$0xff]
  %v136 = vld [vmem:[%s1 + $0x2e8] sm:$0xff]
  %v137 = vld [vmem:[%s1 + $0x2f0] sm:$0xff]
  %v138 = vld [vmem:[%s1 + $0x2f8] sm:$0xff]
  %v139 = vld [vmem:[%s1 + $0x300] sm:$0xff]
  %v140 = vld [vmem:[%s1 + $0x308] sm:$0xff]
  %v141 = vld [vmem:[%s1 + $0x310] sm:$0xff]
  %v142 = vld [vmem:[%s1 + $0x318] sm:$0xff]
  %v143 = vld [vmem:[%s1 + $0x320] sm:$0xff]
  %v144 = vld [vmem:[%s1 + $0x328] sm:$0xff]
  %v145 = vld [vmem:[%s1 + $0x330] sm:$0xff]
  %v146 = vld [vmem:[%s1 + $0x338] sm:$0xff]
  %v147 = vld [vmem:[%s1 + $0x340] sm:$0xff]
  %v148 = vld [vmem:[%s1 + $0x348] sm:$0xff]
  %v149 = vld [vmem:[%s1 + $0x350] sm:$0xff]
  %v150 = vld [vmem:[%s1 + $0x358] sm:$0xff]
  %v151 = vld [vmem:[%s1 + $0x360] sm:$0xff]
  %v152 = vld [vmem:[%s1 + $0x368] sm:$0xff]
  %v153 = vld [vmem:[%s1 + $0x370] sm:$0xff]
  %v154 = vld [vmem:[%s1 + $0x378] sm:$0xff]
  %v155 = vld [vmem:[%s1 + $0x380] sm:$0xff]
  %v156 = vld [vmem:[%s1 + $0x388] sm:$0xff]
  %v157 = vld [vmem:[%s1 + $0x390] sm:$0xff]
  %v158 = vld [vmem:[%s1 + $0x398] sm:$0xff]
  %v159 = vld [vmem:[%s1 + $0x3a0] sm:$0xff]
  %v160 = vld [vmem:[%s1 + $0x3a8] sm:$0xff]
  %v161 = vld [vmem:[%s1 + $0x3b0] sm:$0xff]
  %v162 = vld [vmem:[%s1 + $0x3b8] sm:$0xff]
  %v163 = vld [vmem:[%s1 + $0x3c0] sm:$0xff]
  %v164 = vld [vmem:[%s1 + $0x3c8] sm:$0xff]
  %v165 = vld [vmem:[%s1 + $0x3d0] sm:$0xff]
  %v166 = vld [vmem:[%s1 + $0x3d8] sm:$0xff]
  %v167 = vld [vmem:[%s1 + $0x3e0] sm:$0xff]
  %v168 = vld [vmem:[%s1 + $0x3e8] sm:$0xff]
  %v169 = vld [vmem:[%s1 + $0x3f0] sm:$0xff]
  %v170 = vld [vmem:[%s1 + $0x3f8] sm:$0xff]
  %v171 = vld [vmem:[%s1 + $0x400] sm:$0xff]
  %v172 = vld [vmem:[%s1 + $0x408] sm:$0xff]
  %v173 = vld [vmem:[%s1 + $0x410] sm:$0xff]
  %v174 = vld [vmem:[%s1 + $0x418] sm:$0xff]
  %v175 = vld [vmem:[%s1 + $0x420] sm:$0xff]
  %v176 = vld [vmem:[%s1 + $0x428] sm:$0xff]
  %v177 = vld [vmem:[%s1 + $0x430] sm:$0xff]
  %v178 = vld [vmem:[%s1 + $0x438] sm:$0xff]
  %v179 = vld [vmem:[%s1 + $0x440] sm:$0xff]
  %v180 = vld [vmem:[%s1 + $0x448] sm:$0xff]
  %v181 = vld [vmem:[%s1 + $0x450] sm:$0xff]
  %v182 = vld [vmem:[%s1 + $0x458] sm:$0xff]
  %v183 = vld [vmem:[%s1 + $0x460] sm:$0xff]
  %v184 = vld [vmem:[%s1 + $0x468] sm:$0xff]
  %v185 = vld [vmem:[%s1 + $0x470] sm:$0xff]
  %v186 = vld [vmem:[%s1 + $0x478] sm:$0xff]
  %v187 = vld [vmem:[%s1 + $0x480] sm:$0xff]
  %v188 = vld [vmem:[%s1 + $0x488] sm:$0xff]
  %v189 = vld [vmem:[%s1 + $0x490] sm:$0xff]
  %v190 = vld [vmem:[%s1 + $0x498] sm:$0xff]
  %v191 = vld [vmem:[%s1 + $0x4a0] sm:$0xff]
  %v192 = vld [vmem:[%s1 + $0x4a8] sm:$0xff]
  %v193 = vld [vmem:[%s1 + $0x4b0] sm:$0xff]
  %v194 = vld [vmem:[%s1 + $0x4b8] sm:$0xff]
  %v195 = vld [vmem:[%s1 + $0x4c0] sm:$0xff]
  %v196 = vld [vmem:[%s1 + $0x4c8] sm:$0xff]
  %v197 = vld [vmem:[%s1 + $0x4d0] sm:$0xff]
  %v198 = vld [vmem:[%s1 + $0x4d8] sm:$0xff]
  %v199 = vld [vmem:[%s1 + $0x4e0] sm:$0xff]
  %v200 = vld [vmem:[%s1 + $0x4e8] sm:$0xff]
  %v201 = vld [vmem:[%s1 + $0x4f0] sm:$0xff]
  %v202 = vld [vmem:[%s1 + $0x4f8] sm:$0xff]
  %v203 = vld [vmem:[%s1 + $0x500] sm:$0xff]
  %v204 = vld [vmem:[%s1 + $0x508] sm:$0xff]
  %v205 = vld [vmem:[%s1 + $0x510] sm:$0xff]
  %v206 = vld [vmem:[%s1 + $0x518] sm:$0xff]
  %v207 = vld [vmem:[%s1 + $0x520] sm:$0xff]
  %v208 = vld [vmem:[%s1 + $0x528] sm:$0xff]
  %v209 = vld [vmem:[%s1 + $0x530] sm:$0xff]
  %v210 = vld [vmem:[%s1 + $0x538] sm:$0xff]
  %v211 = vld [vmem:[%s1 + $0x540] sm:$0xff]
  %v212 = vld [vmem:[%s1 + $0x548] sm:$0xff]
  %v213 = vld [vmem:[%s1 + $0x550] sm:$0xff]
  %v214 = vld [vmem:[%s1 + $0x558] sm:$0xff]
  %v215 = vld [vmem:[%s1 + $0x560] sm:$0xff]
  %v216 = vld [vmem:[%s1 + $0x568] sm:$0xff]
  %v217 = vld [vmem:[%s1 + $0x570] sm:$0xff]
  %v218 = vld [vmem:[%s1 + $0x578] sm:$0xff]
  %v219 = vld [vmem:[%s1 + $0x580] sm:$0xff]
  %v220 = vld [vmem:[%s1 + $0x588] sm:$0xff]
  %v221 = vld [vmem:[%s1 + $0x590] sm:$0xff]
  %v222 = vld [vmem:[%s1 + $0x598] sm:$0xff]
  %v223 = vld [vmem:[%s1 + $0x5a0] sm:$0xff]
  %v224 = vld [vmem:[%s1 + $0x5a8] sm:$0xff]
  %v225 = vld [vmem:[%s1 + $0x5b0] sm:$0xff]
  %v226 = vld [vmem:[%s1 + $0x5b8] sm:$0xff]
  %v227 = vld [vmem:[%s1 + $0x5c0] sm:$0xff]
  %v228 = vld [vmem:[%s1 + $0x5c8] sm:$0xff]
  %v229 = vld [vmem:[%s1 + $0x5d0] sm:$0xff]
  %v230 = vld [vmem:[%s1 + $0x5d8] sm:$0xff]
  %v231 = vld [vmem:[%s1 + $0x5e0] sm:$0xff]
  %v232 = vld [vmem:[%s1 + $0x5e8] sm:$0xff]
  %v233 = vld [vmem:[%s1 + $0x5f0] sm:$0xff]
  %v234 = vld [vmem:[%s1 + $0x5f8] sm:$0xff]
  %v235 = vld [vmem:[%s1 + $0x600] sm:$0xff]
  %v236 = vld [vmem:[%s1 + $0x608] sm:$0xff]
  %v237 = vld [vmem:[%s1 + $0x610] sm:$0xff]
  %v238 = vld [vmem:[%s1 + $0x618] sm:$0xff]
  %v239 = vld [vmem:[%s1 + $0x620] sm:$0xff]
  %v240 = vld [vmem:[%s1 + $0x628] sm:$0xff]
  %v241 = vld [vmem:[%s1 + $0x630] sm:$0xff]
  %v242 = vld [vmem:[%s1 + $0x638] sm:$0xff]
  %v243 = vld [vmem:[%s1 + $0x640] sm:$0xff]
  %v244 = vld [vmem:[%s1 + $0x648] sm:$0xff]
  %v245 = vld [vmem:[%s1 + $0x650] sm:$0xff]
  %v246 = vld [vmem:[%s1 + $0x658] sm:$0xff]
  %v247 = vld [vmem:[%s1 + $0x660] sm:$0xff]
  %v248 = vld [vmem:[%s1 + $0x668] sm:$0xff]
  %v249 = vld [vmem:[%s1 + $0x670] sm:$0xff]
  %v250 = vld [vmem:[%s1 + $0x678] sm:$0xff]
  %v251 = vld [vmem:[%s1 + $0x680] sm:$0xff]
  %v252 = vld [vmem:[%s1 + $0x688] sm:$0xff]
  %v253 = vld [vmem:[%s1 + $0x690] sm:$0xff]
  %v254 = vld [vmem:[%s1 + $0x698] sm:$0xff]
  %v255 = vld [vmem:[%s1 + $0x6a0] sm:$0xff]
  %v256 = vld [vmem:[%s1 + $0x6a8] sm:$0xff]
  %v257 = vld [vmem:[%s1 + $0x6b0] sm:$0xff]
  %v258 = vld [vmem:[%s1 + $0x6b8] sm:$0xff]
  %v259 = vld [vmem:[%s1 + $0x6c0] sm:$0xff]
  %v260 = vld [vmem:[%s1 + $0x6c8] sm:$0xff]
  %v261 = vld [vmem:[%s1 + $0x6d0] sm:$0xff]
  %v262 = vld [vmem:[%s1 + $0x6d8] sm:$0xff]
  %v263 = vld [vmem:[%s1 + $0x6e0] sm:$0xff]
  %v264 = vld [vmem:[%s1 + $0x6e8] sm:$0xff]
  %v265 = vld [vmem:[%s1 + $0x6f0] sm:$0xff]
  %v266 = vld [vmem:[%s1 + $0x6f8] sm:$0xff]
  %v267 = vld [vmem:[%s1 + $0x700] sm:$0xff]
  %v268 = vld [vmem:[%s1 + $0x708] sm:$0xff]
  %v269 = vld [vmem:[%s1 + $0x710] sm:$0xff]
  %v270 = vld [vmem:[%s1 + $0x718] sm:$0xff]
  %v271 = vld [vmem:[%s1 + $0x720] sm:$0xff]
  %v272 = vld [vmem:[%s1 + $0x728] sm:$0xff]
  %v273 = vld [vmem:[%s1 + $0x730] sm:$0xff]
  %v274 = vld [vmem:[%s1 + $0x738] sm:$0xff]
  %v275 = vld [vmem:[%s1 + $0x740] sm:$0xff]
  %v276 = vld [vmem:[%s1 + $0x748] sm:$0xff]
  %v277 = vld [vmem:[%s1 + $0x750] sm:$0xff]
  %v278 = vld [vmem:[%s1 + $0x758] sm:$0xff]
  %v279 = vld [vmem:[%s1 + $0x760] sm:$0xff]
  %v280 = vld [vmem:[%s1 + $0x768] sm:$0xff]
  %v281 = vld [vmem:[%s1 + $0x770] sm:$0xff]
  %v282 = vld [vmem:[%s1 + $0x778] sm:$0xff]
  %v283 = vld [vmem:[%s1 + $0x780] sm:$0xff]
  %v284 = vld [vmem:[%s1 + $0x788] sm:$0xff]
  %v285 = vld [vmem:[%s1 + $0x790] sm:$0xff]
  %v286 = vld [vmem:[%s1 + $0x798] sm:$0xff]
  %v287 = vld [vmem:[%s1 + $0x7a0] sm:$0xff]
  %v288 = vld [vmem:[%s1 + $0x7a8] sm:$0xff]
  %v289 = vld [vmem:[%s1 + $0x7b0] sm:$0xff]
  %v290 = vld [vmem:[%s1 + $0x7b8] sm:$0xff]
  %v291 = vld [vmem:[%s1 + $0x7c0] sm:$0xff]
  %v292 = vld [vmem:[%s1 + $0x7c8] sm:$0xff]
  %v293 = vld [vmem:[%s1 + $0x7d0] sm:$0xff]
  %v294 = vld [vmem:[%s1 + $0x7d8] sm:$0xff]
  %v295 = vld [vmem:[%s1 + $0x7e0] sm:$0xff]
  %v296 = vld [vmem:[%s1 + $0x7e8] sm:$0xff]
  %v297 = vld [vmem:[%s1 + $0x7f0] sm:$0xff]
  %v298 = vld [vmem:[%s1 + $0x7f8] sm:$0xff]
  %v331 = vunpack.c.l.b16 %v11
  %v332 = vunpack.c.h.b16 %v11
  %v333 = vunpack.c.l.b16 %v12
  %v334 = vunpack.c.h.b16 %v12
  %v335 = vunpack.c.l.b16 %v13
  %v336 = vunpack.c.h.b16 %v13
  %v337 = vunpack.c.l.b16 %v14
  %v338 = vunpack.c.h.b16 %v14
  %v339 = vunpack.c.l.b16 %v15
  %v340 = vunpack.c.h.b16 %v15
  %v341 = vunpack.c.l.b16 %v16
  %v342 = vunpack.c.h.b16 %v16
  %v343 = vunpack.c.l.b16 %v17
  %v344 = vunpack.c.h.b16 %v17
  %v345 = vunpack.c.l.b16 %v18
  %v346 = vunpack.c.h.b16 %v18
  %v347 = vunpack.c.l.b16 %v19
  %v348 = vunpack.c.h.b16 %v19
  %v349 = vunpack.c.l.b16 %v20
  %v350 = vunpack.c.h.b16 %v20
  %v351 = vunpack.c.l.b16 %v21
  %v352 = vunpack.c.h.b16 %v21
  %v353 = vunpack.c.l.b16 %v22
  %v354 = vunpack.c.h.b16 %v22
  %v355 = vunpack.c.l.b16 %v23
  %v356 = vunpack.c.h.b16 %v23
  %v357 = vunpack.c.l.b16 %v24
  %v358 = vunpack.c.h.b16 %v24
  %v359 = vunpack.c.l.b16 %v25
  %v360 = vunpack.c.h.b16 %v25
  %v361 = vunpack.c.l.b16 %v26
  %v362 = vunpack.c.h.b16 %v26
  %v363 = vunpack.c.l.b16 %v27
  %v364 = vunpack.c.h.b16 %v27
  %v365 = vunpack.c.l.b16 %v28
  %v366 = vunpack.c.h.b16 %v28
  %v367 = vunpack.c.l.b16 %v29
  %v368 = vunpack.c.h.b16 %v29
  %v369 = vunpack.c.l.b16 %v30
  %v370 = vunpack.c.h.b16 %v30
  %v371 = vunpack.c.l.b16 %v31
  %v372 = vunpack.c.h.b16 %v31
  %v373 = vunpack.c.l.b16 %v32
  %v374 = vunpack.c.h.b16 %v32
  %v375 = vunpack.c.l.b16 %v33
  %v376 = vunpack.c.h.b16 %v33
  %v377 = vunpack.c.l.b16 %v34
  %v378 = vunpack.c.h.b16 %v34
  %v379 = vunpack.c.l.b16 %v35
  %v380 = vunpack.c.h.b16 %v35
  %v381 = vunpack.c.l.b16 %v36
  %v382 = vunpack.c.h.b16 %v36
  %v383 = vunpack.c.l.b16 %v37
  %v384 = vunpack.c.h.b16 %v37
  %v385 = vunpack.c.l.b16 %v38
  %v386 = vunpack.c.h.b16 %v38
  %v387 = vunpack.c.l.b16 %v39
  %v388 = vunpack.c.h.b16 %v39
  %v389 = vunpack.c.l.b16 %v40
  %v390 = vunpack.c.h.b16 %v40
  %v391 = vunpack.c.l.b16 %v41
  %v392 = vunpack.c.h.b16 %v41
  %v393 = vunpack.c.l.b16 %v42
  %v394 = vunpack.c.h.b16 %v42
  %v395 = vpack.c.b16 %v347, %v331
  %v396 = vpack.c.b16 %v348, %v332
  %v397 = vpack.c.b16 %v349, %v333
  %v398 = vpack.c.b16 %v350, %v334
  %v399 = vpack.c.b16 %v351, %v335
  %v400 = vpack.c.b16 %v352, %v336
  %v401 = vpack.c.b16 %v353, %v337
  %v402 = vpack.c.b16 %v354, %v338
  %v403 = vpack.c.b16 %v355, %v339
  %v404 = vpack.c.b16 %v356, %v340
  %v405 = vpack.c.b16 %v357, %v341
  %v406 = vpack.c.b16 %v358, %v342
  %v407 = vpack.c.b16 %v359, %v343
  %v408 = vpack.c.b16 %v360, %v344
  %v409 = vpack.c.b16 %v361, %v345
  %v410 = vpack.c.b16 %v362, %v346
  %v411 = vpack.c.b16 %v379, %v363
  %v412 = vpack.c.b16 %v380, %v364
  %v413 = vpack.c.b16 %v381, %v365
  %v414 = vpack.c.b16 %v382, %v366
  %v415 = vpack.c.b16 %v383, %v367
  %v416 = vpack.c.b16 %v384, %v368
  %v417 = vpack.c.b16 %v385, %v369
  %v418 = vpack.c.b16 %v386, %v370
  %v419 = vpack.c.b16 %v387, %v371
  %v420 = vpack.c.b16 %v388, %v372
  %v421 = vpack.c.b16 %v389, %v373
  %v422 = vpack.c.b16 %v390, %v374
  %v423 = vpack.c.b16 %v391, %v375
  %v424 = vpack.c.b16 %v392, %v376
  %v425 = vpack.c.b16 %v393, %v377
  %v426 = vpack.c.b16 %v394, %v378
  %v715 = vunpack.c.l.b16 %v43
  %v716 = vunpack.c.h.b16 %v43
  %v717 = vunpack.c.l.b16 %v44
  %v718 = vunpack.c.h.b16 %v44
  %v719 = vunpack.c.l.b16 %v45
  %v720 = vunpack.c.h.b16 %v45
  %v721 = vunpack.c.l.b16 %v46
  %v722 = vunpack.c.h.b16 %v46
  %v723 = vunpack.c.l.b16 %v47
  %v724 = vunpack.c.h.b16 %v47
  %v725 = vunpack.c.l.b16 %v48
  %v726 = vunpack.c.h.b16 %v48
  %v727 = vunpack.c.l.b16 %v49
  %v728 = vunpack.c.h.b16 %v49
  %v729 = vunpack.c.l.b16 %v50
  %v730 = vunpack.c.h.b16 %v50
  %v731 = vunpack.c.l.b16 %v51
  %v732 = vunpack.c.h.b16 %v51
  %v733 = vunpack.c.l.b16 %v52
  %v734 = vunpack.c.h.b16 %v52
  %v735 = vunpack.c.l.b16 %v53
  %v736 = vunpack.c.h.b16 %v53
  %v737 = vunpack.c.l.b16 %v54
  %v738 = vunpack.c.h.b16 %v54
  %v739 = vunpack.c.l.b16 %v55
  %v740 = vunpack.c.h.b16 %v55
  %v741 = vunpack.c.l.b16 %v56
  %v742 = vunpack.c.h.b16 %v56
  %v743 = vunpack.c.l.b16 %v57
  %v744 = vunpack.c.h.b16 %v57
  %v745 = vunpack.c.l.b16 %v58
  %v746 = vunpack.c.h.b16 %v58
  %v747 = vunpack.c.l.b16 %v59
  %v748 = vunpack.c.h.b16 %v59
  %v749 = vunpack.c.l.b16 %v60
  %v750 = vunpack.c.h.b16 %v60
  %v751 = vunpack.c.l.b16 %v61
  %v752 = vunpack.c.h.b16 %v61
  %v753 = vunpack.c.l.b16 %v62
  %v754 = vunpack.c.h.b16 %v62
  %v755 = vunpack.c.l.b16 %v63
  %v756 = vunpack.c.h.b16 %v63
  %v757 = vunpack.c.l.b16 %v64
  %v758 = vunpack.c.h.b16 %v64
  %v759 = vunpack.c.l.b16 %v65
  %v760 = vunpack.c.h.b16 %v65
  %v761 = vunpack.c.l.b16 %v66
  %v762 = vunpack.c.h.b16 %v66
  %v763 = vunpack.c.l.b16 %v67
  %v764 = vunpack.c.h.b16 %v67
  %v765 = vunpack.c.l.b16 %v68
  %v766 = vunpack.c.h.b16 %v68
  %v767 = vunpack.c.l.b16 %v69
  %v768 = vunpack.c.h.b16 %v69
  %v769 = vunpack.c.l.b16 %v70
  %v770 = vunpack.c.h.b16 %v70
  %v771 = vunpack.c.l.b16 %v71
  %v772 = vunpack.c.h.b16 %v71
  %v773 = vunpack.c.l.b16 %v72
  %v774 = vunpack.c.h.b16 %v72
  %v775 = vunpack.c.l.b16 %v73
  %v776 = vunpack.c.h.b16 %v73
  %v777 = vunpack.c.l.b16 %v74
  %v778 = vunpack.c.h.b16 %v74
  %v779 = vunpack.c.l.b16 %v75
  %v780 = vunpack.c.h.b16 %v75
  %v781 = vunpack.c.l.b16 %v76
  %v782 = vunpack.c.h.b16 %v76
  %v783 = vunpack.c.l.b16 %v77
  %v784 = vunpack.c.h.b16 %v77
  %v785 = vunpack.c.l.b16 %v78
  %v786 = vunpack.c.h.b16 %v78
  %v787 = vunpack.c.l.b16 %v79
  %v788 = vunpack.c.h.b16 %v79
  %v789 = vunpack.c.l.b16 %v80
  %v790 = vunpack.c.h.b16 %v80
  %v791 = vunpack.c.l.b16 %v81
  %v792 = vunpack.c.h.b16 %v81
  %v793 = vunpack.c.l.b16 %v82
  %v794 = vunpack.c.h.b16 %v82
  %v795 = vunpack.c.l.b16 %v83
  %v796 = vunpack.c.h.b16 %v83
  %v797 = vunpack.c.l.b16 %v84
  %v798 = vunpack.c.h.b16 %v84
  %v799 = vunpack.c.l.b16 %v85
  %v800 = vunpack.c.h.b16 %v85
  %v801 = vunpack.c.l.b16 %v86
  %v802 = vunpack.c.h.b16 %v86
  %v803 = vunpack.c.l.b16 %v87
  %v804 = vunpack.c.h.b16 %v87
  %v805 = vunpack.c.l.b16 %v88
  %v806 = vunpack.c.h.b16 %v88
  %v807 = vunpack.c.l.b16 %v89
  %v808 = vunpack.c.h.b16 %v89
  %v809 = vunpack.c.l.b16 %v90
  %v810 = vunpack.c.h.b16 %v90
  %v811 = vunpack.c.l.b16 %v91
  %v812 = vunpack.c.h.b16 %v91
  %v813 = vunpack.c.l.b16 %v92
  %v814 = vunpack.c.h.b16 %v92
  %v815 = vunpack.c.l.b16 %v93
  %v816 = vunpack.c.h.b16 %v93
  %v817 = vunpack.c.l.b16 %v94
  %v818 = vunpack.c.h.b16 %v94
  %v819 = vunpack.c.l.b16 %v95
  %v820 = vunpack.c.h.b16 %v95
  %v821 = vunpack.c.l.b16 %v96
  %v822 = vunpack.c.h.b16 %v96
  %v823 = vunpack.c.l.b16 %v97
  %v824 = vunpack.c.h.b16 %v97
  %v825 = vunpack.c.l.b16 %v98
  %v826 = vunpack.c.h.b16 %v98
  %v827 = vunpack.c.l.b16 %v99
  %v828 = vunpack.c.h.b16 %v99
  %v829 = vunpack.c.l.b16 %v100
  %v830 = vunpack.c.h.b16 %v100
  %v831 = vunpack.c.l.b16 %v101
  %v832 = vunpack.c.h.b16 %v101
  %v833 = vunpack.c.l.b16 %v102
  %v834 = vunpack.c.h.b16 %v102
  %v835 = vunpack.c.l.b16 %v103
  %v836 = vunpack.c.h.b16 %v103
  %v837 = vunpack.c.l.b16 %v104
  %v838 = vunpack.c.h.b16 %v104
  %v839 = vunpack.c.l.b16 %v105
  %v840 = vunpack.c.h.b16 %v105
  %v841 = vunpack.c.l.b16 %v106
  %v842 = vunpack.c.h.b16 %v106
  %v843 = vunpack.c.l.b16 %v107
  %v844 = vunpack.c.h.b16 %v107
  %v845 = vunpack.c.l.b16 %v108
  %v846 = vunpack.c.h.b16 %v108
  %v847 = vunpack.c.l.b16 %v109
  %v848 = vunpack.c.h.b16 %v109
  %v849 = vunpack.c.l.b16 %v110
  %v850 = vunpack.c.h.b16 %v110
  %v851 = vunpack.c.l.b16 %v111
  %v852 = vunpack.c.h.b16 %v111
  %v853 = vunpack.c.l.b16 %v112
  %v854 = vunpack.c.h.b16 %v112
  %v855 = vunpack.c.l.b16 %v113
  %v856 = vunpack.c.h.b16 %v113
  %v857 = vunpack.c.l.b16 %v114
  %v858 = vunpack.c.h.b16 %v114
  %v859 = vunpack.c.l.b16 %v115
  %v860 = vunpack.c.h.b16 %v115
  %v861 = vunpack.c.l.b16 %v116
  %v862 = vunpack.c.h.b16 %v116
  %v863 = vunpack.c.l.b16 %v117
  %v864 = vunpack.c.h.b16 %v117
  %v865 = vunpack.c.l.b16 %v118
  %v866 = vunpack.c.h.b16 %v118
  %v867 = vunpack.c.l.b16 %v119
  %v868 = vunpack.c.h.b16 %v119
  %v869 = vunpack.c.l.b16 %v120
  %v870 = vunpack.c.h.b16 %v120
  %v871 = vunpack.c.l.b16 %v121
  %v872 = vunpack.c.h.b16 %v121
  %v873 = vunpack.c.l.b16 %v122
  %v874 = vunpack.c.h.b16 %v122
  %v875 = vunpack.c.l.b16 %v123
  %v876 = vunpack.c.h.b16 %v123
  %v877 = vunpack.c.l.b16 %v124
  %v878 = vunpack.c.h.b16 %v124
  %v879 = vunpack.c.l.b16 %v125
  %v880 = vunpack.c.h.b16 %v125
  %v881 = vunpack.c.l.b16 %v126
  %v882 = vunpack.c.h.b16 %v126
  %v883 = vunpack.c.l.b16 %v127
  %v884 = vunpack.c.h.b16 %v127
  %v885 = vunpack.c.l.b16 %v128
  %v886 = vunpack.c.h.b16 %v128
  %v887 = vunpack.c.l.b16 %v129
  %v888 = vunpack.c.h.b16 %v129
  %v889 = vunpack.c.l.b16 %v130
  %v890 = vunpack.c.h.b16 %v130
  %v891 = vunpack.c.l.b16 %v131
  %v892 = vunpack.c.h.b16 %v131
  %v893 = vunpack.c.l.b16 %v132
  %v894 = vunpack.c.h.b16 %v132
  %v895 = vunpack.c.l.b16 %v133
  %v896 = vunpack.c.h.b16 %v133
  %v897 = vunpack.c.l.b16 %v134
  %v898 = vunpack.c.h.b16 %v134
  %v899 = vunpack.c.l.b16 %v135
  %v900 = vunpack.c.h.b16 %v135
  %v901 = vunpack.c.l.b16 %v136
  %v902 = vunpack.c.h.b16 %v136
  %v903 = vunpack.c.l.b16 %v137
  %v904 = vunpack.c.h.b16 %v137
  %v905 = vunpack.c.l.b16 %v138
  %v906 = vunpack.c.h.b16 %v138
  %v907 = vunpack.c.l.b16 %v139
  %v908 = vunpack.c.h.b16 %v139
  %v909 = vunpack.c.l.b16 %v140
  %v910 = vunpack.c.h.b16 %v140
  %v911 = vunpack.c.l.b16 %v141
  %v912 = vunpack.c.h.b16 %v141
  %v913 = vunpack.c.l.b16 %v142
  %v914 = vunpack.c.h.b16 %v142
  %v915 = vunpack.c.l.b16 %v143
  %v916 = vunpack.c.h.b16 %v143
  %v917 = vunpack.c.l.b16 %v144
  %v918 = vunpack.c.h.b16 %v144
  %v919 = vunpack.c.l.b16 %v145
  %v920 = vunpack.c.h.b16 %v145
  %v921 = vunpack.c.l.b16 %v146
  %v922 = vunpack.c.h.b16 %v146
  %v923 = vunpack.c.l.b16 %v147
  %v924 = vunpack.c.h.b16 %v147
  %v925 = vunpack.c.l.b16 %v148
  %v926 = vunpack.c.h.b16 %v148
  %v927 = vunpack.c.l.b16 %v149
  %v928 = vunpack.c.h.b16 %v149
  %v929 = vunpack.c.l.b16 %v150
  %v930 = vunpack.c.h.b16 %v150
  %v931 = vunpack.c.l.b16 %v151
  %v932 = vunpack.c.h.b16 %v151
  %v933 = vunpack.c.l.b16 %v152
  %v934 = vunpack.c.h.b16 %v152
  %v935 = vunpack.c.l.b16 %v153
  %v936 = vunpack.c.h.b16 %v153
  %v937 = vunpack.c.l.b16 %v154
  %v938 = vunpack.c.h.b16 %v154
  %v939 = vunpack.c.l.b16 %v155
  %v940 = vunpack.c.h.b16 %v155
  %v941 = vunpack.c.l.b16 %v156
  %v942 = vunpack.c.h.b16 %v156
  %v943 = vunpack.c.l.b16 %v157
  %v944 = vunpack.c.h.b16 %v157
  %v945 = vunpack.c.l.b16 %v158
  %v946 = vunpack.c.h.b16 %v158
  %v947 = vunpack.c.l.b16 %v159
  %v948 = vunpack.c.h.b16 %v159
  %v949 = vunpack.c.l.b16 %v160
  %v950 = vunpack.c.h.b16 %v160
  %v951 = vunpack.c.l.b16 %v161
  %v952 = vunpack.c.h.b16 %v161
  %v953 = vunpack.c.l.b16 %v162
  %v954 = vunpack.c.h.b16 %v162
  %v955 = vunpack.c.l.b16 %v163
  %v956 = vunpack.c.h.b16 %v163
  %v957 = vunpack.c.l.b16 %v164
  %v958 = vunpack.c.h.b16 %v164
  %v959 = vunpack.c.l.b16 %v165
  %v960 = vunpack.c.h.b16 %v165
  %v961 = vunpack.c.l.b16 %v166
  %v962 = vunpack.c.h.b16 %v166
  %v963 = vunpack.c.l.b16 %v167
  %v964 = vunpack.c.h.b16 %v167
  %v965 = vunpack.c.l.b16 %v168
  %v966 = vunpack.c.h.b16 %v168
  %v967 = vunpack.c.l.b16 %v169
  %v968 = vunpack.c.h.b16 %v169
  %v969 = vunpack.c.l.b16 %v170
  %v970 = vunpack.c.h.b16 %v170
  %v971 = vunpack.c.l.b16 %v171
  %v972 = vunpack.c.h.b16 %v171
  %v973 = vunpack.c.l.b16 %v172
  %v974 = vunpack.c.h.b16 %v172
  %v975 = vunpack.c.l.b16 %v173
  %v976 = vunpack.c.h.b16 %v173
  %v977 = vunpack.c.l.b16 %v174
  %v978 = vunpack.c.h.b16 %v174
  %v979 = vunpack.c.l.b16 %v175
  %v980 = vunpack.c.h.b16 %v175
  %v981 = vunpack.c.l.b16 %v176
  %v982 = vunpack.c.h.b16 %v176
  %v983 = vunpack.c.l.b16 %v177
  %v984 = vunpack.c.h.b16 %v177
  %v985 = vunpack.c.l.b16 %v178
  %v986 = vunpack.c.h.b16 %v178
  %v987 = vunpack.c.l.b16 %v179
  %v988 = vunpack.c.h.b16 %v179
  %v989 = vunpack.c.l.b16 %v180
  %v990 = vunpack.c.h.b16 %v180
  %v991 = vunpack.c.l.b16 %v181
  %v992 = vunpack.c.h.b16 %v181
  %v993 = vunpack.c.l.b16 %v182
  %v994 = vunpack.c.h.b16 %v182
  %v995 = vunpack.c.l.b16 %v183
  %v996 = vunpack.c.h.b16 %v183
  %v997 = vunpack.c.l.b16 %v184
  %v998 = vunpack.c.h.b16 %v184
  %v999 = vunpack.c.l.b16 %v185
  %v1000 = vunpack.c.h.b16 %v185
  %v1001 = vunpack.c.l.b16 %v186
  %v1002 = vunpack.c.h.b16 %v186
  %v1003 = vunpack.c.l.b16 %v187
  %v1004 = vunpack.c.h.b16 %v187
  %v1005 = vunpack.c.l.b16 %v188
  %v1006 = vunpack.c.h.b16 %v188
  %v1007 = vunpack.c.l.b16 %v189
  %v1008 = vunpack.c.h.b16 %v189
  %v1009 = vunpack.c.l.b16 %v190
  %v1010 = vunpack.c.h.b16 %v190
  %v1011 = vunpack.c.l.b16 %v191
  %v1012 = vunpack.c.h.b16 %v191
  %v1013 = vunpack.c.l.b16 %v192
  %v1014 = vunpack.c.h.b16 %v192
  %v1015 = vunpack.c.l.b16 %v193
  %v1016 = vunpack.c.h.b16 %v193
  %v1017 = vunpack.c.l.b16 %v194
  %v1018 = vunpack.c.h.b16 %v194
  %v1019 = vunpack.c.l.b16 %v195
  %v1020 = vunpack.c.h.b16 %v195
  %v1021 = vunpack.c.l.b16 %v196
  %v1022 = vunpack.c.h.b16 %v196
  %v1023 = vunpack.c.l.b16 %v197
  %v1024 = vunpack.c.h.b16 %v197
  %v1025 = vunpack.c.l.b16 %v198
  %v1026 = vunpack.c.h.b16 %v198
  %v1027 = vunpack.c.l.b16 %v199
  %v1028 = vunpack.c.h.b16 %v199
  %v1029 = vunpack.c.l.b16 %v200
  %v1030 = vunpack.c.h.b16 %v200
  %v1031 = vunpack.c.l.b16 %v201
  %v1032 = vunpack.c.h.b16 %v201
  %v1033 = vunpack.c.l.b16 %v202
  %v1034 = vunpack.c.h.b16 %v202
  %v1035 = vunpack.c.l.b16 %v203
  %v1036 = vunpack.c.h.b16 %v203
  %v1037 = vunpack.c.l.b16 %v204
  %v1038 = vunpack.c.h.b16 %v204
  %v1039 = vunpack.c.l.b16 %v205
  %v1040 = vunpack.c.h.b16 %v205
  %v1041 = vunpack.c.l.b16 %v206
  %v1042 = vunpack.c.h.b16 %v206
  %v1043 = vunpack.c.l.b16 %v207
  %v1044 = vunpack.c.h.b16 %v207
  %v1045 = vunpack.c.l.b16 %v208
  %v1046 = vunpack.c.h.b16 %v208
  %v1047 = vunpack.c.l.b16 %v209
  %v1048 = vunpack.c.h.b16 %v209
  %v1049 = vunpack.c.l.b16 %v210
  %v1050 = vunpack.c.h.b16 %v210
  %v1051 = vunpack.c.l.b16 %v211
  %v1052 = vunpack.c.h.b16 %v211
  %v1053 = vunpack.c.l.b16 %v212
  %v1054 = vunpack.c.h.b16 %v212
  %v1055 = vunpack.c.l.b16 %v213
  %v1056 = vunpack.c.h.b16 %v213
  %v1057 = vunpack.c.l.b16 %v214
  %v1058 = vunpack.c.h.b16 %v214
  %v1059 = vunpack.c.l.b16 %v215
  %v1060 = vunpack.c.h.b16 %v215
  %v1061 = vunpack.c.l.b16 %v216
  %v1062 = vunpack.c.h.b16 %v216
  %v1063 = vunpack.c.l.b16 %v217
  %v1064 = vunpack.c.h.b16 %v217
  %v1065 = vunpack.c.l.b16 %v218
  %v1066 = vunpack.c.h.b16 %v218
  %v1067 = vunpack.c.l.b16 %v219
  %v1068 = vunpack.c.h.b16 %v219
  %v1069 = vunpack.c.l.b16 %v220
  %v1070 = vunpack.c.h.b16 %v220
  %v1071 = vunpack.c.l.b16 %v221
  %v1072 = vunpack.c.h.b16 %v221
  %v1073 = vunpack.c.l.b16 %v222
  %v1074 = vunpack.c.h.b16 %v222
  %v1075 = vunpack.c.l.b16 %v223
  %v1076 = vunpack.c.h.b16 %v223
  %v1077 = vunpack.c.l.b16 %v224
  %v1078 = vunpack.c.h.b16 %v224
  %v1079 = vunpack.c.l.b16 %v225
  %v1080 = vunpack.c.h.b16 %v225
  %v1081 = vunpack.c.l.b16 %v226
  %v1082 = vunpack.c.h.b16 %v226
  %v1083 = vunpack.c.l.b16 %v227
  %v1084 = vunpack.c.h.b16 %v227
  %v1085 = vunpack.c.l.b16 %v228
  %v1086 = vunpack.c.h.b16 %v228
  %v1087 = vunpack.c.l.b16 %v229
  %v1088 = vunpack.c.h.b16 %v229
  %v1089 = vunpack.c.l.b16 %v230
  %v1090 = vunpack.c.h.b16 %v230
  %v1091 = vunpack.c.l.b16 %v231
  %v1092 = vunpack.c.h.b16 %v231
  %v1093 = vunpack.c.l.b16 %v232
  %v1094 = vunpack.c.h.b16 %v232
  %v1095 = vunpack.c.l.b16 %v233
  %v1096 = vunpack.c.h.b16 %v233
  %v1097 = vunpack.c.l.b16 %v234
  %v1098 = vunpack.c.h.b16 %v234
  %v1099 = vunpack.c.l.b16 %v235
  %v1100 = vunpack.c.h.b16 %v235
  %v1101 = vunpack.c.l.b16 %v236
  %v1102 = vunpack.c.h.b16 %v236
  %v1103 = vunpack.c.l.b16 %v237
  %v1104 = vunpack.c.h.b16 %v237
  %v1105 = vunpack.c.l.b16 %v238
  %v1106 = vunpack.c.h.b16 %v238
  %v1107 = vunpack.c.l.b16 %v239
  %v1108 = vunpack.c.h.b16 %v239
  %v1109 = vunpack.c.l.b16 %v240
  %v1110 = vunpack.c.h.b16 %v240
  %v1111 = vunpack.c.l.b16 %v241
  %v1112 = vunpack.c.h.b16 %v241
  %v1113 = vunpack.c.l.b16 %v242
  %v1114 = vunpack.c.h.b16 %v242
  %v1115 = vunpack.c.l.b16 %v243
  %v1116 = vunpack.c.h.b16 %v243
  %v1117 = vunpack.c.l.b16 %v244
  %v1118 = vunpack.c.h.b16 %v244
  %v1119 = vunpack.c.l.b16 %v245
  %v1120 = vunpack.c.h.b16 %v245
  %v1121 = vunpack.c.l.b16 %v246
  %v1122 = vunpack.c.h.b16 %v246
  %v1123 = vunpack.c.l.b16 %v247
  %v1124 = vunpack.c.h.b16 %v247
  %v1125 = vunpack.c.l.b16 %v248
  %v1126 = vunpack.c.h.b16 %v248
  %v1127 = vunpack.c.l.b16 %v249
  %v1128 = vunpack.c.h.b16 %v249
  %v1129 = vunpack.c.l.b16 %v250
  %v1130 = vunpack.c.h.b16 %v250
  %v1131 = vunpack.c.l.b16 %v251
  %v1132 = vunpack.c.h.b16 %v251
  %v1133 = vunpack.c.l.b16 %v252
  %v1134 = vunpack.c.h.b16 %v252
  %v1135 = vunpack.c.l.b16 %v253
  %v1136 = vunpack.c.h.b16 %v253
  %v1137 = vunpack.c.l.b16 %v254
  %v1138 = vunpack.c.h.b16 %v254
  %v1139 = vunpack.c.l.b16 %v255
  %v1140 = vunpack.c.h.b16 %v255
  %v1141 = vunpack.c.l.b16 %v256
  %v1142 = vunpack.c.h.b16 %v256
  %v1143 = vunpack.c.l.b16 %v257
  %v1144 = vunpack.c.h.b16 %v257
  %v1145 = vunpack.c.l.b16 %v258
  %v1146 = vunpack.c.h.b16 %v258
  %v1147 = vunpack.c.l.b16 %v259
  %v1148 = vunpack.c.h.b16 %v259
  %v1149 = vunpack.c.l.b16 %v260
  %v1150 = vunpack.c.h.b16 %v260
  %v1151 = vunpack.c.l.b16 %v261
  %v1152 = vunpack.c.h.b16 %v261
  %v1153 = vunpack.c.l.b16 %v262
  %v1154 = vunpack.c.h.b16 %v262
  %v1155 = vunpack.c.l.b16 %v263
  %v1156 = vunpack.c.h.b16 %v263
  %v1157 = vunpack.c.l.b16 %v264
  %v1158 = vunpack.c.h.b16 %v264
  %v1159 = vunpack.c.l.b16 %v265
  %v1160 = vunpack.c.h.b16 %v265
  %v1161 = vunpack.c.l.b16 %v266
  %v1162 = vunpack.c.h.b16 %v266
  %v1163 = vunpack.c.l.b16 %v267
  %v1164 = vunpack.c.h.b16 %v267
  %v1165 = vunpack.c.l.b16 %v268
  %v1166 = vunpack.c.h.b16 %v268
  %v1167 = vunpack.c.l.b16 %v269
  %v1168 = vunpack.c.h.b16 %v269
  %v1169 = vunpack.c.l.b16 %v270
  %v1170 = vunpack.c.h.b16 %v270
  %v1171 = vunpack.c.l.b16 %v271
  %v1172 = vunpack.c.h.b16 %v271
  %v1173 = vunpack.c.l.b16 %v272
  %v1174 = vunpack.c.h.b16 %v272
  %v1175 = vunpack.c.l.b16 %v273
  %v1176 = vunpack.c.h.b16 %v273
  %v1177 = vunpack.c.l.b16 %v274
  %v1178 = vunpack.c.h.b16 %v274
  %v1179 = vunpack.c.l.b16 %v275
  %v1180 = vunpack.c.h.b16 %v275
  %v1181 = vunpack.c.l.b16 %v276
  %v1182 = vunpack.c.h.b16 %v276
  %v1183 = vunpack.c.l.b16 %v277
  %v1184 = vunpack.c.h.b16 %v277
  %v1185 = vunpack.c.l.b16 %v278
  %v1186 = vunpack.c.h.b16 %v278
  %v1187 = vunpack.c.l.b16 %v279
  %v1188 = vunpack.c.h.b16 %v279
  %v1189 = vunpack.c.l.b16 %v280
  %v1190 = vunpack.c.h.b16 %v280
  %v1191 = vunpack.c.l.b16 %v281
  %v1192 = vunpack.c.h.b16 %v281
  %v1193 = vunpack.c.l.b16 %v282
  %v1194 = vunpack.c.h.b16 %v282
  %v1195 = vunpack.c.l.b16 %v283
  %v1196 = vunpack.c.h.b16 %v283
  %v1197 = vunpack.c.l.b16 %v284
  %v1198 = vunpack.c.h.b16 %v284
  %v1199 = vunpack.c.l.b16 %v285
  %v1200 = vunpack.c.h.b16 %v285
  %v1201 = vunpack.c.l.b16 %v286
  %v1202 = vunpack.c.h.b16 %v286
  %v1203 = vunpack.c.l.b16 %v287
  %v1204 = vunpack.c.h.b16 %v287
  %v1205 = vunpack.c.l.b16 %v288
  %v1206 = vunpack.c.h.b16 %v288
  %v1207 = vunpack.c.l.b16 %v289
  %v1208 = vunpack.c.h.b16 %v289
  %v1209 = vunpack.c.l.b16 %v290
  %v1210 = vunpack.c.h.b16 %v290
  %v1211 = vunpack.c.l.b16 %v291
  %v1212 = vunpack.c.h.b16 %v291
  %v1213 = vunpack.c.l.b16 %v292
  %v1214 = vunpack.c.h.b16 %v292
  %v1215 = vunpack.c.l.b16 %v293
  %v1216 = vunpack.c.h.b16 %v293
  %v1217 = vunpack.c.l.b16 %v294
  %v1218 = vunpack.c.h.b16 %v294
  %v1219 = vunpack.c.l.b16 %v295
  %v1220 = vunpack.c.h.b16 %v295
  %v1221 = vunpack.c.l.b16 %v296
  %v1222 = vunpack.c.h.b16 %v296
  %v1223 = vunpack.c.l.b16 %v297
  %v1224 = vunpack.c.h.b16 %v297
  %v1225 = vunpack.c.l.b16 %v298
  %v1226 = vunpack.c.h.b16 %v298
  %v1227 = vpack.c.b16 %v717, %v715
  %v1228 = vpack.c.b16 %v718, %v716
  %v1229 = vpack.c.b16 %v721, %v719
  %v1230 = vpack.c.b16 %v722, %v720
  %v1231 = vpack.c.b16 %v725, %v723
  %v1232 = vpack.c.b16 %v726, %v724
  %v1233 = vpack.c.b16 %v729, %v727
  %v1234 = vpack.c.b16 %v730, %v728
  %v1235 = vpack.c.b16 %v733, %v731
  %v1236 = vpack.c.b16 %v734, %v732
  %v1237 = vpack.c.b16 %v737, %v735
  %v1238 = vpack.c.b16 %v738, %v736
  %v1239 = vpack.c.b16 %v741, %v739
  %v1240 = vpack.c.b16 %v742, %v740
  %v1241 = vpack.c.b16 %v745, %v743
  %v1242 = vpack.c.b16 %v746, %v744
  %v1243 = vpack.c.b16 %v749, %v747
  %v1244 = vpack.c.b16 %v750, %v748
  %v1245 = vpack.c.b16 %v753, %v751
  %v1246 = vpack.c.b16 %v754, %v752
  %v1247 = vpack.c.b16 %v757, %v755
  %v1248 = vpack.c.b16 %v758, %v756
  %v1249 = vpack.c.b16 %v761, %v759
  %v1250 = vpack.c.b16 %v762, %v760
  %v1251 = vpack.c.b16 %v765, %v763
  %v1252 = vpack.c.b16 %v766, %v764
  %v1253 = vpack.c.b16 %v769, %v767
  %v1254 = vpack.c.b16 %v770, %v768
  %v1255 = vpack.c.b16 %v773, %v771
  %v1256 = vpack.c.b16 %v774, %v772
  %v1257 = vpack.c.b16 %v777, %v775
  %v1258 = vpack.c.b16 %v778, %v776
  %v1259 = vpack.c.b16 %v781, %v779
  %v1260 = vpack.c.b16 %v782, %v780
  %v1261 = vpack.c.b16 %v785, %v783
  %v1262 = vpack.c.b16 %v786, %v784
  %v1263 = vpack.c.b16 %v789, %v787
  %v1264 = vpack.c.b16 %v790, %v788
  %v1265 = vpack.c.b16 %v793, %v791
  %v1266 = vpack.c.b16 %v794, %v792
  %v1267 = vpack.c.b16 %v797, %v795
  %v1268 = vpack.c.b16 %v798, %v796
  %v1269 = vpack.c.b16 %v801, %v799
  %v1270 = vpack.c.b16 %v802, %v800
  %v1271 = vpack.c.b16 %v805, %v803
  %v1272 = vpack.c.b16 %v806, %v804
  %v1273 = vpack.c.b16 %v809, %v807
  %v1274 = vpack.c.b16 %v810, %v808
  %v1275 = vpack.c.b16 %v813, %v811
  %v1276 = vpack.c.b16 %v814, %v812
  %v1277 = vpack.c.b16 %v817, %v815
  %v1278 = vpack.c.b16 %v818, %v816
  %v1279 = vpack.c.b16 %v821, %v819
  %v1280 = vpack.c.b16 %v822, %v820
  %v1281 = vpack.c.b16 %v825, %v823
  %v1282 = vpack.c.b16 %v826, %v824
  %v1283 = vpack.c.b16 %v829, %v827
  %v1284 = vpack.c.b16 %v830, %v828
  %v1285 = vpack.c.b16 %v833, %v831
  %v1286 = vpack.c.b16 %v834, %v832
  %v1287 = vpack.c.b16 %v837, %v835
  %v1288 = vpack.c.b16 %v838, %v836
  %v1289 = vpack.c.b16 %v841, %v839
  %v1290 = vpack.c.b16 %v842, %v840
  %v1291 = vpack.c.b16 %v845, %v843
  %v1292 = vpack.c.b16 %v846, %v844
  %v1293 = vpack.c.b16 %v849, %v847
  %v1294 = vpack.c.b16 %v850, %v848
  %v1295 = vpack.c.b16 %v853, %v851
  %v1296 = vpack.c.b16 %v854, %v852
  %v1297 = vpack.c.b16 %v857, %v855
  %v1298 = vpack.c.b16 %v858, %v856
  %v1299 = vpack.c.b16 %v861, %v859
  %v1300 = vpack.c.b16 %v862, %v860
  %v1301 = vpack.c.b16 %v865, %v863
  %v1302 = vpack.c.b16 %v866, %v864
  %v1303 = vpack.c.b16 %v869, %v867
  %v1304 = vpack.c.b16 %v870, %v868
  %v1305 = vpack.c.b16 %v873, %v871
  %v1306 = vpack.c.b16 %v874, %v872
  %v1307 = vpack.c.b16 %v877, %v875
  %v1308 = vpack.c.b16 %v878, %v876
  %v1309 = vpack.c.b16 %v881, %v879
  %v1310 = vpack.c.b16 %v882, %v880
  %v1311 = vpack.c.b16 %v885, %v883
  %v1312 = vpack.c.b16 %v886, %v884
  %v1313 = vpack.c.b16 %v889, %v887
  %v1314 = vpack.c.b16 %v890, %v888
  %v1315 = vpack.c.b16 %v893, %v891
  %v1316 = vpack.c.b16 %v894, %v892
  %v1317 = vpack.c.b16 %v897, %v895
  %v1318 = vpack.c.b16 %v898, %v896
  %v1319 = vpack.c.b16 %v901, %v899
  %v1320 = vpack.c.b16 %v902, %v900
  %v1321 = vpack.c.b16 %v905, %v903
  %v1322 = vpack.c.b16 %v906, %v904
  %v1323 = vpack.c.b16 %v909, %v907
  %v1324 = vpack.c.b16 %v910, %v908
  %v1325 = vpack.c.b16 %v913, %v911
  %v1326 = vpack.c.b16 %v914, %v912
  %v1327 = vpack.c.b16 %v917, %v915
  %v1328 = vpack.c.b16 %v918, %v916
  %v1329 = vpack.c.b16 %v921, %v919
  %v1330 = vpack.c.b16 %v922, %v920
  %v1331 = vpack.c.b16 %v925, %v923
  %v1332 = vpack.c.b16 %v926, %v924
  %v1333 = vpack.c.b16 %v929, %v927
  %v1334 = vpack.c.b16 %v930, %v928
  %v1335 = vpack.c.b16 %v933, %v931
  %v1336 = vpack.c.b16 %v934, %v932
  %v1337 = vpack.c.b16 %v937, %v935
  %v1338 = vpack.c.b16 %v938, %v936
  %v1339 = vpack.c.b16 %v941, %v939
  %v1340 = vpack.c.b16 %v942, %v940
  %v1341 = vpack.c.b16 %v945, %v943
  %v1342 = vpack.c.b16 %v946, %v944
  %v1343 = vpack.c.b16 %v949, %v947
  %v1344 = vpack.c.b16 %v950, %v948
  %v1345 = vpack.c.b16 %v953, %v951
  %v1346 = vpack.c.b16 %v954, %v952
  %v1347 = vpack.c.b16 %v957, %v955
  %v1348 = vpack.c.b16 %v958, %v956
  %v1349 = vpack.c.b16 %v961, %v959
  %v1350 = vpack.c.b16 %v962, %v960
  %v1351 = vpack.c.b16 %v965, %v963
  %v1352 = vpack.c.b16 %v966, %v964
  %v1353 = vpack.c.b16 %v969, %v967
  %v1354 = vpack.c.b16 %v970, %v968
  %v1355 = vpack.c.b16 %v973, %v971
  %v1356 = vpack.c.b16 %v974, %v972
  %v1357 = vpack.c.b16 %v977, %v975
  %v1358 = vpack.c.b16 %v978, %v976
  %v1359 = vpack.c.b16 %v981, %v979
  %v1360 = vpack.c.b16 %v982, %v980
  %v1361 = vpack.c.b16 %v985, %v983
  %v1362 = vpack.c.b16 %v986, %v984
  %v1363 = vpack.c.b16 %v989, %v987
  %v1364 = vpack.c.b16 %v990, %v988
  %v1365 = vpack.c.b16 %v993, %v991
  %v1366 = vpack.c.b16 %v994, %v992
  %v1367 = vpack.c.b16 %v997, %v995
  %v1368 = vpack.c.b16 %v998, %v996
  %v1369 = vpack.c.b16 %v1001, %v999
  %v1370 = vpack.c.b16 %v1002, %v1000
  %v1371 = vpack.c.b16 %v1005, %v1003
  %v1372 = vpack.c.b16 %v1006, %v1004
  %v1373 = vpack.c.b16 %v1009, %v1007
  %v1374 = vpack.c.b16 %v1010, %v1008
  %v1375 = vpack.c.b16 %v1013, %v1011
  %v1376 = vpack.c.b16 %v1014, %v1012
  %v1377 = vpack.c.b16 %v1017, %v1015
  %v1378 = vpack.c.b16 %v1018, %v1016
  %v1379 = vpack.c.b16 %v1021, %v1019
  %v1380 = vpack.c.b16 %v1022, %v1020
  %v1381 = vpack.c.b16 %v1025, %v1023
  %v1382 = vpack.c.b16 %v1026, %v1024
  %v1383 = vpack.c.b16 %v1029, %v1027
  %v1384 = vpack.c.b16 %v1030, %v1028
  %v1385 = vpack.c.b16 %v1033, %v1031
  %v1386 = vpack.c.b16 %v1034, %v1032
  %v1387 = vpack.c.b16 %v1037, %v1035
  %v1388 = vpack.c.b16 %v1038, %v1036
  %v1389 = vpack.c.b16 %v1041, %v1039
  %v1390 = vpack.c.b16 %v1042, %v1040
  %v1391 = vpack.c.b16 %v1045, %v1043
  %v1392 = vpack.c.b16 %v1046, %v1044
  %v1393 = vpack.c.b16 %v1049, %v1047
  %v1394 = vpack.c.b16 %v1050, %v1048
  %v1395 = vpack.c.b16 %v1053, %v1051
  %v1396 = vpack.c.b16 %v1054, %v1052
  %v1397 = vpack.c.b16 %v1057, %v1055
  %v1398 = vpack.c.b16 %v1058, %v1056
  %v1399 = vpack.c.b16 %v1061, %v1059
  %v1400 = vpack.c.b16 %v1062, %v1060
  %v1401 = vpack.c.b16 %v1065, %v1063
  %v1402 = vpack.c.b16 %v1066, %v1064
  %v1403 = vpack.c.b16 %v1069, %v1067
  %v1404 = vpack.c.b16 %v1070, %v1068
  %v1405 = vpack.c.b16 %v1073, %v1071
  %v1406 = vpack.c.b16 %v1074, %v1072
  %v1407 = vpack.c.b16 %v1077, %v1075
  %v1408 = vpack.c.b16 %v1078, %v1076
  %v1409 = vpack.c.b16 %v1081, %v1079
  %v1410 = vpack.c.b16 %v1082, %v1080
  %v1411 = vpack.c.b16 %v1085, %v1083
  %v1412 = vpack.c.b16 %v1086, %v1084
  %v1413 = vpack.c.b16 %v1089, %v1087
  %v1414 = vpack.c.b16 %v1090, %v1088
  %v1415 = vpack.c.b16 %v1093, %v1091
  %v1416 = vpack.c.b16 %v1094, %v1092
  %v1417 = vpack.c.b16 %v1097, %v1095
  %v1418 = vpack.c.b16 %v1098, %v1096
  %v1419 = vpack.c.b16 %v1101, %v1099
  %v1420 = vpack.c.b16 %v1102, %v1100
  %v1421 = vpack.c.b16 %v1105, %v1103
  %v1422 = vpack.c.b16 %v1106, %v1104
  %v1423 = vpack.c.b16 %v1109, %v1107
  %v1424 = vpack.c.b16 %v1110, %v1108
  %v1425 = vpack.c.b16 %v1113, %v1111
  %v1426 = vpack.c.b16 %v1114, %v1112
  %v1427 = vpack.c.b16 %v1117, %v1115
  %v1428 = vpack.c.b16 %v1118, %v1116
  %v1429 = vpack.c.b16 %v1121, %v1119
  %v1430 = vpack.c.b16 %v1122, %v1120
  %v1431 = vpack.c.b16 %v1125, %v1123
  %v1432 = vpack.c.b16 %v1126, %v1124
  %v1433 = vpack.c.b16 %v1129, %v1127
  %v1434 = vpack.c.b16 %v1130, %v1128
  %v1435 = vpack.c.b16 %v1133, %v1131
  %v1436 = vpack.c.b16 %v1134, %v1132
  %v1437 = vpack.c.b16 %v1137, %v1135
  %v1438 = vpack.c.b16 %v1138, %v1136
  %v1439 = vpack.c.b16 %v1141, %v1139
  %v1440 = vpack.c.b16 %v1142, %v1140
  %v1441 = vpack.c.b16 %v1145, %v1143
  %v1442 = vpack.c.b16 %v1146, %v1144
  %v1443 = vpack.c.b16 %v1149, %v1147
  %v1444 = vpack.c.b16 %v1150, %v1148
  %v1445 = vpack.c.b16 %v1153, %v1151
  %v1446 = vpack.c.b16 %v1154, %v1152
  %v1447 = vpack.c.b16 %v1157, %v1155
  %v1448 = vpack.c.b16 %v1158, %v1156
  %v1449 = vpack.c.b16 %v1161, %v1159
  %v1450 = vpack.c.b16 %v1162, %v1160
  %v1451 = vpack.c.b16 %v1165, %v1163
  %v1452 = vpack.c.b16 %v1166, %v1164
  %v1453 = vpack.c.b16 %v1169, %v1167
  %v1454 = vpack.c.b16 %v1170, %v1168
  %v1455 = vpack.c.b16 %v1173, %v1171
  %v1456 = vpack.c.b16 %v1174, %v1172
  %v1457 = vpack.c.b16 %v1177, %v1175
  %v1458 = vpack.c.b16 %v1178, %v1176
  %v1459 = vpack.c.b16 %v1181, %v1179
  %v1460 = vpack.c.b16 %v1182, %v1180
  %v1461 = vpack.c.b16 %v1185, %v1183
  %v1462 = vpack.c.b16 %v1186, %v1184
  %v1463 = vpack.c.b16 %v1189, %v1187
  %v1464 = vpack.c.b16 %v1190, %v1188
  %v1465 = vpack.c.b16 %v1193, %v1191
  %v1466 = vpack.c.b16 %v1194, %v1192
  %v1467 = vpack.c.b16 %v1197, %v1195
  %v1468 = vpack.c.b16 %v1198, %v1196
  %v1469 = vpack.c.b16 %v1201, %v1199
  %v1470 = vpack.c.b16 %v1202, %v1200
  %v1471 = vpack.c.b16 %v1205, %v1203
  %v1472 = vpack.c.b16 %v1206, %v1204
  %v1473 = vpack.c.b16 %v1209, %v1207
  %v1474 = vpack.c.b16 %v1210, %v1208
  %v1475 = vpack.c.b16 %v1213, %v1211
  %v1476 = vpack.c.b16 %v1214, %v1212
  %v1477 = vpack.c.b16 %v1217, %v1215
  %v1478 = vpack.c.b16 %v1218, %v1216
  %v1479 = vpack.c.b16 %v1221, %v1219
  %v1480 = vpack.c.b16 %v1222, %v1220
  %v1481 = vpack.c.b16 %v1225, %v1223
  %v1482 = vpack.c.b16 %v1226, %v1224
  %1739 = vmatprep.subr.bf16.mxu0 %v1228
  %1740 = vmatpush1.bf16.msra.mxu0 %v1227
  %1741 = vmatprep.subr.bf16.mxu0 %v1230
  %1742 = vmatpush1.bf16.msra.mxu0 %v1229
  %1743 = vmatprep.subr.bf16.mxu0 %v1232
  %1744 = vmatpush1.bf16.msra.mxu0 %v1231
  %1745 = vmatprep.subr.bf16.mxu0 %v1234
  %1746 = vmatpush1.bf16.msra.mxu0 %v1233
  %1747 = vmatprep.subr.bf16.mxu0 %v1236
  %1748 = vmatpush1.bf16.msra.mxu0 %v1235
  %1749 = vmatprep.subr.bf16.mxu0 %v1238
  %1750 = vmatpush1.bf16.msra.mxu0 %v1237
  %1751 = vmatprep.subr.bf16.mxu0 %v1240
  %1752 = vmatpush1.bf16.msra.mxu0 %v1239
  %1753 = vmatprep.subr.bf16.mxu0 %v1242
  %1754 = vmatpush1.bf16.msra.mxu0 %v1241
  %1755 = vmatprep.subr.bf16.mxu0 %v1244
  %1756 = vmatpush1.bf16.msra.mxu0 %v1243
  %1757 = vmatprep.subr.bf16.mxu0 %v1246
  %1758 = vmatpush1.bf16.msra.mxu0 %v1245
  %1759 = vmatprep.subr.bf16.mxu0 %v1248
  %1760 = vmatpush1.bf16.msra.mxu0 %v1247
  %1761 = vmatprep.subr.bf16.mxu0 %v1250
  %1762 = vmatpush1.bf16.msra.mxu0 %v1249
  %1763 = vmatprep.subr.bf16.mxu0 %v1252
  %1764 = vmatpush1.bf16.msra.mxu0 %v1251
  %1765 = vmatprep.subr.bf16.mxu0 %v1254
  %1766 = vmatpush1.bf16.msra.mxu0 %v1253
  %1767 = vmatprep.subr.bf16.mxu0 %v1256
  %1768 = vmatpush1.bf16.msra.mxu0 %v1255
  %1769 = vmatprep.subr.bf16.mxu0 %v1258
  %1770 = vmatpush1.bf16.msra.mxu0 %v1257
  %1771 = vmatprep.mubr.bf16.mxu0 %v396
  %1772 = vmatmul.mubr.bf16.gmra.mrb[0].mxu0 %v395
  %v1773 = vpop.f32.mrb[0].mxu0
  %v1774 = vadd.f32 0.0, %v1773
  %v1775 = vpop.f32.mrb[0].mxu0
  %v1776 = vadd.f32 0.0, %v1775
  %v1777 = vpop.f32.mrb[0].mxu0
  %v1778 = vadd.f32 0.0, %v1777
  %v1779 = vpop.f32.mrb[0].mxu0
  %v1780 = vadd.f32 0.0, %v1779
  %1781 = vmatprep.mubr.bf16.mxu0 %v412
  %1782 = vmatmul.mubr.bf16.gmra.mrb[0].mxu0 %v411
  %v1783 = vpop.f32.mrb[0].mxu0
  %v1784 = vadd.f32 0.0, %v1783
  %v1785 = vpop.f32.mrb[0].mxu0
  %v1786 = vadd.f32 0.0, %v1785
  %v1787 = vpop.f32.mrb[0].mxu0
  %v1788 = vadd.f32 0.0, %v1787
  %v1789 = vpop.f32.mrb[0].mxu0
  %v1790 = vadd.f32 0.0, %v1789
  %1791 = vdwg.mxu0
  %1792 = vmatprep.subr.bf16.mxu0 %v1260
  %1793 = vmatpush1.bf16.msra.mxu0 %v1259
  %1794 = vmatprep.subr.bf16.mxu0 %v1262
  %1795 = vmatpush1.bf16.msra.mxu0 %v1261
  %1796 = vmatprep.subr.bf16.mxu0 %v1264
  %1797 = vmatpush1.bf16.msra.mxu0 %v1263
  %1798 = vmatprep.subr.bf16.mxu0 %v1266
  %1799 = vmatpush1.bf16.msra.mxu0 %v1265
  %1800 = vmatprep.subr.bf16.mxu0 %v1268
  %1801 = vmatpush1.bf16.msra.mxu0 %v1267
  %1802 = vmatprep.subr.bf16.mxu0 %v1270
  %1803 = vmatpush1.bf16.msra.mxu0 %v1269
  %1804 = vmatprep.subr.bf16.mxu0 %v1272
  %1805 = vmatpush1.bf16.msra.mxu0 %v1271
  %1806 = vmatprep.subr.bf16.mxu0 %v1274
  %1807 = vmatpush1.bf16.msra.mxu0 %v1273
  %1808 = vmatprep.subr.bf16.mxu0 %v1276
  %1809 = vmatpush1.bf16.msra.mxu0 %v1275
  %1810 = vmatprep.subr.bf16.mxu0 %v1278
  %1811 = vmatpush1.bf16.msra.mxu0 %v1277
  %1812 = vmatprep.subr.bf16.mxu0 %v1280
  %1813 = vmatpush1.bf16.msra.mxu0 %v1279
  %1814 = vmatprep.subr.bf16.mxu0 %v1282
  %1815 = vmatpush1.bf16.msra.mxu0 %v1281
  %1816 = vmatprep.subr.bf16.mxu0 %v1284
  %1817 = vmatpush1.bf16.msra.mxu0 %v1283
  %1818 = vmatprep.subr.bf16.mxu0 %v1286
  %1819 = vmatpush1.bf16.msra.mxu0 %v1285
  %1820 = vmatprep.subr.bf16.mxu0 %v1288
  %1821 = vmatpush1.bf16.msra.mxu0 %v1287
  %1822 = vmatprep.subr.bf16.mxu0 %v1290
  %1823 = vmatpush1.bf16.msra.mxu0 %v1289
  %1824 = vmatprep.mubr.bf16.mxu0 %v398
  %1825 = vmatmul.mubr.bf16.gmra.mrb[0].mxu0 %v397
  %v1826 = vpop.f32.mrb[0].mxu0
  %v1827 = vadd.f32 %v1774, %v1826
  %v1828 = vpop.f32.mrb[0].mxu0
  %v1829 = vadd.f32 %v1776, %v1828
  %v1830 = vpop.f32.mrb[0].mxu0
  %v1831 = vadd.f32 %v1778, %v1830
  %v1832 = vpop.f32.mrb[0].mxu0
  %v1833 = vadd.f32 %v1780, %v1832
  %1834 = vmatprep.mubr.bf16.mxu0 %v414
  %1835 = vmatmul.mubr.bf16.gmra.mrb[0].mxu0 %v413
  %v1836 = vpop.f32.mrb[0].mxu0
  %v1837 = vadd.f32 %v1784, %v1836
  %v1838 = vpop.f32.mrb[0].mxu0
  %v1839 = vadd.f32 %v1786, %v1838
  %v1840 = vpop.f32.mrb[0].mxu0
  %v1841 = vadd.f32 %v1788, %v1840
  %v1842 = vpop.f32.mrb[0].mxu0
  %v1843 = vadd.f32 %v1790, %v1842
  %1844 = vdwg.mxu0
  %1845 = vmatprep.subr.bf16.mxu0 %v1292
  %1846 = vmatpush1.bf16.msra.mxu0 %v1291
  %1847 = vmatprep.subr.bf16.mxu0 %v1294
  %1848 = vmatpush1.bf16.msra.mxu0 %v1293
  %1849 = vmatprep.subr.bf16.mxu0 %v1296
  %1850 = vmatpush1.bf16.msra.mxu0 %v1295
  %1851 = vmatprep.subr.bf16.mxu0 %v1298
  %1852 = vmatpush1.bf16.msra.mxu0 %v1297
  %1853 = vmatprep.subr.bf16.mxu0 %v1300
  %1854 = vmatpush1.bf16.msra.mxu0 %v1299
  %1855 = vmatprep.subr.bf16.mxu0 %v1302
  %1856 = vmatpush1.bf16.msra.mxu0 %v1301
  %1857 = vmatprep.subr.bf16.mxu0 %v1304
  %1858 = vmatpush1.bf16.msra.mxu0 %v1303
  %1859 = vmatprep.subr.bf16.mxu0 %v1306
  %1860 = vmatpush1.bf16.msra.mxu0 %v1305
  %1861 = vmatprep.subr.bf16.mxu0 %v1308
  %1862 = vmatpush1.bf16.msra.mxu0 %v1307
  %1863 = vmatprep.subr.bf16.mxu0 %v1310
  %1864 = vmatpush1.bf16.msra.mxu0 %v1309
  %1865 = vmatprep.subr.bf16.mxu0 %v1312
  %1866 = vmatpush1.bf16.msra.mxu0 %v1311
  %1867 = vmatprep.subr.bf16.mxu0 %v1314
  %1868 = vmatpush1.bf16.msra.mxu0 %v1313
  %1869 = vmatprep.subr.bf16.mxu0 %v1316
  %1870 = vmatpush1.bf16.msra.mxu0 %v1315
  %1871 = vmatprep.subr.bf16.mxu0 %v1318
  %1872 = vmatpush1.bf16.msra.mxu0 %v1317
  %1873 = vmatprep.subr.bf16.mxu0 %v1320
  %1874 = vmatpush1.bf16.msra.mxu0 %v1319
  %1875 = vmatprep.subr.bf16.mxu0 %v1322
  %1876 = vmatpush1.bf16.msra.mxu0 %v1321
  %1877 = vmatprep.mubr.bf16.mxu0 %v400
  %1878 = vmatmul.mubr.bf16.gmra.mrb[0].mxu0 %v399
  %v1879 = vpop.f32.mrb[0].mxu0
  %v1880 = vadd.f32 %v1827, %v1879
  %v1881 = vpop.f32.mrb[0].mxu0
  %v1882 = vadd.f32 %v1829, %v1881
  %v1883 = vpop.f32.mrb[0].mxu0
  %v1884 = vadd.f32 %v1831, %v1883
  %v1885 = vpop.f32.mrb[0].mxu0
  %v1886 = vadd.f32 %v1833, %v1885
  %1887 = vmatprep.mubr.bf16.mxu0 %v416
  %1888 = vmatmul.mubr.bf16.gmra.mrb[0].mxu0 %v415
  %v1889 = vpop.f32.mrb[0].mxu0
  %v1890 = vadd.f32 %v1837, %v1889
  %v1891 = vpop.f32.mrb[0].mxu0
  %v1892 = vadd.f32 %v1839, %v1891
  %v1893 = vpop.f32.mrb[0].mxu0
  %v1894 = vadd.f32 %v1841, %v1893
  %v1895 = vpop.f32.mrb[0].mxu0
  %v1896 = vadd.f32 %v1843, %v1895
  %1897 = vdwg.mxu0
  %1898 = vmatprep.subr.bf16.mxu0 %v1324
  %1899 = vmatpush1.bf16.msra.mxu0 %v1323
  %1900 = vmatprep.subr.bf16.mxu0 %v1326
  %1901 = vmatpush1.bf16.msra.mxu0 %v1325
  %1902 = vmatprep.subr.bf16.mxu0 %v1328
  %1903 = vmatpush1.bf16.msra.mxu0 %v1327
  %1904 = vmatprep.subr.bf16.mxu0 %v1330
  %1905 = vmatpush1.bf16.msra.mxu0 %v1329
  %1906 = vmatprep.subr.bf16.mxu0 %v1332
  %1907 = vmatpush1.bf16.msra.mxu0 %v1331
  %1908 = vmatprep.subr.bf16.mxu0 %v1334
  %1909 = vmatpush1.bf16.msra.mxu0 %v1333
  %1910 = vmatprep.subr.bf16.mxu0 %v1336
  %1911 = vmatpush1.bf16.msra.mxu0 %v1335
  %1912 = vmatprep.subr.bf16.mxu0 %v1338
  %1913 = vmatpush1.bf16.msra.mxu0 %v1337
  %1914 = vmatprep.subr.bf16.mxu0 %v1340
  %1915 = vmatpush1.bf16.msra.mxu0 %v1339
  %1916 = vmatprep.subr.bf16.mxu0 %v1342
  %1917 = vmatpush1.bf16.msra.mxu0 %v1341
  %1918 = vmatprep.subr.bf16.mxu0 %v1344
  %1919 = vmatpush1.bf16.msra.mxu0 %v1343
  %1920 = vmatprep.subr.bf16.mxu0 %v1346
  %1921 = vmatpush1.bf16.msra.mxu0 %v1345
  %1922 = vmatprep.subr.bf16.mxu0 %v1348
  %1923 = vmatpush1.bf16.msra.mxu0 %v1347
  %1924 = vmatprep.subr.bf16.mxu0 %v1350
  %1925 = vmatpush1.bf16.msra.mxu0 %v1349
  %1926 = vmatprep.subr.bf16.mxu0 %v1352
  %1927 = vmatpush1.bf16.msra.mxu0 %v1351
  %1928 = vmatprep.subr.bf16.mxu0 %v1354
  %1929 = vmatpush1.bf16.msra.mxu0 %v1353
  %1930 = vmatprep.mubr.bf16.mxu0 %v402
  %1931 = vmatmul.mubr.bf16.gmra.mrb[0].mxu0 %v401
  %v1932 = vpop.f32.mrb[0].mxu0
  %v1933 = vadd.f32 %v1880, %v1932
  %v1934 = vpop.f32.mrb[0].mxu0
  %v1935 = vadd.f32 %v1882, %v1934
  %v1936 = vpop.f32.mrb[0].mxu0
  %v1937 = vadd.f32 %v1884, %v1936
  %v1938 = vpop.f32.mrb[0].mxu0
  %v1939 = vadd.f32 %v1886, %v1938
  %1940 = vmatprep.mubr.bf16.mxu0 %v418
  %1941 = vmatmul.mubr.bf16.gmra.mrb[0].mxu0 %v417
  %v1942 = vpop.f32.mrb[0].mxu0
  %v1943 = vadd.f32 %v1890, %v1942
  %v1944 = vpop.f32.mrb[0].mxu0
  %v1945 = vadd.f32 %v1892, %v1944
  %v1946 = vpop.f32.mrb[0].mxu0
  %v1947 = vadd.f32 %v1894, %v1946
  %v1948 = vpop.f32.mrb[0].mxu0
  %v1949 = vadd.f32 %v1896, %v1948
  %1950 = vdwg.mxu0
  %1951 = vmatprep.subr.bf16.mxu0 %v1356
  %1952 = vmatpush1.bf16.msra.mxu0 %v1355
  %1953 = vmatprep.subr.bf16.mxu0 %v1358
  %1954 = vmatpush1.bf16.msra.mxu0 %v1357
  %1955 = vmatprep.subr.bf16.mxu0 %v1360
  %1956 = vmatpush1.bf16.msra.mxu0 %v1359
  %1957 = vmatprep.subr.bf16.mxu0 %v1362
  %1958 = vmatpush1.bf16.msra.mxu0 %v1361
  %1959 = vmatprep.subr.bf16.mxu0 %v1364
  %1960 = vmatpush1.bf16.msra.mxu0 %v1363
  %1961 = vmatprep.subr.bf16.mxu0 %v1366
  %1962 = vmatpush1.bf16.msra.mxu0 %v1365
  %1963 = vmatprep.subr.bf16.mxu0 %v1368
  %1964 = vmatpush1.bf16.msra.mxu0 %v1367
  %1965 = vmatprep.subr.bf16.mxu0 %v1370
  %1966 = vmatpush1.bf16.msra.mxu0 %v1369
  %1967 = vmatprep.subr.bf16.mxu0 %v1372
  %1968 = vmatpush1.bf16.msra.mxu0 %v1371
  %1969 = vmatprep.subr.bf16.mxu0 %v1374
  %1970 = vmatpush1.bf16.msra.mxu0 %v1373
  %1971 = vmatprep.subr.bf16.mxu0 %v1376
  %1972 = vmatpush1.bf16.msra.mxu0 %v1375
  %1973 = vmatprep.subr.bf16.mxu0 %v1378
  %1974 = vmatpush1.bf16.msra.mxu0 %v1377
  %1975 = vmatprep.subr.bf16.mxu0 %v1380
  %1976 = vmatpush1.bf16.msra.mxu0 %v1379
  %1977 = vmatprep.subr.bf16.mxu0 %v1382
  %1978 = vmatpush1.bf16.msra.mxu0 %v1381
  %1979 = vmatprep.subr.bf16.mxu0 %v1384
  %1980 = vmatpush1.bf16.msra.mxu0 %v1383
  %1981 = vmatprep.subr.bf16.mxu0 %v1386
  %1982 = vmatpush1.bf16.msra.mxu0 %v1385
  %1983 = vmatprep.mubr.bf16.mxu0 %v404
  %1984 = vmatmul.mubr.bf16.gmra.mrb[0].mxu0 %v403
  %v1985 = vpop.f32.mrb[0].mxu0
  %v1986 = vadd.f32 %v1933, %v1985
  %v1987 = vpop.f32.mrb[0].mxu0
  %v1988 = vadd.f32 %v1935, %v1987
  %v1989 = vpop.f32.mrb[0].mxu0
  %v1990 = vadd.f32 %v1937, %v1989
  %v1991 = vpop.f32.mrb[0].mxu0
  %v1992 = vadd.f32 %v1939, %v1991
  %1993 = vmatprep.mubr.bf16.mxu0 %v420
  %1994 = vmatmul.mubr.bf16.gmra.mrb[0].mxu0 %v419
  %v1995 = vpop.f32.mrb[0].mxu0
  %v1996 = vadd.f32 %v1943, %v1995
  %v1997 = vpop.f32.mrb[0].mxu0
  %v1998 = vadd.f32 %v1945, %v1997
  %v1999 = vpop.f32.mrb[0].mxu0
  %v2000 = vadd.f32 %v1947, %v1999
  %v2001 = vpop.f32.mrb[0].mxu0
  %v2002 = vadd.f32 %v1949, %v2001
  %2003 = vdwg.mxu0
  %2004 = vmatprep.subr.bf16.mxu0 %v1388
  %2005 = vmatpush1.bf16.msra.mxu0 %v1387
  %2006 = vmatprep.subr.bf16.mxu0 %v1390
  %2007 = vmatpush1.bf16.msra.mxu0 %v1389
  %2008 = vmatprep.subr.bf16.mxu0 %v1392
  %2009 = vmatpush1.bf16.msra.mxu0 %v1391
  %2010 = vmatprep.subr.bf16.mxu0 %v1394
  %2011 = vmatpush1.bf16.msra.mxu0 %v1393
  %2012 = vmatprep.subr.bf16.mxu0 %v1396
  %2013 = vmatpush1.bf16.msra.mxu0 %v1395
  %2014 = vmatprep.subr.bf16.mxu0 %v1398
  %2015 = vmatpush1.bf16.msra.mxu0 %v1397
  %2016 = vmatprep.subr.bf16.mxu0 %v1400
  %2017 = vmatpush1.bf16.msra.mxu0 %v1399
  %2018 = vmatprep.subr.bf16.mxu0 %v1402
  %2019 = vmatpush1.bf16.msra.mxu0 %v1401
  %2020 = vmatprep.subr.bf16.mxu0 %v1404
  %2021 = vmatpush1.bf16.msra.mxu0 %v1403
  %2022 = vmatprep.subr.bf16.mxu0 %v1406
  %2023 = vmatpush1.bf16.msra.mxu0 %v1405
  %2024 = vmatprep.subr.bf16.mxu0 %v1408
  %2025 = vmatpush1.bf16.msra.mxu0 %v1407
  %2026 = vmatprep.subr.bf16.mxu0 %v1410
  %2027 = vmatpush1.bf16.msra.mxu0 %v1409
  %2028 = vmatprep.subr.bf16.mxu0 %v1412
  %2029 = vmatpush1.bf16.msra.mxu0 %v1411
  %2030 = vmatprep.subr.bf16.mxu0 %v1414
  %2031 = vmatpush1.bf16.msra.mxu0 %v1413
  %2032 = vmatprep.subr.bf16.mxu0 %v1416
  %2033 = vmatpush1.bf16.msra.mxu0 %v1415
  %2034 = vmatprep.subr.bf16.mxu0 %v1418
  %2035 = vmatpush1.bf16.msra.mxu0 %v1417
  %2036 = vmatprep.mubr.bf16.mxu0 %v406
  %2037 = vmatmul.mubr.bf16.gmra.mrb[0].mxu0 %v405
  %v2038 = vpop.f32.mrb[0].mxu0
  %v2039 = vadd.f32 %v1986, %v2038
  %v2040 = vpop.f32.mrb[0].mxu0
  %v2041 = vadd.f32 %v1988, %v2040
  %v2042 = vpop.f32.mrb[0].mxu0
  %v2043 = vadd.f32 %v1990, %v2042
  %v2044 = vpop.f32.mrb[0].mxu0
  %v2045 = vadd.f32 %v1992, %v2044
  %2046 = vmatprep.mubr.bf16.mxu0 %v422
  %2047 = vmatmul.mubr.bf16.gmra.mrb[0].mxu0 %v421
  %v2048 = vpop.f32.mrb[0].mxu0
  %v2049 = vadd.f32 %v1996, %v2048
  %v2050 = vpop.f32.mrb[0].mxu0
  %v2051 = vadd.f32 %v1998, %v2050
  %v2052 = vpop.f32.mrb[0].mxu0
  %v2053 = vadd.f32 %v2000, %v2052
  %v2054 = vpop.f32.mrb[0].mxu0
  %v2055 = vadd.f32 %v2002, %v2054
  %2056 = vdwg.mxu0
  %2057 = vmatprep.subr.bf16.mxu0 %v1420
  %2058 = vmatpush1.bf16.msra.mxu0 %v1419
  %2059 = vmatprep.subr.bf16.mxu0 %v1422
  %2060 = vmatpush1.bf16.msra.mxu0 %v1421
  %2061 = vmatprep.subr.bf16.mxu0 %v1424
  %2062 = vmatpush1.bf16.msra.mxu0 %v1423
  %2063 = vmatprep.subr.bf16.mxu0 %v1426
  %2064 = vmatpush1.bf16.msra.mxu0 %v1425
  %2065 = vmatprep.subr.bf16.mxu0 %v1428
  %2066 = vmatpush1.bf16.msra.mxu0 %v1427
  %2067 = vmatprep.subr.bf16.mxu0 %v1430
  %2068 = vmatpush1.bf16.msra.mxu0 %v1429
  %2069 = vmatprep.subr.bf16.mxu0 %v1432
  %2070 = vmatpush1.bf16.msra.mxu0 %v1431
  %2071 = vmatprep.subr.bf16.mxu0 %v1434
  %2072 = vmatpush1.bf16.msra.mxu0 %v1433
  %2073 = vmatprep.subr.bf16.mxu0 %v1436
  %2074 = vmatpush1.bf16.msra.mxu0 %v1435
  %2075 = vmatprep.subr.bf16.mxu0 %v1438
  %2076 = vmatpush1.bf16.msra.mxu0 %v1437
  %2077 = vmatprep.subr.bf16.mxu0 %v1440
  %2078 = vmatpush1.bf16.msra.mxu0 %v1439
  %2079 = vmatprep.subr.bf16.mxu0 %v1442
  %2080 = vmatpush1.bf16.msra.mxu0 %v1441
  %2081 = vmatprep.subr.bf16.mxu0 %v1444
  %2082 = vmatpush1.bf16.msra.mxu0 %v1443
  %2083 = vmatprep.subr.bf16.mxu0 %v1446
  %2084 = vmatpush1.bf16.msra.mxu0 %v1445
  %2085 = vmatprep.subr.bf16.mxu0 %v1448
  %2086 = vmatpush1.bf16.msra.mxu0 %v1447
  %2087 = vmatprep.subr.bf16.mxu0 %v1450
  %2088 = vmatpush1.bf16.msra.mxu0 %v1449
  %2089 = vmatprep.mubr.bf16.mxu0 %v408
  %2090 = vmatmul.mubr.bf16.gmra.mrb[0].mxu0 %v407
  %v2091 = vpop.f32.mrb[0].mxu0
  %v2092 = vadd.f32 %v2039, %v2091
  %v2093 = vpop.f32.mrb[0].mxu0
  %v2094 = vadd.f32 %v2041, %v2093
  %v2095 = vpop.f32.mrb[0].mxu0
  %v2096 = vadd.f32 %v2043, %v2095
  %v2097 = vpop.f32.mrb[0].mxu0
  %v2098 = vadd.f32 %v2045, %v2097
  %2099 = vmatprep.mubr.bf16.mxu0 %v424
  %2100 = vmatmul.mubr.bf16.gmra.mrb[0].mxu0 %v423
  %v2101 = vpop.f32.mrb[0].mxu0
  %v2102 = vadd.f32 %v2049, %v2101
  %v2103 = vpop.f32.mrb[0].mxu0
  %v2104 = vadd.f32 %v2051, %v2103
  %v2105 = vpop.f32.mrb[0].mxu0
  %v2106 = vadd.f32 %v2053, %v2105
  %v2107 = vpop.f32.mrb[0].mxu0
  %v2108 = vadd.f32 %v2055, %v2107
  %2109 = vdwg.mxu0
  %2110 = vmatprep.subr.bf16.mxu0 %v1452
  %2111 = vmatpush1.bf16.msra.mxu0 %v1451
  %2112 = vmatprep.subr.bf16.mxu0 %v1454
  %2113 = vmatpush1.bf16.msra.mxu0 %v1453
  %2114 = vmatprep.subr.bf16.mxu0 %v1456
  %2115 = vmatpush1.bf16.msra.mxu0 %v1455
  %2116 = vmatprep.subr.bf16.mxu0 %v1458
  %2117 = vmatpush1.bf16.msra.mxu0 %v1457
  %2118 = vmatprep.subr.bf16.mxu0 %v1460
  %2119 = vmatpush1.bf16.msra.mxu0 %v1459
  %2120 = vmatprep.subr.bf16.mxu0 %v1462
  %2121 = vmatpush1.bf16.msra.mxu0 %v1461
  %2122 = vmatprep.subr.bf16.mxu0 %v1464
  %2123 = vmatpush1.bf16.msra.mxu0 %v1463
  %2124 = vmatprep.subr.bf16.mxu0 %v1466
  %2125 = vmatpush1.bf16.msra.mxu0 %v1465
  %2126 = vmatprep.subr.bf16.mxu0 %v1468
  %2127 = vmatpush1.bf16.msra.mxu0 %v1467
  %2128 = vmatprep.subr.bf16.mxu0 %v1470
  %2129 = vmatpush1.bf16.msra.mxu0 %v1469
  %2130 = vmatprep.subr.bf16.mxu0 %v1472
  %2131 = vmatpush1.bf16.msra.mxu0 %v1471
  %2132 = vmatprep.subr.bf16.mxu0 %v1474
  %2133 = vmatpush1.bf16.msra.mxu0 %v1473
  %2134 = vmatprep.subr.bf16.mxu0 %v1476
  %2135 = vmatpush1.bf16.msra.mxu0 %v1475
  %2136 = vmatprep.subr.bf16.mxu0 %v1478
  %2137 = vmatpush1.bf16.msra.mxu0 %v1477
  %2138 = vmatprep.subr.bf16.mxu0 %v1480
  %2139 = vmatpush1.bf16.msra.mxu0 %v1479
  %2140 = vmatprep.subr.bf16.mxu0 %v1482
  %2141 = vmatpush1.bf16.msra.mxu0 %v1481
  %2142 = vmatprep.mubr.bf16.mxu0 %v410
  %2143 = vmatmul.mubr.bf16.gmra.mrb[0].mxu0 %v409
  %v2144 = vpop.f32.mrb[0].mxu0
  %v2145 = vadd.f32 %v2092, %v2144
  %v2146 = vpop.f32.mrb[0].mxu0
  %v2147 = vadd.f32 %v2094, %v2146
  %v2148 = vpop.f32.mrb[0].mxu0
  %v2149 = vadd.f32 %v2096, %v2148
  %v2150 = vpop.f32.mrb[0].mxu0
  %v2151 = vadd.f32 %v2098, %v2150
  %2152 = vmatprep.mubr.bf16.mxu0 %v426
  %2153 = vmatmul.mubr.bf16.gmra.mrb[0].mxu0 %v425
  %v2154 = vpop.f32.mrb[0].mxu0
  %v2155 = vadd.f32 %v2102, %v2154
  %v2156 = vpop.f32.mrb[0].mxu0
  %v2157 = vadd.f32 %v2104, %v2156
  %v2158 = vpop.f32.mrb[0].mxu0
  %v2159 = vadd.f32 %v2106, %v2158
  %v2160 = vpop.f32.mrb[0].mxu0
  %v2161 = vadd.f32 %v2108, %v2160
  %2162 = vdwg.mxu0
  %2163 = vst [vmem:[%s2] sm:$0xff] %v2145
  %2164 = vst [vmem:[%s2 + $0x8] sm:$0xff] %v2147
  %2165 = vst [vmem:[%s2 + $0x10] sm:$0xff] %v2149
  %2166 = vst [vmem:[%s2 + $0x18] sm:$0xff] %v2151
  %2167 = vst [vmem:[%s2 + $0x20] sm:$0xff] %v2155
  %2168 = vst [vmem:[%s2 + $0x28] sm:$0xff] %v2157
  %2169 = vst [vmem:[%s2 + $0x30] sm:$0xff] %v2159
  %2170 = vst [vmem:[%s2 + $0x38] sm:$0xff] %v2161
  // Predicated region
  $region10: #{cifar_discriminator_forward.12} parent=0 // pred_check
    _
  $region11: #{cifar_discriminator_forward.12} parent=0 // pred_check_branch
    %2172 = sbr.rel (0) target = $region13
  $region12: #{cifar_discriminator_forward.12} parent=0 // pred_region
    _
  $region13: #{cifar_discriminator_forward.12} parent=0 // pred_fallthru
    _
  // Predicated region
  $region14: #{cifar_discriminator_forward.12} parent=0 // pred_check
    _
  $region15: #{cifar_discriminator_forward.12} parent=0 // pred_check_branch
    %2174 = sbr.rel (0) target = $region17
  $region16: #{cifar_discriminator_forward.12} parent=0 // pred_region
    _
  $region17: #{cifar_discriminator_forward.12} parent=0 // pred_fallthru
    _

</llo_original>
